<compile_context>
chip_gen: v6e
topology: v6e:2x2x1
jax: 0.10.0
libtpu: 0.0.40
codegen_flags: <defaults>
</compile_context>

<pallas_src>
import functools

import jax
import jax.numpy as jnp
from jax.experimental import pallas as pl
from jax.experimental.pallas import tpu as pltpu


# ---------------------------------------------------------------------------
# Generation-aware VMEM budgets.
# ---------------------------------------------------------------------------
def _vmem_capacity_bytes():
    """Physical VMEM per core; default to 128 MiB if the query is unavailable."""
    try:
        info = pltpu.get_tpu_info()
        cap = getattr(info, "vmem_capacity_bytes", None)
        if cap:
            return int(cap)
    except Exception:
        pass
    return 128 * 1024 * 1024


def _vmem_budgets():
    """(per-buffer byte target, scoped vmem_limit_bytes) for this generation."""
    cap = _vmem_capacity_bytes()
    if cap <= 64 * 1024 * 1024:                      # v7x-class: 64 MiB physical
        return 4 * 1024 * 1024, 32 * 1024 * 1024
    return 8 * 1024 * 1024, 48 * 1024 * 1024         # v5e / v6e: 128 MiB physical


def _score_tile(n, d, itemsize, buf_budget):
    """Node-dim tile for kernel 1, sized by bytes (multiple of 128 or full N)."""
    if n * d * itemsize <= buf_budget:
        return n
    tn = (buf_budget // (d * itemsize)) // 128 * 128
    return max(int(tn), 128)


def _gather_tile(k, d, itemsize, buf_budget):
    """k-dim tile for kernel 2: gather buf + double-buffered out ~ 3*tk*D*isz."""
    tk = buf_budget // (3 * d * itemsize)
    tk = min(int(tk), 1024)                          # bound the per-row wait loop
    tk = max((tk // 8) * 8, 8)
    return k if k <= tk else tk


# ---------------------------------------------------------------------------
# Kernel 1: node scores only.
# x_ref: (1, tn, D)  w_ref: (1, D)  b_ref: (1, 1)  scores_ref: (1, 1, tn)
# ---------------------------------------------------------------------------
def _score_kernel(x_ref, w_ref, b_ref, scores_ref):
    x = x_ref[0].astype(jnp.float32)                       # (tn, D)
    w = w_ref[...].astype(jnp.float32)                     # (1, D)
    logits = jnp.sum(x * w, axis=-1) + b_ref[0, 0]         # (tn,)  VPU + XLU reduce
    # Lane-dense store (N on the lane axis) -> unmasked vst downstream.
    scores_ref[...] = jax.nn.sigmoid(logits)[None, None, :]


# ---------------------------------------------------------------------------
# Kernel 2: fused gather + score scale, tiled over k.
#   ids_ref : SMEM (B * k_pad,) int32 flat row ids (b*N + node), scalar-prefetched
#   x_hbm   : (B*N, D) raw HBM ref (memory_space=pl.ANY)
#   ssel_ref: (1, tk, 1) selected (top-k) scores for this tile
#   out_ref : (1, tk, D)
#   buf     : VMEM (tk, D) gather buffer
#   sem     : single DMA semaphore shared by all tk row copies of this tile
# ---------------------------------------------------------------------------
def _gather_scale_kernel(ids_ref, x_hbm, ssel_ref, out_ref, buf, sem, *, tk, k_pad):
    b = pl.program_id(0)
    t = pl.program_id(1)
    base = b * k_pad + t * tk

    # Issue ALL tk row-gather DMAs before the first wait: the copies are tiny
    # (D * itemsize bytes) and latency-bound, so maximum outstanding copies is
    # what hides HBM latency.
    @pl.loop(0, tk)
    def _(j):
        row = ids_ref[base + j]
        pltpu.make_async_copy(
            x_hbm.at[pl.ds(row, 1)], buf.at[pl.ds(j, 1)], sem.at[0]
        ).start()

    # Drain: each wait retires one row-sized completion on the shared semaphore
    # (only the descriptor shape matters for the wait amount).
    @pl.loop(0, tk)
    def _(j):
        pltpu.make_async_copy(
            x_hbm.at[pl.ds(0, 1)], buf.at[pl.ds(0, 1)], sem.at[0]
        ).wait()

    # All tk rows resident: fuse the `x * scores` scale here (the scaled tensor
    # never round-trips through HBM).
    rows = buf[...].astype(jnp.float32)                    # (tk, D)
    s = ssel_ref[0].astype(jnp.float32)                    # (tk, 1)
    out_ref[0] = (rows * s).astype(out_ref.dtype)


# ---------------------------------------------------------------------------
# Pure-JAX path: used as the small-problem fallback and as the test reference.
# ---------------------------------------------------------------------------
def _graph_pool_jax(x, w, b, pooling_ratio=0.5):
    B, N, D = x.shape
    k = max(int(N * pooling_ratio), 1)
    w2 = jnp.asarray(w).reshape(1, D)
    b0 = jnp.asarray(b).reshape(-1)[0]
    s = jax.nn.sigmoid(jnp.einsum("bnd,od->bno", x, w2) + b0)   # (B, N, 1)
    _, idx = jax.lax.top_k(s[:, :, 0], k)                       # (B, k)
    xs = x * s
    return jnp.take_along_axis(xs, idx[:, :, None], axis=1)     # (B, k, D)


def graph_pool(x, w, b, pooling_ratio=0.5):
    """Pallas GraphPool.forward.

    Args:
      x: (B, N, D) node features.
      w: (1, D) score_layer weight (torch nn.Linear(D, 1).weight layout).
      b: score_layer bias (any shape with one element).

    TODO(synk): nn.Dropout(0.1) is treated as identity (eval-mode forward).
    """
    B, N, D = x.shape
    k = max(int(N * pooling_ratio), 1)
    itemsize = jnp.dtype(x.dtype).itemsize

    # Small-problem fallback: two kernel launches + top_k glue are pure fixed
    # overhead when the whole problem is a few KiB.
    if B * N * D * itemsize < 256 * 1024:
        return _graph_pool_jax(x, w, b, pooling_ratio)

    w2 = jnp.asarray(w).reshape(1, D)
    b2 = jnp.asarray(b).reshape(1, 1)

    buf_budget, vmem_limit = _vmem_budgets()
    tn = _score_tile(N, D, itemsize, buf_budget)

    # --- Kernel 1: scores only (x*scores is fused into the gather below). ---
    scores = pl.pallas_call(
        _score_kernel,
        out_shape=jax.ShapeDtypeStruct((B, 1, N), jnp.float32),
        grid_spec=pltpu.PrefetchScalarGridSpec(
            num_scalar_prefetch=0,
            grid=(B, pl.cdiv(N, tn)),
            in_specs=[
                pl.BlockSpec((1, tn, D), lambda bi, ti: (bi, ti, 0)),
                pl.BlockSpec((1, D), lambda bi, ti: (0, 0)),
                pl.BlockSpec((1, 1), lambda bi, ti: (0, 0)),
            ],
            out_specs=pl.BlockSpec((1, 1, tn), lambda bi, ti: (bi, 0, ti)),
        ),
        compiler_params=pltpu.CompilerParams(
            dimension_semantics=("parallel", "parallel"),
            vmem_limit_bytes=vmem_limit,
        ),
    )(x, w2, b2)

    scores_2d = scores[:, 0, :]                                   # (B, N)

    # --- Glue: top-k node selection (descending, lower index wins ties). ---
    top_vals, top_idx = jax.lax.top_k(scores_2d, k)               # (B, k)

    # --- Kernel 2: tiled (over k), fused DMA-gather + scale. ---
    tk = _gather_tile(k, D, itemsize, buf_budget)
    num_t = pl.cdiv(k, tk)
    k_pad = num_t * tk
    if k_pad > k:
        # Pad with repeats of the last valid id so every row DMA reads a real
        # row; the padded output rows are masked away by the (B, k, D) out spec.
        top_idx = jnp.pad(top_idx, ((0, 0), (0, k_pad - k)), mode="edge")
        top_vals = jnp.pad(top_vals, ((0, 0), (0, k_pad - k)))

    # Flat 1-D id table (avoids 2-D SMEM row padding).
    flat_ids = (jnp.arange(B, dtype=jnp.int32)[:, None] * N
                + top_idx.astype(jnp.int32)).reshape(-1)          # (B * k_pad,)
    sel_scores = top_vals[:, :, None]                             # (B, k_pad, 1)

    pooled = pl.pallas_call(
        functools.partial(_gather_scale_kernel, tk=tk, k_pad=k_pad),
        out_shape=jax.ShapeDtypeStruct((B, k, D), x.dtype),
        grid_spec=pltpu.PrefetchScalarGridSpec(
            num_scalar_prefetch=1,
            grid=(B, num_t),
            in_specs=[
                pl.BlockSpec(memory_space=pl.ANY),                # x flat (B*N, D)
                pl.BlockSpec((1, tk, 1), lambda bi, ti, ids: (bi, ti, 0)),
            ],
            out_specs=pl.BlockSpec((1, tk, D), lambda bi, ti, ids: (bi, ti, 0)),
            scratch_shapes=[
                pltpu.VMEM((tk, D), x.dtype),
                pltpu.SemaphoreType.DMA((1,)),
            ],
        ),
        compiler_params=pltpu.CompilerParams(
            dimension_semantics=("parallel", "parallel"),
            vmem_limit_bytes=vmem_limit,
        ),
    )(flat_ids, x.reshape(B * N, D), sel_scores)

    return pooled


if __name__ == "__main__":
    key = jax.random.PRNGKey(0)
    kx, kw, kb = jax.random.split(key, 3)

    # Pallas-path test shape (still small: 512 KiB of node features).
    B, N, D = 2, 512, 128
    pooling_ratio = 0.5

    x = jax.random.normal(kx, (B, N, D), dtype=jnp.float32)
    # score_layer = nn.Linear(D, 1): weight (1, D), bias (1, 1)
    bound = 1.0 / (D ** 0.5)
    w = jax.random.uniform(kw, (1, D), dtype=jnp.float32, minval=-bound, maxval=bound)
    b = jax.random.uniform(kb, (1, 1), dtype=jnp.float32, minval=-bound, maxval=bound)

    out = jax.block_until_ready(graph_pool(x, w, b, pooling_ratio))
    k = max(int(N * pooling_ratio), 1)
    ref = _graph_pool_jax(x, w, b, pooling_ratio)
    assert out.shape == (B, k, D), out.shape
    assert jnp.allclose(out, ref, atol=1e-5, rtol=1e-5), "mismatch vs reference"

    # Tiny-shape path (exercises the small-problem fallback).
    x2 = jax.random.normal(kx, (2, 16, 32), dtype=jnp.float32)
    w2 = jax.random.uniform(kw, (1, 32), dtype=jnp.float32, minval=-bound, maxval=bound)
    out2 = jax.block_until_ready(graph_pool(x2, w2, b, pooling_ratio))
    ref2 = _graph_pool_jax(x2, w2, b, pooling_ratio)
    assert out2.shape == (2, 8, 32), out2.shape
    assert jnp.allclose(out2, ref2, atol=1e-5, rtol=1e-5), "mismatch vs reference (tiny)"

    print("KERNEL_OK")
</pallas_src>

<mosaic_0001>
module attributes {stable_mosaic.version = 11 : i64} {
  func.func @_score_kernel(%arg0: i32, %arg1: i32, %arg2: memref<1x512x128xf32, #tpu.memory_space<vmem>>, %arg3: memref<1x128xf32, #tpu.memory_space<vmem>>, %arg4: memref<1x1xf32, #tpu.memory_space<vmem>>, %arg5: memref<1x1x512xf32, #tpu.memory_space<vmem>>) attributes {dimension_semantics = [#tpu.dimension_semantics<parallel>, #tpu.dimension_semantics<parallel>], iteration_bounds = array<i64: 2, 1>, scalar_prefetch = 0 : i64, scratch_operands = 0 : i64, tpu.core_type = #tpu.core_type<tc>, window_params = [{transform_indices = @transform_0, window_bounds = array<i64: 1, 512, 128>}, {pipeline_mode = #tpu.pipeline_mode<synchronous>, transform_indices = @transform_1, window_bounds = array<i64: 1, 128>}, {pipeline_mode = #tpu.pipeline_mode<synchronous>, transform_indices = @transform_2, window_bounds = array<i64: 1, 1>}, {transform_indices = @transform_3, window_bounds = array<i64: 1, 1, 512>}]} {
    %c0 = arith.constant 0 : index
    %c0_0 = arith.constant 0 : index
    %c0_1 = arith.constant 0 : index
    %0 = vector.load %arg2[%c0, %c0_0, %c0_1] : memref<1x512x128xf32, #tpu.memory_space<vmem>>, vector<1x512x128xf32>
    %1 = vector.shape_cast %0 : vector<1x512x128xf32> to vector<512x128xf32>
    %c0_2 = arith.constant 0 : index
    %c0_3 = arith.constant 0 : index
    %2 = vector.load %arg3[%c0_2, %c0_3] : memref<1x128xf32, #tpu.memory_space<vmem>>, vector<1x128xf32>
    %3 = vector.broadcast %2 : vector<1x128xf32> to vector<512x128xf32>
    %4 = arith.mulf %1, %3 : vector<512x128xf32>
    %cst = arith.constant dense<0.000000e+00> : vector<512xf32>
    %5 = vector.multi_reduction <add>, %4, %cst [1] : vector<512x128xf32> to vector<512xf32>
    %c0_4 = arith.constant 0 : index
    %c0_5 = arith.constant 0 : index
    %6 = vector.load %arg4[%c0_4, %c0_5] : memref<1x1xf32, #tpu.memory_space<vmem>>, vector<1x1xf32>
    %7 = vector.extract %6[0, 0] : f32 from vector<1x1xf32>
    %8 = vector.broadcast %7 : f32 to vector<512xf32>
    %9 = arith.addf %5, %8 : vector<512xf32>
    %10 = arith.negf %9 : vector<512xf32>
    %11 = math.exp %10 : vector<512xf32>
    %cst_6 = arith.constant 1.000000e+00 : f32
    %12 = vector.broadcast %cst_6 : f32 to vector<512xf32>
    %13 = arith.addf %12, %11 : vector<512xf32>
    %14 = arith.divf %12, %13 : vector<512xf32>
    %15 = vector.shape_cast %14 : vector<512xf32> to vector<1x1x512xf32>
    %c0_7 = arith.constant 0 : index
    %c0_8 = arith.constant 0 : index
    %c0_9 = arith.constant 0 : index
    %16 = vector.load %arg5[%c0_7, %c0_8, %c0_9] : memref<1x1x512xf32, #tpu.memory_space<vmem>>, vector<1x1x512xf32>
    tpu.vector_store %arg5[%c0_7, %c0_8, %c0_9], %15 {strides = array<i32>} : memref<1x1x512xf32, #tpu.memory_space<vmem>>, vector<1x1x512xf32>,
    return
  }
  func.func @transform_0(%arg0: i32, %arg1: i32) -> (i32, i32, i32) {
    %c0_i32 = arith.constant 0 : i32
    %c0_i32_0 = arith.constant 0 : i32
    return %arg0, %arg1, %c0_i32 : i32, i32, i32
  }
  func.func @transform_1(%arg0: i32, %arg1: i32) -> (i32, i32) {
    %c0_i32 = arith.constant 0 : i32
    %c0_i32_0 = arith.constant 0 : i32
    %c0_i32_1 = arith.constant 0 : i32
    return %c0_i32, %c0_i32_0 : i32, i32
  }
  func.func @transform_2(%arg0: i32, %arg1: i32) -> (i32, i32) {
    %c0_i32 = arith.constant 0 : i32
    %c0_i32_0 = arith.constant 0 : i32
    %c0_i32_1 = arith.constant 0 : i32
    return %c0_i32, %c0_i32_0 : i32, i32
  }
  func.func @transform_3(%arg0: i32, %arg1: i32) -> (i32, i32, i32) {
    %c0_i32 = arith.constant 0 : i32
    %c0_i32_0 = arith.constant 0 : i32
    return %arg0, %c0_i32, %arg1 : i32, i32, i32
  }
}

</mosaic_0001>

<llo_original>
// kernel: tpu_custom_call.1
$region0: #{tpu_custom_call.1}
  #allocation0 [shape = 'u32[]', space=smem, size = 0x4, offset = 0x4, fixed_abs, tag = 'smem constant byte address 0x4 - core index']
  #allocation1 [shape = 'u32[144,128]{1,0:T(1,128)}', space=vmem, size = 0x12000, scoped, tag = 'internal scratch']
  #allocation2 [shape = 'f32[1,1]{1,0:T(1,128)S(1)}', space=vmem, size = 0x200, scoped, tag = 'scoped memory for tpu_custom_call.1']
  %s0 = inlined_call_operand.hbm [shape: f32[2,512,128], index: 0, kind: input, shape index: {}]
  %s1 = inlined_call_operand.vmem [shape: f32[1,128], index: 1, kind: input, shape index: {}]
  %s2 = inlined_call_operand.<no memory space> [shape: f32[1,1], index: 2, kind: input, shape index: {}]
  %s3 = inlined_call_operand.hbm [shape: f32[2,1,512], index: 3, kind: output, shape index: {}]
  %s4 = sld [smem:[#allocation0]]
  $region49: #{tpu_custom_call.1} parent=0
    _
  %s6 = ssub.s32 1, %s4
  %s7 = scalar_select 0, %s6, %s4
  %v8 = vstv %s2
  %9 = vst [vmem:[#allocation2] sm:$0x1] %v8
  $region1: #{tpu_custom_call.1} parent=0
    #allocation3 [shape = 'u8[524288]{0}', space=vmem, size = 0x80000, scoped, tag = 'input window, operand 0']
    #allocation4 [shape = 's32[2]{0}', space=sflag, size = 0x8, scoped, tag = 'scoped memory for tpu_custom_call.1']
    #allocation5 [shape = 's32[2]{0}', space=sflag, size = 0x8, scoped, tag = 'scoped memory for tpu_custom_call.1']
    #allocation6 [shape = 'u8[4096]{0}', space=vmem, size = 0x1000, scoped, tag = 'output window, operand 0']
    %10 = vsyncpa [#allocation4], 0
    %s11 = scalar_lea.sflag [#allocation4], 1
    %12 = vsyncpa %s11, 0
    %13 = vsyncpa [#allocation5], 0
    %s14 = scalar_lea.sflag [#allocation5], 1
    %15 = vsyncpa %s14, 0
    loop: start=0, step=1, limit=4
    $region2: #{tpu_custom_call.1} parent=1 // loop_pre_header
      _
    $region3: #{tpu_custom_call.1} parent=1 // loop_header
      %s17 = sphi 0, %s21
      %p18 = scmp.ge.s32.totalorder %s17, 4
      %s24 = sphi 0, %s36
      %s25 = sphi 0, %s32
      %s26 = sphi 0, %s24
      %s27 = sphi 0, %s25
      %s28 = sphi 0, %s26
      %s29 = sphi 0, %s27
      %s41 = sphi 0, %s43
      %s44 = sphi 0, %s41
      %s45 = sphi 0, %s44
      %s61 = sphi 0, %s45
      %s65 = sphi 0, %s65
      %s67 = sphi 0, %s65
      %s68 = sphi 0, %s67
      %s82 = sphi 0, %s68
      %s86 = sphi 0, %s86
      %s88 = sphi 0, %s86
      %s89 = sphi 0, %s88
      %s103 = sphi 0, %s89
      %s111 = sphi 0, %s113
      %s114 = sphi 0, %s111
      %s115 = sphi 0, %s114
      %s131 = sphi 0, %s115
    $region4: #{tpu_custom_call.1} parent=1 // loop_header_branch
      %20 = sbr.rel (%p18) target = $region8
    $region5: #{tpu_custom_call.1} parent=1 // loop_body
      %s22 = ssub.s32 %s17, 1
      %s23 = ssub.s32 %s17, 2
      %s30 = sadd.s32 1, %s25
      %p31 = scmp.ge.s32.totalorder %s30, 1
      %s32 = scalar_select %p31, 0, %s30
      %s33 = sadd.s32 1, %s24
      %s34 = scalar_select %p31, %s33, %s24
      %p35 = scmp.ge.s32.totalorder %s34, 2
      %s36 = scalar_select %p35, 0, %s34
      %s37 = ssub.s32 %s24, %s36
      %s38 = ssub.s32 %s25, %s32
      %s39 = sor.u32 %s37, %s38
      %p40 = scmp.eq.s32.totalorder %s39, 0
      %s42 = sadd.s32 %s41, 1
      %s43 = scalar_select %p40, %s41, %s42
      %p46 = pneg %p40
      %p47 = scmp.eq.s32.totalorder %s17, 1
      %p48 = por %p46, %p47
      %p49 = scmp.ne.s32.totalorder %s41, %s44
      %p50 = scmp.eq.s32.totalorder %s17, 0
      %p51 = por %p49, %p50
      %p52 = scmp.ne.s32.totalorder %s41, %s44
      %p53 = scmp.eq.s32.totalorder %s22, 1
      %p54 = por %p52, %p53
      %p55 = scmp.ne.s32.totalorder %s44, %s45
      %p56 = scmp.eq.s32.totalorder %s22, 0
      %p57 = por %p55, %p56
      %p58 = scmp.ne.s32.totalorder %s44, %s45
      %p59 = scmp.eq.s32.totalorder %s23, 1
      %p60 = por %p58, %p59
      %p62 = scmp.ne.s32.totalorder %s45, %s61
      %p63 = scmp.eq.s32.totalorder %s23, 0
      %p64 = por %p62, %p63
      %s66 = sadd.s32 %s65, 1
      %p69 = scmp.eq.s32.totalorder %s17, 1
      %p70 = scmp.ne.s32.totalorder %s65, %s67
      %p71 = scmp.eq.s32.totalorder %s17, 0
      %p72 = por %p70, %p71
      %p73 = scmp.ne.s32.totalorder %s65, %s67
      %p74 = scmp.eq.s32.totalorder %s22, 1
      %p75 = por %p73, %p74
      %p76 = scmp.ne.s32.totalorder %s67, %s68
      %p77 = scmp.eq.s32.totalorder %s22, 0
      %p78 = por %p76, %p77
      %p79 = scmp.ne.s32.totalorder %s67, %s68
      %p80 = scmp.eq.s32.totalorder %s23, 1
      %p81 = por %p79, %p80
      %p83 = scmp.ne.s32.totalorder %s68, %s82
      %p84 = scmp.eq.s32.totalorder %s23, 0
      %p85 = por %p83, %p84
      %s87 = sadd.s32 %s86, 1
      %p90 = scmp.eq.s32.totalorder %s17, 1
      %p91 = scmp.ne.s32.totalorder %s86, %s88
      %p92 = scmp.eq.s32.totalorder %s17, 0
      %p93 = por %p91, %p92
      %p94 = scmp.ne.s32.totalorder %s86, %s88
      %p95 = scmp.eq.s32.totalorder %s22, 1
      %p96 = por %p94, %p95
      %p97 = scmp.ne.s32.totalorder %s88, %s89
      %p98 = scmp.eq.s32.totalorder %s22, 0
      %p99 = por %p97, %p98
      %p100 = scmp.ne.s32.totalorder %s88, %s89
      %p101 = scmp.eq.s32.totalorder %s23, 1
      %p102 = por %p100, %p101
      %p104 = scmp.ne.s32.totalorder %s89, %s103
      %p105 = scmp.eq.s32.totalorder %s23, 0
      %p106 = por %p104, %p105
      %s107 = ssub.s32 %s24, %s36
      %s108 = ssub.s32 %s25, %s32
      %s109 = sor.u32 %s107, %s108
      %p110 = scmp.eq.s32.totalorder %s109, 0
      %s112 = sadd.s32 %s111, 1
      %s113 = scalar_select %p110, %s111, %s112
      %p116 = pneg %p110
      %p117 = scmp.eq.s32.totalorder %s17, 1
      %p118 = por %p116, %p117
      %p119 = scmp.ne.s32.totalorder %s111, %s114
      %p120 = scmp.eq.s32.totalorder %s17, 0
      %p121 = por %p119, %p120
      %p122 = scmp.ne.s32.totalorder %s111, %s114
      %p123 = scmp.eq.s32.totalorder %s22, 1
      %p124 = por %p122, %p123
      %p125 = scmp.ne.s32.totalorder %s114, %s115
      %p126 = scmp.eq.s32.totalorder %s22, 0
      %p127 = por %p125, %p126
      %p128 = scmp.ne.s32.totalorder %s114, %s115
      %p129 = scmp.eq.s32.totalorder %s23, 1
      %p130 = por %p128, %p129
      %p132 = scmp.ne.s32.totalorder %s115, %s131
      %p133 = scmp.eq.s32.totalorder %s23, 0
      %p134 = por %p132, %p133
      %p135 = scmp.le.s32.totalorder 1, %s17
      %p136 = scmp.lt.s32.totalorder %s17, 3
      %p137 = pnand %p135, %p136
      %p138 = pneg %p137
      // Predicated region
      $region9: #{tpu_custom_call.1} parent=5 // pred_check
        _
      $region10: #{tpu_custom_call.1} parent=5 // pred_check_branch
        %140 = sbr.rel (%p137) target = $region12
      $region11: #{tpu_custom_call.1} parent=5 // pred_region
        %s141 = ssub.s32 %s17, 1
        // Predicated region
        $region13: #{tpu_custom_call.1} parent=11 // pred_check
          %p142 = pneg %p78
        $region14: #{tpu_custom_call.1} parent=11 // pred_check_branch
          %144 = sbr.rel (%p142) target = $region16
        $region15: #{tpu_custom_call.1} parent=11 // pred_region
          _
        $region16: #{tpu_custom_call.1} parent=11 // pred_fallthru
          _
        // Predicated region
        $region17: #{tpu_custom_call.1} parent=11 // pred_check
          %p145 = pneg %p99
        $region18: #{tpu_custom_call.1} parent=11 // pred_check_branch
          %147 = sbr.rel (%p145) target = $region20
        $region19: #{tpu_custom_call.1} parent=11 // pred_region
          _
        $region20: #{tpu_custom_call.1} parent=11 // pred_fallthru
          _
      $region12: #{tpu_custom_call.1} parent=5 // pred_fallthru
        _
      %p148 = scmp.lt.s32.totalorder %s17, 2
      // Predicated region
      $region21: #{tpu_custom_call.1} parent=5 // pred_check
        %p149 = pneg %p148
      $region22: #{tpu_custom_call.1} parent=5 // pred_check_branch
        %151 = sbr.rel (%p149) target = $region24
      $region23: #{tpu_custom_call.1} parent=5 // pred_region
        // Predicated region
        $region25: #{tpu_custom_call.1} parent=23 // pred_check
          %p152 = pneg %p51
        $region26: #{tpu_custom_call.1} parent=23 // pred_check_branch
          %154 = sbr.rel (%p152) target = $region28
        $region27: #{tpu_custom_call.1} parent=23 // pred_region
          %s155 = sand.u32 %s41, 1
          %s156 = scalar_lea.sflag [#allocation4], %s155
          %s157 = sand.u32 %s41, 1
          %s158 = smul.addr %s157, 512
          %s159 = scalar_lea.vmem [#allocation3], %s158
          %s160 = smul.u32 64, %s25
          %s162 = ssub.s32 8192, 8192
          %163 = vsyncadd %s156, %s162
          %s164 = smul.addr %s24, 64
          %s165 = sadd.s32 %s160, %s164
          %s166 = smul.addr %s165, 128
          %s167 = scalar_lea.hbm %s0, %s166
          %s168 = sshll.u32 %s159, 4
          %s169 = int_to_ptr.vmem [resolvable:$true] %s168
          %174 = dma.hbm_to_vmem [thread:$0]  %s167, 8192, %s169, %s156, 128, 128, 8
        $region28: #{tpu_custom_call.1} parent=23 // pred_fallthru
          _
      $region24: #{tpu_custom_call.1} parent=5 // pred_fallthru
        _
      %p175 = scmp.le.s32.totalorder 1, %s17
      %p176 = scmp.lt.s32.totalorder %s17, 3
      %p177 = pnand %p175, %p176
      %p178 = pneg %p177
      // Predicated region
      $region29: #{tpu_custom_call.1} parent=5 // pred_check
        _
      $region30: #{tpu_custom_call.1} parent=5 // pred_check_branch
        %180 = sbr.rel (%p177) target = $region32
      $region31: #{tpu_custom_call.1} parent=5 // pred_region
        %s181 = ssub.s32 %s17, 1
        %s182 = sand.u32 %s44, 1
        %s183 = scalar_lea.sflag [#allocation4], %s182
        %s184 = sand.u32 %s44, 1
        %s185 = smul.addr %s184, 512
        %s186 = scalar_lea.vmem [#allocation3], %s185
        // Predicated region
        $region33: #{tpu_custom_call.1} parent=31 // pred_check
          %p187 = pneg %p57
        $region34: #{tpu_custom_call.1} parent=31 // pred_check_branch
          %189 = sbr.rel (%p187) target = $region36
        $region35: #{tpu_custom_call.1} parent=31 // pred_region
          %190 = dma.done %s183, 8192
        $region36: #{tpu_custom_call.1} parent=31 // pred_fallthru
          _
        %s191 = sand.u32 %s44, 1
        %s192 = scalar_lea.sflag [#allocation4], %s191
        %s193 = sand.u32 %s44, 1
        %s194 = smul.addr %s193, 512
        %s195 = scalar_lea.vmem [#allocation3], %s194
        %p196 = pneg %p57
        %p197 = pneg %p54
        %p198 = pneg %p78
        %p199 = pneg %p75
        %p200 = pneg %p99
        %p201 = pneg %p96
        %p202 = pneg %p127
        %p203 = pneg %p124
        %s204 = sand.u32 %s114, 1
        %s205 = scalar_lea.sflag [#allocation5], %s204
        %s206 = sand.u32 %s114, 1
        %s207 = smul.addr %s206, 4
        %s208 = scalar_lea.vmem [#allocation6], %s207
        %s209 = smul.u32 64, %s27
        %s210 = smul.u32 4, %s27
        %v211 = vld [vmem:[%s186] sm:$0xff]
        %v212 = vld [vmem:[%s186 + $0x8] sm:$0xff]
        %v213 = vld [vmem:[%s186 + $0x10] sm:$0xff]
        %v214 = vld [vmem:[%s186 + $0x18] sm:$0xff]
        %v215 = vld [vmem:[%s186 + $0x20] sm:$0xff]
        %v216 = vld [vmem:[%s186 + $0x28] sm:$0xff]
        %v217 = vld [vmem:[%s186 + $0x30] sm:$0xff]
        %v218 = vld [vmem:[%s186 + $0x38] sm:$0xff]
        %v219 = vld [vmem:[%s186 + $0x40] sm:$0xff]
        %v220 = vld [vmem:[%s186 + $0x48] sm:$0xff]
        %v221 = vld [vmem:[%s186 + $0x50] sm:$0xff]
        %v222 = vld [vmem:[%s186 + $0x58] sm:$0xff]
        %v223 = vld [vmem:[%s186 + $0x60] sm:$0xff]
        %v224 = vld [vmem:[%s186 + $0x68] sm:$0xff]
        %v225 = vld [vmem:[%s186 + $0x70] sm:$0xff]
        %v226 = vld [vmem:[%s186 + $0x78] sm:$0xff]
        %v227 = vld [vmem:[%s186 + $0x80] sm:$0xff]
        %v228 = vld [vmem:[%s186 + $0x88] sm:$0xff]
        %v229 = vld [vmem:[%s186 + $0x90] sm:$0xff]
        %v230 = vld [vmem:[%s186 + $0x98] sm:$0xff]
        %v231 = vld [vmem:[%s186 + $0xa0] sm:$0xff]
        %v232 = vld [vmem:[%s186 + $0xa8] sm:$0xff]
        %v233 = vld [vmem:[%s186 + $0xb0] sm:$0xff]
        %v234 = vld [vmem:[%s186 + $0xb8] sm:$0xff]
        %v235 = vld [vmem:[%s186 + $0xc0] sm:$0xff]
        %v236 = vld [vmem:[%s186 + $0xc8] sm:$0xff]
        %v237 = vld [vmem:[%s186 + $0xd0] sm:$0xff]
        %v238 = vld [vmem:[%s186 + $0xd8] sm:$0xff]
        %v239 = vld [vmem:[%s186 + $0xe0] sm:$0xff]
        %v240 = vld [vmem:[%s186 + $0xe8] sm:$0xff]
        %v241 = vld [vmem:[%s186 + $0xf0] sm:$0xff]
        %v242 = vld [vmem:[%s186 + $0xf8] sm:$0xff]
        %v243 = vld [vmem:[%s186 + $0x100] sm:$0xff]
        %v244 = vld [vmem:[%s186 + $0x108] sm:$0xff]
        %v245 = vld [vmem:[%s186 + $0x110] sm:$0xff]
        %v246 = vld [vmem:[%s186 + $0x118] sm:$0xff]
        %v247 = vld [vmem:[%s186 + $0x120] sm:$0xff]
        %v248 = vld [vmem:[%s186 + $0x128] sm:$0xff]
        %v249 = vld [vmem:[%s186 + $0x130] sm:$0xff]
        %v250 = vld [vmem:[%s186 + $0x138] sm:$0xff]
        %v251 = vld [vmem:[%s186 + $0x140] sm:$0xff]
        %v252 = vld [vmem:[%s186 + $0x148] sm:$0xff]
        %v253 = vld [vmem:[%s186 + $0x150] sm:$0xff]
        %v254 = vld [vmem:[%s186 + $0x158] sm:$0xff]
        %v255 = vld [vmem:[%s186 + $0x160] sm:$0xff]
        %v256 = vld [vmem:[%s186 + $0x168] sm:$0xff]
        %v257 = vld [vmem:[%s186 + $0x170] sm:$0xff]
        %v258 = vld [vmem:[%s186 + $0x178] sm:$0xff]
        %v259 = vld [vmem:[%s186 + $0x180] sm:$0xff]
        %v260 = vld [vmem:[%s186 + $0x188] sm:$0xff]
        %v261 = vld [vmem:[%s186 + $0x190] sm:$0xff]
        %v262 = vld [vmem:[%s186 + $0x198] sm:$0xff]
        %v263 = vld [vmem:[%s186 + $0x1a0] sm:$0xff]
        %v264 = vld [vmem:[%s186 + $0x1a8] sm:$0xff]
        %v265 = vld [vmem:[%s186 + $0x1b0] sm:$0xff]
        %v266 = vld [vmem:[%s186 + $0x1b8] sm:$0xff]
        %v267 = vld [vmem:[%s186 + $0x1c0] sm:$0xff]
        %v268 = vld [vmem:[%s186 + $0x1c8] sm:$0xff]
        %v269 = vld [vmem:[%s186 + $0x1d0] sm:$0xff]
        %v270 = vld [vmem:[%s186 + $0x1d8] sm:$0xff]
        %v271 = vld [vmem:[%s186 + $0x1e0] sm:$0xff]
        %v272 = vld [vmem:[%s186 + $0x1e8] sm:$0xff]
        %v273 = vld [vmem:[%s186 + $0x1f0] sm:$0xff]
        %v274 = vld [vmem:[%s186 + $0x1f8] sm:$0xff]
        %v275 = vld [vmem:[%s1] sm:$0x1]
        %v277 = vlaneseq
        %v278 = vshrl.u32 %v277, 7
        %v279 = vsub.s32 0, %v278
        %v280 = vrot.slane %v275, %v279
        %v282 = vmul.f32 %v211, %v280
        %v283 = vmul.f32 %v212, %v280
        %v284 = vmul.f32 %v213, %v280
        %v285 = vmul.f32 %v214, %v280
        %v286 = vmul.f32 %v215, %v280
        %v287 = vmul.f32 %v216, %v280
        %v288 = vmul.f32 %v217, %v280
        %v289 = vmul.f32 %v218, %v280
        %v290 = vmul.f32 %v219, %v280
        %v291 = vmul.f32 %v220, %v280
        %v292 = vmul.f32 %v221, %v280
        %v293 = vmul.f32 %v222, %v280
        %v294 = vmul.f32 %v223, %v280
        %v295 = vmul.f32 %v224, %v280
        %v296 = vmul.f32 %v225, %v280
        %v297 = vmul.f32 %v226, %v280
        %v298 = vmul.f32 %v227, %v280
        %v299 = vmul.f32 %v228, %v280
        %v300 = vmul.f32 %v229, %v280
        %v301 = vmul.f32 %v230, %v280
        %v302 = vmul.f32 %v231, %v280
        %v303 = vmul.f32 %v232, %v280
        %v304 = vmul.f32 %v233, %v280
        %v305 = vmul.f32 %v234, %v280
        %v306 = vmul.f32 %v235, %v280
        %v307 = vmul.f32 %v236, %v280
        %v308 = vmul.f32 %v237, %v280
        %v309 = vmul.f32 %v238, %v280
        %v310 = vmul.f32 %v239, %v280
        %v311 = vmul.f32 %v240, %v280
        %v312 = vmul.f32 %v241, %v280
        %v313 = vmul.f32 %v242, %v280
        %v314 = vmul.f32 %v243, %v280
        %v315 = vmul.f32 %v244, %v280
        %v316 = vmul.f32 %v245, %v280
        %v317 = vmul.f32 %v246, %v280
        %v318 = vmul.f32 %v247, %v280
        %v319 = vmul.f32 %v248, %v280
        %v320 = vmul.f32 %v249, %v280
        %v321 = vmul.f32 %v250, %v280
        %v322 = vmul.f32 %v251, %v280
        %v323 = vmul.f32 %v252, %v280
        %v324 = vmul.f32 %v253, %v280
        %v325 = vmul.f32 %v254, %v280
        %v326 = vmul.f32 %v255, %v280
        %v327 = vmul.f32 %v256, %v280
        %v328 = vmul.f32 %v257, %v280
        %v329 = vmul.f32 %v258, %v280
        %v330 = vmul.f32 %v259, %v280
        %v331 = vmul.f32 %v260, %v280
        %v332 = vmul.f32 %v261, %v280
        %v333 = vmul.f32 %v262, %v280
        %v334 = vmul.f32 %v263, %v280
        %v335 = vmul.f32 %v264, %v280
        %v336 = vmul.f32 %v265, %v280
        %v337 = vmul.f32 %v266, %v280
        %v338 = vmul.f32 %v267, %v280
        %v339 = vmul.f32 %v268, %v280
        %v340 = vmul.f32 %v269, %v280
        %v341 = vmul.f32 %v270, %v280
        %v342 = vmul.f32 %v271, %v280
        %v343 = vmul.f32 %v272, %v280
        %v344 = vmul.f32 %v273, %v280
        %v345 = vmul.f32 %v274, %v280
        %346 = vadd.xlane.f32.xlu0 %v282
        %v347 = vpop.xlane.xlu0 %346
        %348 = vadd.xlane.f32.xlu0 %v283
        %v349 = vpop.xlane.xlu0 %348
        %350 = vadd.xlane.f32.xlu0 %v284
        %v351 = vpop.xlane.xlu0 %350
        %352 = vadd.xlane.f32.xlu0 %v285
        %v353 = vpop.xlane.xlu0 %352
        %354 = vadd.xlane.f32.xlu0 %v286
        %v355 = vpop.xlane.xlu0 %354
        %356 = vadd.xlane.f32.xlu0 %v287
        %v357 = vpop.xlane.xlu0 %356
        %358 = vadd.xlane.f32.xlu0 %v288
        %v359 = vpop.xlane.xlu0 %358
        %360 = vadd.xlane.f32.xlu0 %v289
        %v361 = vpop.xlane.xlu0 %360
        %362 = vadd.xlane.f32.xlu0 %v290
        %v363 = vpop.xlane.xlu0 %362
        %364 = vadd.xlane.f32.xlu0 %v291
        %v365 = vpop.xlane.xlu0 %364
        %366 = vadd.xlane.f32.xlu0 %v292
        %v367 = vpop.xlane.xlu0 %366
        %368 = vadd.xlane.f32.xlu0 %v293
        %v369 = vpop.xlane.xlu0 %368
        %370 = vadd.xlane.f32.xlu0 %v294
        %v371 = vpop.xlane.xlu0 %370
        %372 = vadd.xlane.f32.xlu0 %v295
        %v373 = vpop.xlane.xlu0 %372
        %374 = vadd.xlane.f32.xlu0 %v296
        %v375 = vpop.xlane.xlu0 %374
        %376 = vadd.xlane.f32.xlu0 %v297
        %v377 = vpop.xlane.xlu0 %376
        %378 = vadd.xlane.f32.xlu0 %v298
        %v379 = vpop.xlane.xlu0 %378
        %380 = vadd.xlane.f32.xlu0 %v299
        %v381 = vpop.xlane.xlu0 %380
        %382 = vadd.xlane.f32.xlu0 %v300
        %v383 = vpop.xlane.xlu0 %382
        %384 = vadd.xlane.f32.xlu0 %v301
        %v385 = vpop.xlane.xlu0 %384
        %386 = vadd.xlane.f32.xlu0 %v302
        %v387 = vpop.xlane.xlu0 %386
        %388 = vadd.xlane.f32.xlu0 %v303
        %v389 = vpop.xlane.xlu0 %388
        %390 = vadd.xlane.f32.xlu0 %v304
        %v391 = vpop.xlane.xlu0 %390
        %392 = vadd.xlane.f32.xlu0 %v305
        %v393 = vpop.xlane.xlu0 %392
        %394 = vadd.xlane.f32.xlu0 %v306
        %v395 = vpop.xlane.xlu0 %394
        %396 = vadd.xlane.f32.xlu0 %v307
        %v397 = vpop.xlane.xlu0 %396
        %398 = vadd.xlane.f32.xlu0 %v308
        %v399 = vpop.xlane.xlu0 %398
        %400 = vadd.xlane.f32.xlu0 %v309
        %v401 = vpop.xlane.xlu0 %400
        %402 = vadd.xlane.f32.xlu0 %v310
        %v403 = vpop.xlane.xlu0 %402
        %404 = vadd.xlane.f32.xlu0 %v311
        %v405 = vpop.xlane.xlu0 %404
        %406 = vadd.xlane.f32.xlu0 %v312
        %v407 = vpop.xlane.xlu0 %406
        %408 = vadd.xlane.f32.xlu0 %v313
        %v409 = vpop.xlane.xlu0 %408
        %410 = vadd.xlane.f32.xlu0 %v314
        %v411 = vpop.xlane.xlu0 %410
        %412 = vadd.xlane.f32.xlu0 %v315
        %v413 = vpop.xlane.xlu0 %412
        %414 = vadd.xlane.f32.xlu0 %v316
        %v415 = vpop.xlane.xlu0 %414
        %416 = vadd.xlane.f32.xlu0 %v317
        %v417 = vpop.xlane.xlu0 %416
        %418 = vadd.xlane.f32.xlu0 %v318
        %v419 = vpop.xlane.xlu0 %418
        %420 = vadd.xlane.f32.xlu0 %v319
        %v421 = vpop.xlane.xlu0 %420
        %422 = vadd.xlane.f32.xlu0 %v320
        %v423 = vpop.xlane.xlu0 %422
        %424 = vadd.xlane.f32.xlu0 %v321
        %v425 = vpop.xlane.xlu0 %424
        %426 = vadd.xlane.f32.xlu0 %v322
        %v427 = vpop.xlane.xlu0 %426
        %428 = vadd.xlane.f32.xlu0 %v323
        %v429 = vpop.xlane.xlu0 %428
        %430 = vadd.xlane.f32.xlu0 %v324
        %v431 = vpop.xlane.xlu0 %430
        %432 = vadd.xlane.f32.xlu0 %v325
        %v433 = vpop.xlane.xlu0 %432
        %434 = vadd.xlane.f32.xlu0 %v326
        %v435 = vpop.xlane.xlu0 %434
        %436 = vadd.xlane.f32.xlu0 %v327
        %v437 = vpop.xlane.xlu0 %436
        %438 = vadd.xlane.f32.xlu0 %v328
        %v439 = vpop.xlane.xlu0 %438
        %440 = vadd.xlane.f32.xlu0 %v329
        %v441 = vpop.xlane.xlu0 %440
        %442 = vadd.xlane.f32.xlu0 %v330
        %v443 = vpop.xlane.xlu0 %442
        %444 = vadd.xlane.f32.xlu0 %v331
        %v445 = vpop.xlane.xlu0 %444
        %446 = vadd.xlane.f32.xlu0 %v332
        %v447 = vpop.xlane.xlu0 %446
        %448 = vadd.xlane.f32.xlu0 %v333
        %v449 = vpop.xlane.xlu0 %448
        %450 = vadd.xlane.f32.xlu0 %v334
        %v451 = vpop.xlane.xlu0 %450
        %452 = vadd.xlane.f32.xlu0 %v335
        %v453 = vpop.xlane.xlu0 %452
        %454 = vadd.xlane.f32.xlu0 %v336
        %v455 = vpop.xlane.xlu0 %454
        %456 = vadd.xlane.f32.xlu0 %v337
        %v457 = vpop.xlane.xlu0 %456
        %458 = vadd.xlane.f32.xlu0 %v338
        %v459 = vpop.xlane.xlu0 %458
        %460 = vadd.xlane.f32.xlu0 %v339
        %v461 = vpop.xlane.xlu0 %460
        %462 = vadd.xlane.f32.xlu0 %v340
        %v463 = vpop.xlane.xlu0 %462
        %464 = vadd.xlane.f32.xlu0 %v341
        %v465 = vpop.xlane.xlu0 %464
        %466 = vadd.xlane.f32.xlu0 %v342
        %v467 = vpop.xlane.xlu0 %466
        %468 = vadd.xlane.f32.xlu0 %v343
        %v469 = vpop.xlane.xlu0 %468
        %470 = vadd.xlane.f32.xlu0 %v344
        %v471 = vpop.xlane.xlu0 %470
        %472 = vadd.xlane.f32.xlu0 %v345
        %v473 = vpop.xlane.xlu0 %472
        %v474 = vld [vmem:[#allocation2] sm:$0x1]
        %s475 = vtos %v474
        %v476 = vstv %s475
        %v477 = vadd.f32 %v347, %v476
        %v478 = vadd.f32 %v349, %v476
        %v479 = vadd.f32 %v351, %v476
        %v480 = vadd.f32 %v353, %v476
        %v481 = vadd.f32 %v355, %v476
        %v482 = vadd.f32 %v357, %v476
        %v483 = vadd.f32 %v359, %v476
        %v484 = vadd.f32 %v361, %v476
        %v485 = vadd.f32 %v363, %v476
        %v486 = vadd.f32 %v365, %v476
        %v487 = vadd.f32 %v367, %v476
        %v488 = vadd.f32 %v369, %v476
        %v489 = vadd.f32 %v371, %v476
        %v490 = vadd.f32 %v373, %v476
        %v491 = vadd.f32 %v375, %v476
        %v492 = vadd.f32 %v377, %v476
        %v493 = vadd.f32 %v379, %v476
        %v494 = vadd.f32 %v381, %v476
        %v495 = vadd.f32 %v383, %v476
        %v496 = vadd.f32 %v385, %v476
        %v497 = vadd.f32 %v387, %v476
        %v498 = vadd.f32 %v389, %v476
        %v499 = vadd.f32 %v391, %v476
        %v500 = vadd.f32 %v393, %v476
        %v501 = vadd.f32 %v395, %v476
        %v502 = vadd.f32 %v397, %v476
        %v503 = vadd.f32 %v399, %v476
        %v504 = vadd.f32 %v401, %v476
        %v505 = vadd.f32 %v403, %v476
        %v506 = vadd.f32 %v405, %v476
        %v507 = vadd.f32 %v407, %v476
        %v508 = vadd.f32 %v409, %v476
        %v509 = vadd.f32 %v411, %v476
        %v510 = vadd.f32 %v413, %v476
        %v511 = vadd.f32 %v415, %v476
        %v512 = vadd.f32 %v417, %v476
        %v513 = vadd.f32 %v419, %v476
        %v514 = vadd.f32 %v421, %v476
        %v515 = vadd.f32 %v423, %v476
        %v516 = vadd.f32 %v425, %v476
        %v517 = vadd.f32 %v427, %v476
        %v518 = vadd.f32 %v429, %v476
        %v519 = vadd.f32 %v431, %v476
        %v520 = vadd.f32 %v433, %v476
        %v521 = vadd.f32 %v435, %v476
        %v522 = vadd.f32 %v437, %v476
        %v523 = vadd.f32 %v439, %v476
        %v524 = vadd.f32 %v441, %v476
        %v525 = vadd.f32 %v443, %v476
        %v526 = vadd.f32 %v445, %v476
        %v527 = vadd.f32 %v447, %v476
        %v528 = vadd.f32 %v449, %v476
        %v529 = vadd.f32 %v451, %v476
        %v530 = vadd.f32 %v453, %v476
        %v531 = vadd.f32 %v455, %v476
        %v532 = vadd.f32 %v457, %v476
        %v533 = vadd.f32 %v459, %v476
        %v534 = vadd.f32 %v461, %v476
        %v535 = vadd.f32 %v463, %v476
        %v536 = vadd.f32 %v465, %v476
        %v537 = vadd.f32 %v467, %v476
        %v538 = vadd.f32 %v469, %v476
        %v539 = vadd.f32 %v471, %v476
        %v540 = vadd.f32 %v473, %v476
        %v541 = vxor.u32 %v477, 2147483648
        %v542 = vxor.u32 %v478, 2147483648
        %v543 = vxor.u32 %v479, 2147483648
        %v544 = vxor.u32 %v480, 2147483648
        %v545 = vxor.u32 %v481, 2147483648
        %v546 = vxor.u32 %v482, 2147483648
        %v547 = vxor.u32 %v483, 2147483648
        %v548 = vxor.u32 %v484, 2147483648
        %v549 = vxor.u32 %v485, 2147483648
        %v550 = vxor.u32 %v486, 2147483648
        %v551 = vxor.u32 %v487, 2147483648
        %v552 = vxor.u32 %v488, 2147483648
        %v553 = vxor.u32 %v489, 2147483648
        %v554 = vxor.u32 %v490, 2147483648
        %v555 = vxor.u32 %v491, 2147483648
        %v556 = vxor.u32 %v492, 2147483648
        %v557 = vxor.u32 %v493, 2147483648
        %v558 = vxor.u32 %v494, 2147483648
        %v559 = vxor.u32 %v495, 2147483648
        %v560 = vxor.u32 %v496, 2147483648
        %v561 = vxor.u32 %v497, 2147483648
        %v562 = vxor.u32 %v498, 2147483648
        %v563 = vxor.u32 %v499, 2147483648
        %v564 = vxor.u32 %v500, 2147483648
        %v565 = vxor.u32 %v501, 2147483648
        %v566 = vxor.u32 %v502, 2147483648
        %v567 = vxor.u32 %v503, 2147483648
        %v568 = vxor.u32 %v504, 2147483648
        %v569 = vxor.u32 %v505, 2147483648
        %v570 = vxor.u32 %v506, 2147483648
        %v571 = vxor.u32 %v507, 2147483648
        %v572 = vxor.u32 %v508, 2147483648
        %v573 = vxor.u32 %v509, 2147483648
        %v574 = vxor.u32 %v510, 2147483648
        %v575 = vxor.u32 %v511, 2147483648
        %v576 = vxor.u32 %v512, 2147483648
        %v577 = vxor.u32 %v513, 2147483648
        %v578 = vxor.u32 %v514, 2147483648
        %v579 = vxor.u32 %v515, 2147483648
        %v580 = vxor.u32 %v516, 2147483648
        %v581 = vxor.u32 %v517, 2147483648
        %v582 = vxor.u32 %v518, 2147483648
        %v583 = vxor.u32 %v519, 2147483648
        %v584 = vxor.u32 %v520, 2147483648
        %v585 = vxor.u32 %v521, 2147483648
        %v586 = vxor.u32 %v522, 2147483648
        %v587 = vxor.u32 %v523, 2147483648
        %v588 = vxor.u32 %v524, 2147483648
        %v589 = vxor.u32 %v525, 2147483648
        %v590 = vxor.u32 %v526, 2147483648
        %v591 = vxor.u32 %v527, 2147483648
        %v592 = vxor.u32 %v528, 2147483648
        %v593 = vxor.u32 %v529, 2147483648
        %v594 = vxor.u32 %v530, 2147483648
        %v595 = vxor.u32 %v531, 2147483648
        %v596 = vxor.u32 %v532, 2147483648
        %v597 = vxor.u32 %v533, 2147483648
        %v598 = vxor.u32 %v534, 2147483648
        %v599 = vxor.u32 %v535, 2147483648
        %v600 = vxor.u32 %v536, 2147483648
        %v601 = vxor.u32 %v537, 2147483648
        %v602 = vxor.u32 %v538, 2147483648
        %v603 = vxor.u32 %v539, 2147483648
        %v604 = vxor.u32 %v540, 2147483648
        %v605 = vmul.f32 %v541, 1.442695
        %v606 = vpow.pop %v605
        %v607 = vmul.f32 %v542, 1.442695
        %v608 = vpow.pop %v607
        %v609 = vmul.f32 %v543, 1.442695
        %v610 = vpow.pop %v609
        %v611 = vmul.f32 %v544, 1.442695
        %v612 = vpow.pop %v611
        %v613 = vmul.f32 %v545, 1.442695
        %v614 = vpow.pop %v613
        %v615 = vmul.f32 %v546, 1.442695
        %v616 = vpow.pop %v615
        %v617 = vmul.f32 %v547, 1.442695
        %v618 = vpow.pop %v617
        %v619 = vmul.f32 %v548, 1.442695
        %v620 = vpow.pop %v619
        %v621 = vmul.f32 %v549, 1.442695
        %v622 = vpow.pop %v621
        %v623 = vmul.f32 %v550, 1.442695
        %v624 = vpow.pop %v623
        %v625 = vmul.f32 %v551, 1.442695
        %v626 = vpow.pop %v625
        %v627 = vmul.f32 %v552, 1.442695
        %v628 = vpow.pop %v627
        %v629 = vmul.f32 %v553, 1.442695
        %v630 = vpow.pop %v629
        %v631 = vmul.f32 %v554, 1.442695
        %v632 = vpow.pop %v631
        %v633 = vmul.f32 %v555, 1.442695
        %v634 = vpow.pop %v633
        %v635 = vmul.f32 %v556, 1.442695
        %v636 = vpow.pop %v635
        %v637 = vmul.f32 %v557, 1.442695
        %v638 = vpow.pop %v637
        %v639 = vmul.f32 %v558, 1.442695
        %v640 = vpow.pop %v639
        %v641 = vmul.f32 %v559, 1.442695
        %v642 = vpow.pop %v641
        %v643 = vmul.f32 %v560, 1.442695
        %v644 = vpow.pop %v643
        %v645 = vmul.f32 %v561, 1.442695
        %v646 = vpow.pop %v645
        %v647 = vmul.f32 %v562, 1.442695
        %v648 = vpow.pop %v647
        %v649 = vmul.f32 %v563, 1.442695
        %v650 = vpow.pop %v649
        %v651 = vmul.f32 %v564, 1.442695
        %v652 = vpow.pop %v651
        %v653 = vmul.f32 %v565, 1.442695
        %v654 = vpow.pop %v653
        %v655 = vmul.f32 %v566, 1.442695
        %v656 = vpow.pop %v655
        %v657 = vmul.f32 %v567, 1.442695
        %v658 = vpow.pop %v657
        %v659 = vmul.f32 %v568, 1.442695
        %v660 = vpow.pop %v659
        %v661 = vmul.f32 %v569, 1.442695
        %v662 = vpow.pop %v661
        %v663 = vmul.f32 %v570, 1.442695
        %v664 = vpow.pop %v663
        %v665 = vmul.f32 %v571, 1.442695
        %v666 = vpow.pop %v665
        %v667 = vmul.f32 %v572, 1.442695
        %v668 = vpow.pop %v667
        %v669 = vmul.f32 %v573, 1.442695
        %v670 = vpow.pop %v669
        %v671 = vmul.f32 %v574, 1.442695
        %v672 = vpow.pop %v671
        %v673 = vmul.f32 %v575, 1.442695
        %v674 = vpow.pop %v673
        %v675 = vmul.f32 %v576, 1.442695
        %v676 = vpow.pop %v675
        %v677 = vmul.f32 %v577, 1.442695
        %v678 = vpow.pop %v677
        %v679 = vmul.f32 %v578, 1.442695
        %v680 = vpow.pop %v679
        %v681 = vmul.f32 %v579, 1.442695
        %v682 = vpow.pop %v681
        %v683 = vmul.f32 %v580, 1.442695
        %v684 = vpow.pop %v683
        %v685 = vmul.f32 %v581, 1.442695
        %v686 = vpow.pop %v685
        %v687 = vmul.f32 %v582, 1.442695
        %v688 = vpow.pop %v687
        %v689 = vmul.f32 %v583, 1.442695
        %v690 = vpow.pop %v689
        %v691 = vmul.f32 %v584, 1.442695
        %v692 = vpow.pop %v691
        %v693 = vmul.f32 %v585, 1.442695
        %v694 = vpow.pop %v693
        %v695 = vmul.f32 %v586, 1.442695
        %v696 = vpow.pop %v695
        %v697 = vmul.f32 %v587, 1.442695
        %v698 = vpow.pop %v697
        %v699 = vmul.f32 %v588, 1.442695
        %v700 = vpow.pop %v699
        %v701 = vmul.f32 %v589, 1.442695
        %v702 = vpow.pop %v701
        %v703 = vmul.f32 %v590, 1.442695
        %v704 = vpow.pop %v703
        %v705 = vmul.f32 %v591, 1.442695
        %v706 = vpow.pop %v705
        %v707 = vmul.f32 %v592, 1.442695
        %v708 = vpow.pop %v707
        %v709 = vmul.f32 %v593, 1.442695
        %v710 = vpow.pop %v709
        %v711 = vmul.f32 %v594, 1.442695
        %v712 = vpow.pop %v711
        %v713 = vmul.f32 %v595, 1.442695
        %v714 = vpow.pop %v713
        %v715 = vmul.f32 %v596, 1.442695
        %v716 = vpow.pop %v715
        %v717 = vmul.f32 %v597, 1.442695
        %v718 = vpow.pop %v717
        %v719 = vmul.f32 %v598, 1.442695
        %v720 = vpow.pop %v719
        %v721 = vmul.f32 %v599, 1.442695
        %v722 = vpow.pop %v721
        %v723 = vmul.f32 %v600, 1.442695
        %v724 = vpow.pop %v723
        %v725 = vmul.f32 %v601, 1.442695
        %v726 = vpow.pop %v725
        %v727 = vmul.f32 %v602, 1.442695
        %v728 = vpow.pop %v727
        %v729 = vmul.f32 %v603, 1.442695
        %v730 = vpow.pop %v729
        %v731 = vmul.f32 %v604, 1.442695
        %v732 = vpow.pop %v731
        %v733 = vadd.f32 %v606, 1.0
        %v734 = vadd.f32 %v608, 1.0
        %v735 = vadd.f32 %v610, 1.0
        %v736 = vadd.f32 %v612, 1.0
        %v737 = vadd.f32 %v614, 1.0
        %v738 = vadd.f32 %v616, 1.0
        %v739 = vadd.f32 %v618, 1.0
        %v740 = vadd.f32 %v620, 1.0
        %v741 = vadd.f32 %v622, 1.0
        %v742 = vadd.f32 %v624, 1.0
        %v743 = vadd.f32 %v626, 1.0
        %v744 = vadd.f32 %v628, 1.0
        %v745 = vadd.f32 %v630, 1.0
        %v746 = vadd.f32 %v632, 1.0
        %v747 = vadd.f32 %v634, 1.0
        %v748 = vadd.f32 %v636, 1.0
        %v749 = vadd.f32 %v638, 1.0
        %v750 = vadd.f32 %v640, 1.0
        %v751 = vadd.f32 %v642, 1.0
        %v752 = vadd.f32 %v644, 1.0
        %v753 = vadd.f32 %v646, 1.0
        %v754 = vadd.f32 %v648, 1.0
        %v755 = vadd.f32 %v650, 1.0
        %v756 = vadd.f32 %v652, 1.0
        %v757 = vadd.f32 %v654, 1.0
        %v758 = vadd.f32 %v656, 1.0
        %v759 = vadd.f32 %v658, 1.0
        %v760 = vadd.f32 %v660, 1.0
        %v761 = vadd.f32 %v662, 1.0
        %v762 = vadd.f32 %v664, 1.0
        %v763 = vadd.f32 %v666, 1.0
        %v764 = vadd.f32 %v668, 1.0
        %v765 = vadd.f32 %v670, 1.0
        %v766 = vadd.f32 %v672, 1.0
        %v767 = vadd.f32 %v674, 1.0
        %v768 = vadd.f32 %v676, 1.0
        %v769 = vadd.f32 %v678, 1.0
        %v770 = vadd.f32 %v680, 1.0
        %v771 = vadd.f32 %v682, 1.0
        %v772 = vadd.f32 %v684, 1.0
        %v773 = vadd.f32 %v686, 1.0
        %v774 = vadd.f32 %v688, 1.0
        %v775 = vadd.f32 %v690, 1.0
        %v776 = vadd.f32 %v692, 1.0
        %v777 = vadd.f32 %v694, 1.0
        %v778 = vadd.f32 %v696, 1.0
        %v779 = vadd.f32 %v698, 1.0
        %v780 = vadd.f32 %v700, 1.0
        %v781 = vadd.f32 %v702, 1.0
        %v782 = vadd.f32 %v704, 1.0
        %v783 = vadd.f32 %v706, 1.0
        %v784 = vadd.f32 %v708, 1.0
        %v785 = vadd.f32 %v710, 1.0
        %v786 = vadd.f32 %v712, 1.0
        %v787 = vadd.f32 %v714, 1.0
        %v788 = vadd.f32 %v716, 1.0
        %v789 = vadd.f32 %v718, 1.0
        %v790 = vadd.f32 %v720, 1.0
        %v791 = vadd.f32 %v722, 1.0
        %v792 = vadd.f32 %v724, 1.0
        %v793 = vadd.f32 %v726, 1.0
        %v794 = vadd.f32 %v728, 1.0
        %v795 = vadd.f32 %v730, 1.0
        %v796 = vadd.f32 %v732, 1.0
        %v797 = vrcp.pop %v733
        %v798 = vmul.f32 1.0, %v797
        %v799 = vrcp.pop %v734
        %v800 = vmul.f32 1.0, %v799
        %v801 = vrcp.pop %v735
        %v802 = vmul.f32 1.0, %v801
        %v803 = vrcp.pop %v736
        %v804 = vmul.f32 1.0, %v803
        %v805 = vrcp.pop %v737
        %v806 = vmul.f32 1.0, %v805
        %v807 = vrcp.pop %v738
        %v808 = vmul.f32 1.0, %v807
        %v809 = vrcp.pop %v739
        %v810 = vmul.f32 1.0, %v809
        %v811 = vrcp.pop %v740
        %v812 = vmul.f32 1.0, %v811
        %v813 = vrcp.pop %v741
        %v814 = vmul.f32 1.0, %v813
        %v815 = vrcp.pop %v742
        %v816 = vmul.f32 1.0, %v815
        %v817 = vrcp.pop %v743
        %v818 = vmul.f32 1.0, %v817
        %v819 = vrcp.pop %v744
        %v820 = vmul.f32 1.0, %v819
        %v821 = vrcp.pop %v745
        %v822 = vmul.f32 1.0, %v821
        %v823 = vrcp.pop %v746
        %v824 = vmul.f32 1.0, %v823
        %v825 = vrcp.pop %v747
        %v826 = vmul.f32 1.0, %v825
        %v827 = vrcp.pop %v748
        %v828 = vmul.f32 1.0, %v827
        %v829 = vrcp.pop %v749
        %v830 = vmul.f32 1.0, %v829
        %v831 = vrcp.pop %v750
        %v832 = vmul.f32 1.0, %v831
        %v833 = vrcp.pop %v751
        %v834 = vmul.f32 1.0, %v833
        %v835 = vrcp.pop %v752
        %v836 = vmul.f32 1.0, %v835
        %v837 = vrcp.pop %v753
        %v838 = vmul.f32 1.0, %v837
        %v839 = vrcp.pop %v754
        %v840 = vmul.f32 1.0, %v839
        %v841 = vrcp.pop %v755
        %v842 = vmul.f32 1.0, %v841
        %v843 = vrcp.pop %v756
        %v844 = vmul.f32 1.0, %v843
        %v845 = vrcp.pop %v757
        %v846 = vmul.f32 1.0, %v845
        %v847 = vrcp.pop %v758
        %v848 = vmul.f32 1.0, %v847
        %v849 = vrcp.pop %v759
        %v850 = vmul.f32 1.0, %v849
        %v851 = vrcp.pop %v760
        %v852 = vmul.f32 1.0, %v851
        %v853 = vrcp.pop %v761
        %v854 = vmul.f32 1.0, %v853
        %v855 = vrcp.pop %v762
        %v856 = vmul.f32 1.0, %v855
        %v857 = vrcp.pop %v763
        %v858 = vmul.f32 1.0, %v857
        %v859 = vrcp.pop %v764
        %v860 = vmul.f32 1.0, %v859
        %v861 = vrcp.pop %v765
        %v862 = vmul.f32 1.0, %v861
        %v863 = vrcp.pop %v766
        %v864 = vmul.f32 1.0, %v863
        %v865 = vrcp.pop %v767
        %v866 = vmul.f32 1.0, %v865
        %v867 = vrcp.pop %v768
        %v868 = vmul.f32 1.0, %v867
        %v869 = vrcp.pop %v769
        %v870 = vmul.f32 1.0, %v869
        %v871 = vrcp.pop %v770
        %v872 = vmul.f32 1.0, %v871
        %v873 = vrcp.pop %v771
        %v874 = vmul.f32 1.0, %v873
        %v875 = vrcp.pop %v772
        %v876 = vmul.f32 1.0, %v875
        %v877 = vrcp.pop %v773
        %v878 = vmul.f32 1.0, %v877
        %v879 = vrcp.pop %v774
        %v880 = vmul.f32 1.0, %v879
        %v881 = vrcp.pop %v775
        %v882 = vmul.f32 1.0, %v881
        %v883 = vrcp.pop %v776
        %v884 = vmul.f32 1.0, %v883
        %v885 = vrcp.pop %v777
        %v886 = vmul.f32 1.0, %v885
        %v887 = vrcp.pop %v778
        %v888 = vmul.f32 1.0, %v887
        %v889 = vrcp.pop %v779
        %v890 = vmul.f32 1.0, %v889
        %v891 = vrcp.pop %v780
        %v892 = vmul.f32 1.0, %v891
        %v893 = vrcp.pop %v781
        %v894 = vmul.f32 1.0, %v893
        %v895 = vrcp.pop %v782
        %v896 = vmul.f32 1.0, %v895
        %v897 = vrcp.pop %v783
        %v898 = vmul.f32 1.0, %v897
        %v899 = vrcp.pop %v784
        %v900 = vmul.f32 1.0, %v899
        %v901 = vrcp.pop %v785
        %v902 = vmul.f32 1.0, %v901
        %v903 = vrcp.pop %v786
        %v904 = vmul.f32 1.0, %v903
        %v905 = vrcp.pop %v787
        %v906 = vmul.f32 1.0, %v905
        %v907 = vrcp.pop %v788
        %v908 = vmul.f32 1.0, %v907
        %v909 = vrcp.pop %v789
        %v910 = vmul.f32 1.0, %v909
        %v911 = vrcp.pop %v790
        %v912 = vmul.f32 1.0, %v911
        %v913 = vrcp.pop %v791
        %v914 = vmul.f32 1.0, %v913
        %v915 = vrcp.pop %v792
        %v916 = vmul.f32 1.0, %v915
        %v917 = vrcp.pop %v793
        %v918 = vmul.f32 1.0, %v917
        %v919 = vrcp.pop %v794
        %v920 = vmul.f32 1.0, %v919
        %v921 = vrcp.pop %v795
        %v922 = vmul.f32 1.0, %v921
        %v923 = vrcp.pop %v796
        %v924 = vmul.f32 1.0, %v923
        %v989 = vlaneseq
        %v990 = vshrl.u32 %v989, 7
        %v991 = vsub.s32 0, %v990
        %v992 = vrot.slane %v798, %v991
        %v993 = vlaneseq
        %v994 = vshrl.u32 %v993, 7
        %v995 = vsub.s32 1, %v994
        %v996 = vrot.slane %v798, %v995
        %v997 = vlaneseq
        %v998 = vshrl.u32 %v997, 7
        %v999 = vsub.s32 2, %v998
        %v1000 = vrot.slane %v798, %v999
        %v1001 = vlaneseq
        %v1002 = vshrl.u32 %v1001, 7
        %v1003 = vsub.s32 3, %v1002
        %v1004 = vrot.slane %v798, %v1003
        %v1005 = vlaneseq
        %v1006 = vshrl.u32 %v1005, 7
        %v1007 = vsub.s32 4, %v1006
        %v1008 = vrot.slane %v798, %v1007
        %v1009 = vlaneseq
        %v1010 = vshrl.u32 %v1009, 7
        %v1011 = vsub.s32 5, %v1010
        %v1012 = vrot.slane %v798, %v1011
        %v1013 = vlaneseq
        %v1014 = vshrl.u32 %v1013, 7
        %v1015 = vsub.s32 6, %v1014
        %v1016 = vrot.slane %v798, %v1015
        %v1017 = vlaneseq
        %v1018 = vshrl.u32 %v1017, 7
        %v1019 = vsub.s32 7, %v1018
        %v1020 = vrot.slane %v798, %v1019
        %v1021 = vlaneseq
        %v1022 = vshrl.u32 %v1021, 7
        %v1023 = vsub.s32 0, %v1022
        %v1024 = vrot.slane %v800, %v1023
        %v1025 = vlaneseq
        %v1026 = vshrl.u32 %v1025, 7
        %v1027 = vsub.s32 1, %v1026
        %v1028 = vrot.slane %v800, %v1027
        %v1029 = vlaneseq
        %v1030 = vshrl.u32 %v1029, 7
        %v1031 = vsub.s32 2, %v1030
        %v1032 = vrot.slane %v800, %v1031
        %v1033 = vlaneseq
        %v1034 = vshrl.u32 %v1033, 7
        %v1035 = vsub.s32 3, %v1034
        %v1036 = vrot.slane %v800, %v1035
        %v1037 = vlaneseq
        %v1038 = vshrl.u32 %v1037, 7
        %v1039 = vsub.s32 4, %v1038
        %v1040 = vrot.slane %v800, %v1039
        %v1041 = vlaneseq
        %v1042 = vshrl.u32 %v1041, 7
        %v1043 = vsub.s32 5, %v1042
        %v1044 = vrot.slane %v800, %v1043
        %v1045 = vlaneseq
        %v1046 = vshrl.u32 %v1045, 7
        %v1047 = vsub.s32 6, %v1046
        %v1048 = vrot.slane %v800, %v1047
        %v1049 = vlaneseq
        %v1050 = vshrl.u32 %v1049, 7
        %v1051 = vsub.s32 7, %v1050
        %v1052 = vrot.slane %v800, %v1051
        %v1053 = vlaneseq
        %v1054 = vshrl.u32 %v1053, 7
        %v1055 = vsub.s32 0, %v1054
        %v1056 = vrot.slane %v802, %v1055
        %v1057 = vlaneseq
        %v1058 = vshrl.u32 %v1057, 7
        %v1059 = vsub.s32 1, %v1058
        %v1060 = vrot.slane %v802, %v1059
        %v1061 = vlaneseq
        %v1062 = vshrl.u32 %v1061, 7
        %v1063 = vsub.s32 2, %v1062
        %v1064 = vrot.slane %v802, %v1063
        %v1065 = vlaneseq
        %v1066 = vshrl.u32 %v1065, 7
        %v1067 = vsub.s32 3, %v1066
        %v1068 = vrot.slane %v802, %v1067
        %v1069 = vlaneseq
        %v1070 = vshrl.u32 %v1069, 7
        %v1071 = vsub.s32 4, %v1070
        %v1072 = vrot.slane %v802, %v1071
        %v1073 = vlaneseq
        %v1074 = vshrl.u32 %v1073, 7
        %v1075 = vsub.s32 5, %v1074
        %v1076 = vrot.slane %v802, %v1075
        %v1077 = vlaneseq
        %v1078 = vshrl.u32 %v1077, 7
        %v1079 = vsub.s32 6, %v1078
        %v1080 = vrot.slane %v802, %v1079
        %v1081 = vlaneseq
        %v1082 = vshrl.u32 %v1081, 7
        %v1083 = vsub.s32 7, %v1082
        %v1084 = vrot.slane %v802, %v1083
        %v1085 = vlaneseq
        %v1086 = vshrl.u32 %v1085, 7
        %v1087 = vsub.s32 0, %v1086
        %v1088 = vrot.slane %v804, %v1087
        %v1089 = vlaneseq
        %v1090 = vshrl.u32 %v1089, 7
        %v1091 = vsub.s32 1, %v1090
        %v1092 = vrot.slane %v804, %v1091
        %v1093 = vlaneseq
        %v1094 = vshrl.u32 %v1093, 7
        %v1095 = vsub.s32 2, %v1094
        %v1096 = vrot.slane %v804, %v1095
        %v1097 = vlaneseq
        %v1098 = vshrl.u32 %v1097, 7
        %v1099 = vsub.s32 3, %v1098
        %v1100 = vrot.slane %v804, %v1099
        %v1101 = vlaneseq
        %v1102 = vshrl.u32 %v1101, 7
        %v1103 = vsub.s32 4, %v1102
        %v1104 = vrot.slane %v804, %v1103
        %v1105 = vlaneseq
        %v1106 = vshrl.u32 %v1105, 7
        %v1107 = vsub.s32 5, %v1106
        %v1108 = vrot.slane %v804, %v1107
        %v1109 = vlaneseq
        %v1110 = vshrl.u32 %v1109, 7
        %v1111 = vsub.s32 6, %v1110
        %v1112 = vrot.slane %v804, %v1111
        %v1113 = vlaneseq
        %v1114 = vshrl.u32 %v1113, 7
        %v1115 = vsub.s32 7, %v1114
        %v1116 = vrot.slane %v804, %v1115
        %v1117 = vlaneseq
        %v1118 = vshrl.u32 %v1117, 7
        %v1119 = vsub.s32 0, %v1118
        %v1120 = vrot.slane %v806, %v1119
        %v1121 = vlaneseq
        %v1122 = vshrl.u32 %v1121, 7
        %v1123 = vsub.s32 1, %v1122
        %v1124 = vrot.slane %v806, %v1123
        %v1125 = vlaneseq
        %v1126 = vshrl.u32 %v1125, 7
        %v1127 = vsub.s32 2, %v1126
        %v1128 = vrot.slane %v806, %v1127
        %v1129 = vlaneseq
        %v1130 = vshrl.u32 %v1129, 7
        %v1131 = vsub.s32 3, %v1130
        %v1132 = vrot.slane %v806, %v1131
        %v1133 = vlaneseq
        %v1134 = vshrl.u32 %v1133, 7
        %v1135 = vsub.s32 4, %v1134
        %v1136 = vrot.slane %v806, %v1135
        %v1137 = vlaneseq
        %v1138 = vshrl.u32 %v1137, 7
        %v1139 = vsub.s32 5, %v1138
        %v1140 = vrot.slane %v806, %v1139
        %v1141 = vlaneseq
        %v1142 = vshrl.u32 %v1141, 7
        %v1143 = vsub.s32 6, %v1142
        %v1144 = vrot.slane %v806, %v1143
        %v1145 = vlaneseq
        %v1146 = vshrl.u32 %v1145, 7
        %v1147 = vsub.s32 7, %v1146
        %v1148 = vrot.slane %v806, %v1147
        %v1149 = vlaneseq
        %v1150 = vshrl.u32 %v1149, 7
        %v1151 = vsub.s32 0, %v1150
        %v1152 = vrot.slane %v808, %v1151
        %v1153 = vlaneseq
        %v1154 = vshrl.u32 %v1153, 7
        %v1155 = vsub.s32 1, %v1154
        %v1156 = vrot.slane %v808, %v1155
        %v1157 = vlaneseq
        %v1158 = vshrl.u32 %v1157, 7
        %v1159 = vsub.s32 2, %v1158
        %v1160 = vrot.slane %v808, %v1159
        %v1161 = vlaneseq
        %v1162 = vshrl.u32 %v1161, 7
        %v1163 = vsub.s32 3, %v1162
        %v1164 = vrot.slane %v808, %v1163
        %v1165 = vlaneseq
        %v1166 = vshrl.u32 %v1165, 7
        %v1167 = vsub.s32 4, %v1166
        %v1168 = vrot.slane %v808, %v1167
        %v1169 = vlaneseq
        %v1170 = vshrl.u32 %v1169, 7
        %v1171 = vsub.s32 5, %v1170
        %v1172 = vrot.slane %v808, %v1171
        %v1173 = vlaneseq
        %v1174 = vshrl.u32 %v1173, 7
        %v1175 = vsub.s32 6, %v1174
        %v1176 = vrot.slane %v808, %v1175
        %v1177 = vlaneseq
        %v1178 = vshrl.u32 %v1177, 7
        %v1179 = vsub.s32 7, %v1178
        %v1180 = vrot.slane %v808, %v1179
        %v1181 = vlaneseq
        %v1182 = vshrl.u32 %v1181, 7
        %v1183 = vsub.s32 0, %v1182
        %v1184 = vrot.slane %v810, %v1183
        %v1185 = vlaneseq
        %v1186 = vshrl.u32 %v1185, 7
        %v1187 = vsub.s32 1, %v1186
        %v1188 = vrot.slane %v810, %v1187
        %v1189 = vlaneseq
        %v1190 = vshrl.u32 %v1189, 7
        %v1191 = vsub.s32 2, %v1190
        %v1192 = vrot.slane %v810, %v1191
        %v1193 = vlaneseq
        %v1194 = vshrl.u32 %v1193, 7
        %v1195 = vsub.s32 3, %v1194
        %v1196 = vrot.slane %v810, %v1195
        %v1197 = vlaneseq
        %v1198 = vshrl.u32 %v1197, 7
        %v1199 = vsub.s32 4, %v1198
        %v1200 = vrot.slane %v810, %v1199
        %v1201 = vlaneseq
        %v1202 = vshrl.u32 %v1201, 7
        %v1203 = vsub.s32 5, %v1202
        %v1204 = vrot.slane %v810, %v1203
        %v1205 = vlaneseq
        %v1206 = vshrl.u32 %v1205, 7
        %v1207 = vsub.s32 6, %v1206
        %v1208 = vrot.slane %v810, %v1207
        %v1209 = vlaneseq
        %v1210 = vshrl.u32 %v1209, 7
        %v1211 = vsub.s32 7, %v1210
        %v1212 = vrot.slane %v810, %v1211
        %v1213 = vlaneseq
        %v1214 = vshrl.u32 %v1213, 7
        %v1215 = vsub.s32 0, %v1214
        %v1216 = vrot.slane %v812, %v1215
        %v1217 = vlaneseq
        %v1218 = vshrl.u32 %v1217, 7
        %v1219 = vsub.s32 1, %v1218
        %v1220 = vrot.slane %v812, %v1219
        %v1221 = vlaneseq
        %v1222 = vshrl.u32 %v1221, 7
        %v1223 = vsub.s32 2, %v1222
        %v1224 = vrot.slane %v812, %v1223
        %v1225 = vlaneseq
        %v1226 = vshrl.u32 %v1225, 7
        %v1227 = vsub.s32 3, %v1226
        %v1228 = vrot.slane %v812, %v1227
        %v1229 = vlaneseq
        %v1230 = vshrl.u32 %v1229, 7
        %v1231 = vsub.s32 4, %v1230
        %v1232 = vrot.slane %v812, %v1231
        %v1233 = vlaneseq
        %v1234 = vshrl.u32 %v1233, 7
        %v1235 = vsub.s32 5, %v1234
        %v1236 = vrot.slane %v812, %v1235
        %v1237 = vlaneseq
        %v1238 = vshrl.u32 %v1237, 7
        %v1239 = vsub.s32 6, %v1238
        %v1240 = vrot.slane %v812, %v1239
        %v1241 = vlaneseq
        %v1242 = vshrl.u32 %v1241, 7
        %v1243 = vsub.s32 7, %v1242
        %v1244 = vrot.slane %v812, %v1243
        %v1245 = vlaneseq
        %v1246 = vshrl.u32 %v1245, 7
        %v1247 = vsub.s32 0, %v1246
        %v1248 = vrot.slane %v814, %v1247
        %v1249 = vlaneseq
        %v1250 = vshrl.u32 %v1249, 7
        %v1251 = vsub.s32 1, %v1250
        %v1252 = vrot.slane %v814, %v1251
        %v1253 = vlaneseq
        %v1254 = vshrl.u32 %v1253, 7
        %v1255 = vsub.s32 2, %v1254
        %v1256 = vrot.slane %v814, %v1255
        %v1257 = vlaneseq
        %v1258 = vshrl.u32 %v1257, 7
        %v1259 = vsub.s32 3, %v1258
        %v1260 = vrot.slane %v814, %v1259
        %v1261 = vlaneseq
        %v1262 = vshrl.u32 %v1261, 7
        %v1263 = vsub.s32 4, %v1262
        %v1264 = vrot.slane %v814, %v1263
        %v1265 = vlaneseq
        %v1266 = vshrl.u32 %v1265, 7
        %v1267 = vsub.s32 5, %v1266
        %v1268 = vrot.slane %v814, %v1267
        %v1269 = vlaneseq
        %v1270 = vshrl.u32 %v1269, 7
        %v1271 = vsub.s32 6, %v1270
        %v1272 = vrot.slane %v814, %v1271
        %v1273 = vlaneseq
        %v1274 = vshrl.u32 %v1273, 7
        %v1275 = vsub.s32 7, %v1274
        %v1276 = vrot.slane %v814, %v1275
        %v1277 = vlaneseq
        %v1278 = vshrl.u32 %v1277, 7
        %v1279 = vsub.s32 0, %v1278
        %v1280 = vrot.slane %v816, %v1279
        %v1281 = vlaneseq
        %v1282 = vshrl.u32 %v1281, 7
        %v1283 = vsub.s32 1, %v1282
        %v1284 = vrot.slane %v816, %v1283
        %v1285 = vlaneseq
        %v1286 = vshrl.u32 %v1285, 7
        %v1287 = vsub.s32 2, %v1286
        %v1288 = vrot.slane %v816, %v1287
        %v1289 = vlaneseq
        %v1290 = vshrl.u32 %v1289, 7
        %v1291 = vsub.s32 3, %v1290
        %v1292 = vrot.slane %v816, %v1291
        %v1293 = vlaneseq
        %v1294 = vshrl.u32 %v1293, 7
        %v1295 = vsub.s32 4, %v1294
        %v1296 = vrot.slane %v816, %v1295
        %v1297 = vlaneseq
        %v1298 = vshrl.u32 %v1297, 7
        %v1299 = vsub.s32 5, %v1298
        %v1300 = vrot.slane %v816, %v1299
        %v1301 = vlaneseq
        %v1302 = vshrl.u32 %v1301, 7
        %v1303 = vsub.s32 6, %v1302
        %v1304 = vrot.slane %v816, %v1303
        %v1305 = vlaneseq
        %v1306 = vshrl.u32 %v1305, 7
        %v1307 = vsub.s32 7, %v1306
        %v1308 = vrot.slane %v816, %v1307
        %v1309 = vlaneseq
        %v1310 = vshrl.u32 %v1309, 7
        %v1311 = vsub.s32 0, %v1310
        %v1312 = vrot.slane %v818, %v1311
        %v1313 = vlaneseq
        %v1314 = vshrl.u32 %v1313, 7
        %v1315 = vsub.s32 1, %v1314
        %v1316 = vrot.slane %v818, %v1315
        %v1317 = vlaneseq
        %v1318 = vshrl.u32 %v1317, 7
        %v1319 = vsub.s32 2, %v1318
        %v1320 = vrot.slane %v818, %v1319
        %v1321 = vlaneseq
        %v1322 = vshrl.u32 %v1321, 7
        %v1323 = vsub.s32 3, %v1322
        %v1324 = vrot.slane %v818, %v1323
        %v1325 = vlaneseq
        %v1326 = vshrl.u32 %v1325, 7
        %v1327 = vsub.s32 4, %v1326
        %v1328 = vrot.slane %v818, %v1327
        %v1329 = vlaneseq
        %v1330 = vshrl.u32 %v1329, 7
        %v1331 = vsub.s32 5, %v1330
        %v1332 = vrot.slane %v818, %v1331
        %v1333 = vlaneseq
        %v1334 = vshrl.u32 %v1333, 7
        %v1335 = vsub.s32 6, %v1334
        %v1336 = vrot.slane %v818, %v1335
        %v1337 = vlaneseq
        %v1338 = vshrl.u32 %v1337, 7
        %v1339 = vsub.s32 7, %v1338
        %v1340 = vrot.slane %v818, %v1339
        %v1341 = vlaneseq
        %v1342 = vshrl.u32 %v1341, 7
        %v1343 = vsub.s32 0, %v1342
        %v1344 = vrot.slane %v820, %v1343
        %v1345 = vlaneseq
        %v1346 = vshrl.u32 %v1345, 7
        %v1347 = vsub.s32 1, %v1346
        %v1348 = vrot.slane %v820, %v1347
        %v1349 = vlaneseq
        %v1350 = vshrl.u32 %v1349, 7
        %v1351 = vsub.s32 2, %v1350
        %v1352 = vrot.slane %v820, %v1351
        %v1353 = vlaneseq
        %v1354 = vshrl.u32 %v1353, 7
        %v1355 = vsub.s32 3, %v1354
        %v1356 = vrot.slane %v820, %v1355
        %v1357 = vlaneseq
        %v1358 = vshrl.u32 %v1357, 7
        %v1359 = vsub.s32 4, %v1358
        %v1360 = vrot.slane %v820, %v1359
        %v1361 = vlaneseq
        %v1362 = vshrl.u32 %v1361, 7
        %v1363 = vsub.s32 5, %v1362
        %v1364 = vrot.slane %v820, %v1363
        %v1365 = vlaneseq
        %v1366 = vshrl.u32 %v1365, 7
        %v1367 = vsub.s32 6, %v1366
        %v1368 = vrot.slane %v820, %v1367
        %v1369 = vlaneseq
        %v1370 = vshrl.u32 %v1369, 7
        %v1371 = vsub.s32 7, %v1370
        %v1372 = vrot.slane %v820, %v1371
        %v1373 = vlaneseq
        %v1374 = vshrl.u32 %v1373, 7
        %v1375 = vsub.s32 0, %v1374
        %v1376 = vrot.slane %v822, %v1375
        %v1377 = vlaneseq
        %v1378 = vshrl.u32 %v1377, 7
        %v1379 = vsub.s32 1, %v1378
        %v1380 = vrot.slane %v822, %v1379
        %v1381 = vlaneseq
        %v1382 = vshrl.u32 %v1381, 7
        %v1383 = vsub.s32 2, %v1382
        %v1384 = vrot.slane %v822, %v1383
        %v1385 = vlaneseq
        %v1386 = vshrl.u32 %v1385, 7
        %v1387 = vsub.s32 3, %v1386
        %v1388 = vrot.slane %v822, %v1387
        %v1389 = vlaneseq
        %v1390 = vshrl.u32 %v1389, 7
        %v1391 = vsub.s32 4, %v1390
        %v1392 = vrot.slane %v822, %v1391
        %v1393 = vlaneseq
        %v1394 = vshrl.u32 %v1393, 7
        %v1395 = vsub.s32 5, %v1394
        %v1396 = vrot.slane %v822, %v1395
        %v1397 = vlaneseq
        %v1398 = vshrl.u32 %v1397, 7
        %v1399 = vsub.s32 6, %v1398
        %v1400 = vrot.slane %v822, %v1399
        %v1401 = vlaneseq
        %v1402 = vshrl.u32 %v1401, 7
        %v1403 = vsub.s32 7, %v1402
        %v1404 = vrot.slane %v822, %v1403
        %v1405 = vlaneseq
        %v1406 = vshrl.u32 %v1405, 7
        %v1407 = vsub.s32 0, %v1406
        %v1408 = vrot.slane %v824, %v1407
        %v1409 = vlaneseq
        %v1410 = vshrl.u32 %v1409, 7
        %v1411 = vsub.s32 1, %v1410
        %v1412 = vrot.slane %v824, %v1411
        %v1413 = vlaneseq
        %v1414 = vshrl.u32 %v1413, 7
        %v1415 = vsub.s32 2, %v1414
        %v1416 = vrot.slane %v824, %v1415
        %v1417 = vlaneseq
        %v1418 = vshrl.u32 %v1417, 7
        %v1419 = vsub.s32 3, %v1418
        %v1420 = vrot.slane %v824, %v1419
        %v1421 = vlaneseq
        %v1422 = vshrl.u32 %v1421, 7
        %v1423 = vsub.s32 4, %v1422
        %v1424 = vrot.slane %v824, %v1423
        %v1425 = vlaneseq
        %v1426 = vshrl.u32 %v1425, 7
        %v1427 = vsub.s32 5, %v1426
        %v1428 = vrot.slane %v824, %v1427
        %v1429 = vlaneseq
        %v1430 = vshrl.u32 %v1429, 7
        %v1431 = vsub.s32 6, %v1430
        %v1432 = vrot.slane %v824, %v1431
        %v1433 = vlaneseq
        %v1434 = vshrl.u32 %v1433, 7
        %v1435 = vsub.s32 7, %v1434
        %v1436 = vrot.slane %v824, %v1435
        %v1437 = vlaneseq
        %v1438 = vshrl.u32 %v1437, 7
        %v1439 = vsub.s32 0, %v1438
        %v1440 = vrot.slane %v826, %v1439
        %v1441 = vlaneseq
        %v1442 = vshrl.u32 %v1441, 7
        %v1443 = vsub.s32 1, %v1442
        %v1444 = vrot.slane %v826, %v1443
        %v1445 = vlaneseq
        %v1446 = vshrl.u32 %v1445, 7
        %v1447 = vsub.s32 2, %v1446
        %v1448 = vrot.slane %v826, %v1447
        %v1449 = vlaneseq
        %v1450 = vshrl.u32 %v1449, 7
        %v1451 = vsub.s32 3, %v1450
        %v1452 = vrot.slane %v826, %v1451
        %v1453 = vlaneseq
        %v1454 = vshrl.u32 %v1453, 7
        %v1455 = vsub.s32 4, %v1454
        %v1456 = vrot.slane %v826, %v1455
        %v1457 = vlaneseq
        %v1458 = vshrl.u32 %v1457, 7
        %v1459 = vsub.s32 5, %v1458
        %v1460 = vrot.slane %v826, %v1459
        %v1461 = vlaneseq
        %v1462 = vshrl.u32 %v1461, 7
        %v1463 = vsub.s32 6, %v1462
        %v1464 = vrot.slane %v826, %v1463
        %v1465 = vlaneseq
        %v1466 = vshrl.u32 %v1465, 7
        %v1467 = vsub.s32 7, %v1466
        %v1468 = vrot.slane %v826, %v1467
        %v1469 = vlaneseq
        %v1470 = vshrl.u32 %v1469, 7
        %v1471 = vsub.s32 0, %v1470
        %v1472 = vrot.slane %v828, %v1471
        %v1473 = vlaneseq
        %v1474 = vshrl.u32 %v1473, 7
        %v1475 = vsub.s32 1, %v1474
        %v1476 = vrot.slane %v828, %v1475
        %v1477 = vlaneseq
        %v1478 = vshrl.u32 %v1477, 7
        %v1479 = vsub.s32 2, %v1478
        %v1480 = vrot.slane %v828, %v1479
        %v1481 = vlaneseq
        %v1482 = vshrl.u32 %v1481, 7
        %v1483 = vsub.s32 3, %v1482
        %v1484 = vrot.slane %v828, %v1483
        %v1485 = vlaneseq
        %v1486 = vshrl.u32 %v1485, 7
        %v1487 = vsub.s32 4, %v1486
        %v1488 = vrot.slane %v828, %v1487
        %v1489 = vlaneseq
        %v1490 = vshrl.u32 %v1489, 7
        %v1491 = vsub.s32 5, %v1490
        %v1492 = vrot.slane %v828, %v1491
        %v1493 = vlaneseq
        %v1494 = vshrl.u32 %v1493, 7
        %v1495 = vsub.s32 6, %v1494
        %v1496 = vrot.slane %v828, %v1495
        %v1497 = vlaneseq
        %v1498 = vshrl.u32 %v1497, 7
        %v1499 = vsub.s32 7, %v1498
        %v1500 = vrot.slane %v828, %v1499
        %v1501 = vlaneseq
        %v1502 = vshrl.u32 %v1501, 7
        %v1503 = vsub.s32 0, %v1502
        %v1504 = vrot.slane %v830, %v1503
        %v1505 = vlaneseq
        %v1506 = vshrl.u32 %v1505, 7
        %v1507 = vsub.s32 1, %v1506
        %v1508 = vrot.slane %v830, %v1507
        %v1509 = vlaneseq
        %v1510 = vshrl.u32 %v1509, 7
        %v1511 = vsub.s32 2, %v1510
        %v1512 = vrot.slane %v830, %v1511
        %v1513 = vlaneseq
        %v1514 = vshrl.u32 %v1513, 7
        %v1515 = vsub.s32 3, %v1514
        %v1516 = vrot.slane %v830, %v1515
        %v1517 = vlaneseq
        %v1518 = vshrl.u32 %v1517, 7
        %v1519 = vsub.s32 4, %v1518
        %v1520 = vrot.slane %v830, %v1519
        %v1521 = vlaneseq
        %v1522 = vshrl.u32 %v1521, 7
        %v1523 = vsub.s32 5, %v1522
        %v1524 = vrot.slane %v830, %v1523
        %v1525 = vlaneseq
        %v1526 = vshrl.u32 %v1525, 7
        %v1527 = vsub.s32 6, %v1526
        %v1528 = vrot.slane %v830, %v1527
        %v1529 = vlaneseq
        %v1530 = vshrl.u32 %v1529, 7
        %v1531 = vsub.s32 7, %v1530
        %v1532 = vrot.slane %v830, %v1531
        %v1533 = vlaneseq
        %v1534 = vshrl.u32 %v1533, 7
        %v1535 = vsub.s32 0, %v1534
        %v1536 = vrot.slane %v832, %v1535
        %v1537 = vlaneseq
        %v1538 = vshrl.u32 %v1537, 7
        %v1539 = vsub.s32 1, %v1538
        %v1540 = vrot.slane %v832, %v1539
        %v1541 = vlaneseq
        %v1542 = vshrl.u32 %v1541, 7
        %v1543 = vsub.s32 2, %v1542
        %v1544 = vrot.slane %v832, %v1543
        %v1545 = vlaneseq
        %v1546 = vshrl.u32 %v1545, 7
        %v1547 = vsub.s32 3, %v1546
        %v1548 = vrot.slane %v832, %v1547
        %v1549 = vlaneseq
        %v1550 = vshrl.u32 %v1549, 7
        %v1551 = vsub.s32 4, %v1550
        %v1552 = vrot.slane %v832, %v1551
        %v1553 = vlaneseq
        %v1554 = vshrl.u32 %v1553, 7
        %v1555 = vsub.s32 5, %v1554
        %v1556 = vrot.slane %v832, %v1555
        %v1557 = vlaneseq
        %v1558 = vshrl.u32 %v1557, 7
        %v1559 = vsub.s32 6, %v1558
        %v1560 = vrot.slane %v832, %v1559
        %v1561 = vlaneseq
        %v1562 = vshrl.u32 %v1561, 7
        %v1563 = vsub.s32 7, %v1562
        %v1564 = vrot.slane %v832, %v1563
        %v1565 = vlaneseq
        %v1566 = vshrl.u32 %v1565, 7
        %v1567 = vsub.s32 0, %v1566
        %v1568 = vrot.slane %v834, %v1567
        %v1569 = vlaneseq
        %v1570 = vshrl.u32 %v1569, 7
        %v1571 = vsub.s32 1, %v1570
        %v1572 = vrot.slane %v834, %v1571
        %v1573 = vlaneseq
        %v1574 = vshrl.u32 %v1573, 7
        %v1575 = vsub.s32 2, %v1574
        %v1576 = vrot.slane %v834, %v1575
        %v1577 = vlaneseq
        %v1578 = vshrl.u32 %v1577, 7
        %v1579 = vsub.s32 3, %v1578
        %v1580 = vrot.slane %v834, %v1579
        %v1581 = vlaneseq
        %v1582 = vshrl.u32 %v1581, 7
        %v1583 = vsub.s32 4, %v1582
        %v1584 = vrot.slane %v834, %v1583
        %v1585 = vlaneseq
        %v1586 = vshrl.u32 %v1585, 7
        %v1587 = vsub.s32 5, %v1586
        %v1588 = vrot.slane %v834, %v1587
        %v1589 = vlaneseq
        %v1590 = vshrl.u32 %v1589, 7
        %v1591 = vsub.s32 6, %v1590
        %v1592 = vrot.slane %v834, %v1591
        %v1593 = vlaneseq
        %v1594 = vshrl.u32 %v1593, 7
        %v1595 = vsub.s32 7, %v1594
        %v1596 = vrot.slane %v834, %v1595
        %v1597 = vlaneseq
        %v1598 = vshrl.u32 %v1597, 7
        %v1599 = vsub.s32 0, %v1598
        %v1600 = vrot.slane %v836, %v1599
        %v1601 = vlaneseq
        %v1602 = vshrl.u32 %v1601, 7
        %v1603 = vsub.s32 1, %v1602
        %v1604 = vrot.slane %v836, %v1603
        %v1605 = vlaneseq
        %v1606 = vshrl.u32 %v1605, 7
        %v1607 = vsub.s32 2, %v1606
        %v1608 = vrot.slane %v836, %v1607
        %v1609 = vlaneseq
        %v1610 = vshrl.u32 %v1609, 7
        %v1611 = vsub.s32 3, %v1610
        %v1612 = vrot.slane %v836, %v1611
        %v1613 = vlaneseq
        %v1614 = vshrl.u32 %v1613, 7
        %v1615 = vsub.s32 4, %v1614
        %v1616 = vrot.slane %v836, %v1615
        %v1617 = vlaneseq
        %v1618 = vshrl.u32 %v1617, 7
        %v1619 = vsub.s32 5, %v1618
        %v1620 = vrot.slane %v836, %v1619
        %v1621 = vlaneseq
        %v1622 = vshrl.u32 %v1621, 7
        %v1623 = vsub.s32 6, %v1622
        %v1624 = vrot.slane %v836, %v1623
        %v1625 = vlaneseq
        %v1626 = vshrl.u32 %v1625, 7
        %v1627 = vsub.s32 7, %v1626
        %v1628 = vrot.slane %v836, %v1627
        %v1629 = vlaneseq
        %v1630 = vshrl.u32 %v1629, 7
        %v1631 = vsub.s32 0, %v1630
        %v1632 = vrot.slane %v838, %v1631
        %v1633 = vlaneseq
        %v1634 = vshrl.u32 %v1633, 7
        %v1635 = vsub.s32 1, %v1634
        %v1636 = vrot.slane %v838, %v1635
        %v1637 = vlaneseq
        %v1638 = vshrl.u32 %v1637, 7
        %v1639 = vsub.s32 2, %v1638
        %v1640 = vrot.slane %v838, %v1639
        %v1641 = vlaneseq
        %v1642 = vshrl.u32 %v1641, 7
        %v1643 = vsub.s32 3, %v1642
        %v1644 = vrot.slane %v838, %v1643
        %v1645 = vlaneseq
        %v1646 = vshrl.u32 %v1645, 7
        %v1647 = vsub.s32 4, %v1646
        %v1648 = vrot.slane %v838, %v1647
        %v1649 = vlaneseq
        %v1650 = vshrl.u32 %v1649, 7
        %v1651 = vsub.s32 5, %v1650
        %v1652 = vrot.slane %v838, %v1651
        %v1653 = vlaneseq
        %v1654 = vshrl.u32 %v1653, 7
        %v1655 = vsub.s32 6, %v1654
        %v1656 = vrot.slane %v838, %v1655
        %v1657 = vlaneseq
        %v1658 = vshrl.u32 %v1657, 7
        %v1659 = vsub.s32 7, %v1658
        %v1660 = vrot.slane %v838, %v1659
        %v1661 = vlaneseq
        %v1662 = vshrl.u32 %v1661, 7
        %v1663 = vsub.s32 0, %v1662
        %v1664 = vrot.slane %v840, %v1663
        %v1665 = vlaneseq
        %v1666 = vshrl.u32 %v1665, 7
        %v1667 = vsub.s32 1, %v1666
        %v1668 = vrot.slane %v840, %v1667
        %v1669 = vlaneseq
        %v1670 = vshrl.u32 %v1669, 7
        %v1671 = vsub.s32 2, %v1670
        %v1672 = vrot.slane %v840, %v1671
        %v1673 = vlaneseq
        %v1674 = vshrl.u32 %v1673, 7
        %v1675 = vsub.s32 3, %v1674
        %v1676 = vrot.slane %v840, %v1675
        %v1677 = vlaneseq
        %v1678 = vshrl.u32 %v1677, 7
        %v1679 = vsub.s32 4, %v1678
        %v1680 = vrot.slane %v840, %v1679
        %v1681 = vlaneseq
        %v1682 = vshrl.u32 %v1681, 7
        %v1683 = vsub.s32 5, %v1682
        %v1684 = vrot.slane %v840, %v1683
        %v1685 = vlaneseq
        %v1686 = vshrl.u32 %v1685, 7
        %v1687 = vsub.s32 6, %v1686
        %v1688 = vrot.slane %v840, %v1687
        %v1689 = vlaneseq
        %v1690 = vshrl.u32 %v1689, 7
        %v1691 = vsub.s32 7, %v1690
        %v1692 = vrot.slane %v840, %v1691
        %v1693 = vlaneseq
        %v1694 = vshrl.u32 %v1693, 7
        %v1695 = vsub.s32 0, %v1694
        %v1696 = vrot.slane %v842, %v1695
        %v1697 = vlaneseq
        %v1698 = vshrl.u32 %v1697, 7
        %v1699 = vsub.s32 1, %v1698
        %v1700 = vrot.slane %v842, %v1699
        %v1701 = vlaneseq
        %v1702 = vshrl.u32 %v1701, 7
        %v1703 = vsub.s32 2, %v1702
        %v1704 = vrot.slane %v842, %v1703
        %v1705 = vlaneseq
        %v1706 = vshrl.u32 %v1705, 7
        %v1707 = vsub.s32 3, %v1706
        %v1708 = vrot.slane %v842, %v1707
        %v1709 = vlaneseq
        %v1710 = vshrl.u32 %v1709, 7
        %v1711 = vsub.s32 4, %v1710
        %v1712 = vrot.slane %v842, %v1711
        %v1713 = vlaneseq
        %v1714 = vshrl.u32 %v1713, 7
        %v1715 = vsub.s32 5, %v1714
        %v1716 = vrot.slane %v842, %v1715
        %v1717 = vlaneseq
        %v1718 = vshrl.u32 %v1717, 7
        %v1719 = vsub.s32 6, %v1718
        %v1720 = vrot.slane %v842, %v1719
        %v1721 = vlaneseq
        %v1722 = vshrl.u32 %v1721, 7
        %v1723 = vsub.s32 7, %v1722
        %v1724 = vrot.slane %v842, %v1723
        %v1725 = vlaneseq
        %v1726 = vshrl.u32 %v1725, 7
        %v1727 = vsub.s32 0, %v1726
        %v1728 = vrot.slane %v844, %v1727
        %v1729 = vlaneseq
        %v1730 = vshrl.u32 %v1729, 7
        %v1731 = vsub.s32 1, %v1730
        %v1732 = vrot.slane %v844, %v1731
        %v1733 = vlaneseq
        %v1734 = vshrl.u32 %v1733, 7
        %v1735 = vsub.s32 2, %v1734
        %v1736 = vrot.slane %v844, %v1735
        %v1737 = vlaneseq
        %v1738 = vshrl.u32 %v1737, 7
        %v1739 = vsub.s32 3, %v1738
        %v1740 = vrot.slane %v844, %v1739
        %v1741 = vlaneseq
        %v1742 = vshrl.u32 %v1741, 7
        %v1743 = vsub.s32 4, %v1742
        %v1744 = vrot.slane %v844, %v1743
        %v1745 = vlaneseq
        %v1746 = vshrl.u32 %v1745, 7
        %v1747 = vsub.s32 5, %v1746
        %v1748 = vrot.slane %v844, %v1747
        %v1749 = vlaneseq
        %v1750 = vshrl.u32 %v1749, 7
        %v1751 = vsub.s32 6, %v1750
        %v1752 = vrot.slane %v844, %v1751
        %v1753 = vlaneseq
        %v1754 = vshrl.u32 %v1753, 7
        %v1755 = vsub.s32 7, %v1754
        %v1756 = vrot.slane %v844, %v1755
        %v1757 = vlaneseq
        %v1758 = vshrl.u32 %v1757, 7
        %v1759 = vsub.s32 0, %v1758
        %v1760 = vrot.slane %v846, %v1759
        %v1761 = vlaneseq
        %v1762 = vshrl.u32 %v1761, 7
        %v1763 = vsub.s32 1, %v1762
        %v1764 = vrot.slane %v846, %v1763
        %v1765 = vlaneseq
        %v1766 = vshrl.u32 %v1765, 7
        %v1767 = vsub.s32 2, %v1766
        %v1768 = vrot.slane %v846, %v1767
        %v1769 = vlaneseq
        %v1770 = vshrl.u32 %v1769, 7
        %v1771 = vsub.s32 3, %v1770
        %v1772 = vrot.slane %v846, %v1771
        %v1773 = vlaneseq
        %v1774 = vshrl.u32 %v1773, 7
        %v1775 = vsub.s32 4, %v1774
        %v1776 = vrot.slane %v846, %v1775
        %v1777 = vlaneseq
        %v1778 = vshrl.u32 %v1777, 7
        %v1779 = vsub.s32 5, %v1778
        %v1780 = vrot.slane %v846, %v1779
        %v1781 = vlaneseq
        %v1782 = vshrl.u32 %v1781, 7
        %v1783 = vsub.s32 6, %v1782
        %v1784 = vrot.slane %v846, %v1783
        %v1785 = vlaneseq
        %v1786 = vshrl.u32 %v1785, 7
        %v1787 = vsub.s32 7, %v1786
        %v1788 = vrot.slane %v846, %v1787
        %v1789 = vlaneseq
        %v1790 = vshrl.u32 %v1789, 7
        %v1791 = vsub.s32 0, %v1790
        %v1792 = vrot.slane %v848, %v1791
        %v1793 = vlaneseq
        %v1794 = vshrl.u32 %v1793, 7
        %v1795 = vsub.s32 1, %v1794
        %v1796 = vrot.slane %v848, %v1795
        %v1797 = vlaneseq
        %v1798 = vshrl.u32 %v1797, 7
        %v1799 = vsub.s32 2, %v1798
        %v1800 = vrot.slane %v848, %v1799
        %v1801 = vlaneseq
        %v1802 = vshrl.u32 %v1801, 7
        %v1803 = vsub.s32 3, %v1802
        %v1804 = vrot.slane %v848, %v1803
        %v1805 = vlaneseq
        %v1806 = vshrl.u32 %v1805, 7
        %v1807 = vsub.s32 4, %v1806
        %v1808 = vrot.slane %v848, %v1807
        %v1809 = vlaneseq
        %v1810 = vshrl.u32 %v1809, 7
        %v1811 = vsub.s32 5, %v1810
        %v1812 = vrot.slane %v848, %v1811
        %v1813 = vlaneseq
        %v1814 = vshrl.u32 %v1813, 7
        %v1815 = vsub.s32 6, %v1814
        %v1816 = vrot.slane %v848, %v1815
        %v1817 = vlaneseq
        %v1818 = vshrl.u32 %v1817, 7
        %v1819 = vsub.s32 7, %v1818
        %v1820 = vrot.slane %v848, %v1819
        %v1821 = vlaneseq
        %v1822 = vshrl.u32 %v1821, 7
        %v1823 = vsub.s32 0, %v1822
        %v1824 = vrot.slane %v850, %v1823
        %v1825 = vlaneseq
        %v1826 = vshrl.u32 %v1825, 7
        %v1827 = vsub.s32 1, %v1826
        %v1828 = vrot.slane %v850, %v1827
        %v1829 = vlaneseq
        %v1830 = vshrl.u32 %v1829, 7
        %v1831 = vsub.s32 2, %v1830
        %v1832 = vrot.slane %v850, %v1831
        %v1833 = vlaneseq
        %v1834 = vshrl.u32 %v1833, 7
        %v1835 = vsub.s32 3, %v1834
        %v1836 = vrot.slane %v850, %v1835
        %v1837 = vlaneseq
        %v1838 = vshrl.u32 %v1837, 7
        %v1839 = vsub.s32 4, %v1838
        %v1840 = vrot.slane %v850, %v1839
        %v1841 = vlaneseq
        %v1842 = vshrl.u32 %v1841, 7
        %v1843 = vsub.s32 5, %v1842
        %v1844 = vrot.slane %v850, %v1843
        %v1845 = vlaneseq
        %v1846 = vshrl.u32 %v1845, 7
        %v1847 = vsub.s32 6, %v1846
        %v1848 = vrot.slane %v850, %v1847
        %v1849 = vlaneseq
        %v1850 = vshrl.u32 %v1849, 7
        %v1851 = vsub.s32 7, %v1850
        %v1852 = vrot.slane %v850, %v1851
        %v1853 = vlaneseq
        %v1854 = vshrl.u32 %v1853, 7
        %v1855 = vsub.s32 0, %v1854
        %v1856 = vrot.slane %v852, %v1855
        %v1857 = vlaneseq
        %v1858 = vshrl.u32 %v1857, 7
        %v1859 = vsub.s32 1, %v1858
        %v1860 = vrot.slane %v852, %v1859
        %v1861 = vlaneseq
        %v1862 = vshrl.u32 %v1861, 7
        %v1863 = vsub.s32 2, %v1862
        %v1864 = vrot.slane %v852, %v1863
        %v1865 = vlaneseq
        %v1866 = vshrl.u32 %v1865, 7
        %v1867 = vsub.s32 3, %v1866
        %v1868 = vrot.slane %v852, %v1867
        %v1869 = vlaneseq
        %v1870 = vshrl.u32 %v1869, 7
        %v1871 = vsub.s32 4, %v1870
        %v1872 = vrot.slane %v852, %v1871
        %v1873 = vlaneseq
        %v1874 = vshrl.u32 %v1873, 7
        %v1875 = vsub.s32 5, %v1874
        %v1876 = vrot.slane %v852, %v1875
        %v1877 = vlaneseq
        %v1878 = vshrl.u32 %v1877, 7
        %v1879 = vsub.s32 6, %v1878
        %v1880 = vrot.slane %v852, %v1879
        %v1881 = vlaneseq
        %v1882 = vshrl.u32 %v1881, 7
        %v1883 = vsub.s32 7, %v1882
        %v1884 = vrot.slane %v852, %v1883
        %v1885 = vlaneseq
        %v1886 = vshrl.u32 %v1885, 7
        %v1887 = vsub.s32 0, %v1886
        %v1888 = vrot.slane %v854, %v1887
        %v1889 = vlaneseq
        %v1890 = vshrl.u32 %v1889, 7
        %v1891 = vsub.s32 1, %v1890
        %v1892 = vrot.slane %v854, %v1891
        %v1893 = vlaneseq
        %v1894 = vshrl.u32 %v1893, 7
        %v1895 = vsub.s32 2, %v1894
        %v1896 = vrot.slane %v854, %v1895
        %v1897 = vlaneseq
        %v1898 = vshrl.u32 %v1897, 7
        %v1899 = vsub.s32 3, %v1898
        %v1900 = vrot.slane %v854, %v1899
        %v1901 = vlaneseq
        %v1902 = vshrl.u32 %v1901, 7
        %v1903 = vsub.s32 4, %v1902
        %v1904 = vrot.slane %v854, %v1903
        %v1905 = vlaneseq
        %v1906 = vshrl.u32 %v1905, 7
        %v1907 = vsub.s32 5, %v1906
        %v1908 = vrot.slane %v854, %v1907
        %v1909 = vlaneseq
        %v1910 = vshrl.u32 %v1909, 7
        %v1911 = vsub.s32 6, %v1910
        %v1912 = vrot.slane %v854, %v1911
        %v1913 = vlaneseq
        %v1914 = vshrl.u32 %v1913, 7
        %v1915 = vsub.s32 7, %v1914
        %v1916 = vrot.slane %v854, %v1915
        %v1917 = vlaneseq
        %v1918 = vshrl.u32 %v1917, 7
        %v1919 = vsub.s32 0, %v1918
        %v1920 = vrot.slane %v856, %v1919
        %v1921 = vlaneseq
        %v1922 = vshrl.u32 %v1921, 7
        %v1923 = vsub.s32 1, %v1922
        %v1924 = vrot.slane %v856, %v1923
        %v1925 = vlaneseq
        %v1926 = vshrl.u32 %v1925, 7
        %v1927 = vsub.s32 2, %v1926
        %v1928 = vrot.slane %v856, %v1927
        %v1929 = vlaneseq
        %v1930 = vshrl.u32 %v1929, 7
        %v1931 = vsub.s32 3, %v1930
        %v1932 = vrot.slane %v856, %v1931
        %v1933 = vlaneseq
        %v1934 = vshrl.u32 %v1933, 7
        %v1935 = vsub.s32 4, %v1934
        %v1936 = vrot.slane %v856, %v1935
        %v1937 = vlaneseq
        %v1938 = vshrl.u32 %v1937, 7
        %v1939 = vsub.s32 5, %v1938
        %v1940 = vrot.slane %v856, %v1939
        %v1941 = vlaneseq
        %v1942 = vshrl.u32 %v1941, 7
        %v1943 = vsub.s32 6, %v1942
        %v1944 = vrot.slane %v856, %v1943
        %v1945 = vlaneseq
        %v1946 = vshrl.u32 %v1945, 7
        %v1947 = vsub.s32 7, %v1946
        %v1948 = vrot.slane %v856, %v1947
        %v1949 = vlaneseq
        %v1950 = vshrl.u32 %v1949, 7
        %v1951 = vsub.s32 0, %v1950
        %v1952 = vrot.slane %v858, %v1951
        %v1953 = vlaneseq
        %v1954 = vshrl.u32 %v1953, 7
        %v1955 = vsub.s32 1, %v1954
        %v1956 = vrot.slane %v858, %v1955
        %v1957 = vlaneseq
        %v1958 = vshrl.u32 %v1957, 7
        %v1959 = vsub.s32 2, %v1958
        %v1960 = vrot.slane %v858, %v1959
        %v1961 = vlaneseq
        %v1962 = vshrl.u32 %v1961, 7
        %v1963 = vsub.s32 3, %v1962
        %v1964 = vrot.slane %v858, %v1963
        %v1965 = vlaneseq
        %v1966 = vshrl.u32 %v1965, 7
        %v1967 = vsub.s32 4, %v1966
        %v1968 = vrot.slane %v858, %v1967
        %v1969 = vlaneseq
        %v1970 = vshrl.u32 %v1969, 7
        %v1971 = vsub.s32 5, %v1970
        %v1972 = vrot.slane %v858, %v1971
        %v1973 = vlaneseq
        %v1974 = vshrl.u32 %v1973, 7
        %v1975 = vsub.s32 6, %v1974
        %v1976 = vrot.slane %v858, %v1975
        %v1977 = vlaneseq
        %v1978 = vshrl.u32 %v1977, 7
        %v1979 = vsub.s32 7, %v1978
        %v1980 = vrot.slane %v858, %v1979
        %v1981 = vlaneseq
        %v1982 = vshrl.u32 %v1981, 7
        %v1983 = vsub.s32 0, %v1982
        %v1984 = vrot.slane %v860, %v1983
        %v1985 = vlaneseq
        %v1986 = vshrl.u32 %v1985, 7
        %v1987 = vsub.s32 1, %v1986
        %v1988 = vrot.slane %v860, %v1987
        %v1989 = vlaneseq
        %v1990 = vshrl.u32 %v1989, 7
        %v1991 = vsub.s32 2, %v1990
        %v1992 = vrot.slane %v860, %v1991
        %v1993 = vlaneseq
        %v1994 = vshrl.u32 %v1993, 7
        %v1995 = vsub.s32 3, %v1994
        %v1996 = vrot.slane %v860, %v1995
        %v1997 = vlaneseq
        %v1998 = vshrl.u32 %v1997, 7
        %v1999 = vsub.s32 4, %v1998
        %v2000 = vrot.slane %v860, %v1999
        %v2001 = vlaneseq
        %v2002 = vshrl.u32 %v2001, 7
        %v2003 = vsub.s32 5, %v2002
        %v2004 = vrot.slane %v860, %v2003
        %v2005 = vlaneseq
        %v2006 = vshrl.u32 %v2005, 7
        %v2007 = vsub.s32 6, %v2006
        %v2008 = vrot.slane %v860, %v2007
        %v2009 = vlaneseq
        %v2010 = vshrl.u32 %v2009, 7
        %v2011 = vsub.s32 7, %v2010
        %v2012 = vrot.slane %v860, %v2011
        %v2013 = vlaneseq
        %v2014 = vshrl.u32 %v2013, 7
        %v2015 = vsub.s32 0, %v2014
        %v2016 = vrot.slane %v862, %v2015
        %v2017 = vlaneseq
        %v2018 = vshrl.u32 %v2017, 7
        %v2019 = vsub.s32 1, %v2018
        %v2020 = vrot.slane %v862, %v2019
        %v2021 = vlaneseq
        %v2022 = vshrl.u32 %v2021, 7
        %v2023 = vsub.s32 2, %v2022
        %v2024 = vrot.slane %v862, %v2023
        %v2025 = vlaneseq
        %v2026 = vshrl.u32 %v2025, 7
        %v2027 = vsub.s32 3, %v2026
        %v2028 = vrot.slane %v862, %v2027
        %v2029 = vlaneseq
        %v2030 = vshrl.u32 %v2029, 7
        %v2031 = vsub.s32 4, %v2030
        %v2032 = vrot.slane %v862, %v2031
        %v2033 = vlaneseq
        %v2034 = vshrl.u32 %v2033, 7
        %v2035 = vsub.s32 5, %v2034
        %v2036 = vrot.slane %v862, %v2035
        %v2037 = vlaneseq
        %v2038 = vshrl.u32 %v2037, 7
        %v2039 = vsub.s32 6, %v2038
        %v2040 = vrot.slane %v862, %v2039
        %v2041 = vlaneseq
        %v2042 = vshrl.u32 %v2041, 7
        %v2043 = vsub.s32 7, %v2042
        %v2044 = vrot.slane %v862, %v2043
        %v2045 = vlaneseq
        %v2046 = vshrl.u32 %v2045, 7
        %v2047 = vsub.s32 0, %v2046
        %v2048 = vrot.slane %v864, %v2047
        %v2049 = vlaneseq
        %v2050 = vshrl.u32 %v2049, 7
        %v2051 = vsub.s32 1, %v2050
        %v2052 = vrot.slane %v864, %v2051
        %v2053 = vlaneseq
        %v2054 = vshrl.u32 %v2053, 7
        %v2055 = vsub.s32 2, %v2054
        %v2056 = vrot.slane %v864, %v2055
        %v2057 = vlaneseq
        %v2058 = vshrl.u32 %v2057, 7
        %v2059 = vsub.s32 3, %v2058
        %v2060 = vrot.slane %v864, %v2059
        %v2061 = vlaneseq
        %v2062 = vshrl.u32 %v2061, 7
        %v2063 = vsub.s32 4, %v2062
        %v2064 = vrot.slane %v864, %v2063
        %v2065 = vlaneseq
        %v2066 = vshrl.u32 %v2065, 7
        %v2067 = vsub.s32 5, %v2066
        %v2068 = vrot.slane %v864, %v2067
        %v2069 = vlaneseq
        %v2070 = vshrl.u32 %v2069, 7
        %v2071 = vsub.s32 6, %v2070
        %v2072 = vrot.slane %v864, %v2071
        %v2073 = vlaneseq
        %v2074 = vshrl.u32 %v2073, 7
        %v2075 = vsub.s32 7, %v2074
        %v2076 = vrot.slane %v864, %v2075
        %v2077 = vlaneseq
        %v2078 = vshrl.u32 %v2077, 7
        %v2079 = vsub.s32 0, %v2078
        %v2080 = vrot.slane %v866, %v2079
        %v2081 = vlaneseq
        %v2082 = vshrl.u32 %v2081, 7
        %v2083 = vsub.s32 1, %v2082
        %v2084 = vrot.slane %v866, %v2083
        %v2085 = vlaneseq
        %v2086 = vshrl.u32 %v2085, 7
        %v2087 = vsub.s32 2, %v2086
        %v2088 = vrot.slane %v866, %v2087
        %v2089 = vlaneseq
        %v2090 = vshrl.u32 %v2089, 7
        %v2091 = vsub.s32 3, %v2090
        %v2092 = vrot.slane %v866, %v2091
        %v2093 = vlaneseq
        %v2094 = vshrl.u32 %v2093, 7
        %v2095 = vsub.s32 4, %v2094
        %v2096 = vrot.slane %v866, %v2095
        %v2097 = vlaneseq
        %v2098 = vshrl.u32 %v2097, 7
        %v2099 = vsub.s32 5, %v2098
        %v2100 = vrot.slane %v866, %v2099
        %v2101 = vlaneseq
        %v2102 = vshrl.u32 %v2101, 7
        %v2103 = vsub.s32 6, %v2102
        %v2104 = vrot.slane %v866, %v2103
        %v2105 = vlaneseq
        %v2106 = vshrl.u32 %v2105, 7
        %v2107 = vsub.s32 7, %v2106
        %v2108 = vrot.slane %v866, %v2107
        %v2109 = vlaneseq
        %v2110 = vshrl.u32 %v2109, 7
        %v2111 = vsub.s32 0, %v2110
        %v2112 = vrot.slane %v868, %v2111
        %v2113 = vlaneseq
        %v2114 = vshrl.u32 %v2113, 7
        %v2115 = vsub.s32 1, %v2114
        %v2116 = vrot.slane %v868, %v2115
        %v2117 = vlaneseq
        %v2118 = vshrl.u32 %v2117, 7
        %v2119 = vsub.s32 2, %v2118
        %v2120 = vrot.slane %v868, %v2119
        %v2121 = vlaneseq
        %v2122 = vshrl.u32 %v2121, 7
        %v2123 = vsub.s32 3, %v2122
        %v2124 = vrot.slane %v868, %v2123
        %v2125 = vlaneseq
        %v2126 = vshrl.u32 %v2125, 7
        %v2127 = vsub.s32 4, %v2126
        %v2128 = vrot.slane %v868, %v2127
        %v2129 = vlaneseq
        %v2130 = vshrl.u32 %v2129, 7
        %v2131 = vsub.s32 5, %v2130
        %v2132 = vrot.slane %v868, %v2131
        %v2133 = vlaneseq
        %v2134 = vshrl.u32 %v2133, 7
        %v2135 = vsub.s32 6, %v2134
        %v2136 = vrot.slane %v868, %v2135
        %v2137 = vlaneseq
        %v2138 = vshrl.u32 %v2137, 7
        %v2139 = vsub.s32 7, %v2138
        %v2140 = vrot.slane %v868, %v2139
        %v2141 = vlaneseq
        %v2142 = vshrl.u32 %v2141, 7
        %v2143 = vsub.s32 0, %v2142
        %v2144 = vrot.slane %v870, %v2143
        %v2145 = vlaneseq
        %v2146 = vshrl.u32 %v2145, 7
        %v2147 = vsub.s32 1, %v2146
        %v2148 = vrot.slane %v870, %v2147
        %v2149 = vlaneseq
        %v2150 = vshrl.u32 %v2149, 7
        %v2151 = vsub.s32 2, %v2150
        %v2152 = vrot.slane %v870, %v2151
        %v2153 = vlaneseq
        %v2154 = vshrl.u32 %v2153, 7
        %v2155 = vsub.s32 3, %v2154
        %v2156 = vrot.slane %v870, %v2155
        %v2157 = vlaneseq
        %v2158 = vshrl.u32 %v2157, 7
        %v2159 = vsub.s32 4, %v2158
        %v2160 = vrot.slane %v870, %v2159
        %v2161 = vlaneseq
        %v2162 = vshrl.u32 %v2161, 7
        %v2163 = vsub.s32 5, %v2162
        %v2164 = vrot.slane %v870, %v2163
        %v2165 = vlaneseq
        %v2166 = vshrl.u32 %v2165, 7
        %v2167 = vsub.s32 6, %v2166
        %v2168 = vrot.slane %v870, %v2167
        %v2169 = vlaneseq
        %v2170 = vshrl.u32 %v2169, 7
        %v2171 = vsub.s32 7, %v2170
        %v2172 = vrot.slane %v870, %v2171
        %v2173 = vlaneseq
        %v2174 = vshrl.u32 %v2173, 7
        %v2175 = vsub.s32 0, %v2174
        %v2176 = vrot.slane %v872, %v2175
        %v2177 = vlaneseq
        %v2178 = vshrl.u32 %v2177, 7
        %v2179 = vsub.s32 1, %v2178
        %v2180 = vrot.slane %v872, %v2179
        %v2181 = vlaneseq
        %v2182 = vshrl.u32 %v2181, 7
        %v2183 = vsub.s32 2, %v2182
        %v2184 = vrot.slane %v872, %v2183
        %v2185 = vlaneseq
        %v2186 = vshrl.u32 %v2185, 7
        %v2187 = vsub.s32 3, %v2186
        %v2188 = vrot.slane %v872, %v2187
        %v2189 = vlaneseq
        %v2190 = vshrl.u32 %v2189, 7
        %v2191 = vsub.s32 4, %v2190
        %v2192 = vrot.slane %v872, %v2191
        %v2193 = vlaneseq
        %v2194 = vshrl.u32 %v2193, 7
        %v2195 = vsub.s32 5, %v2194
        %v2196 = vrot.slane %v872, %v2195
        %v2197 = vlaneseq
        %v2198 = vshrl.u32 %v2197, 7
        %v2199 = vsub.s32 6, %v2198
        %v2200 = vrot.slane %v872, %v2199
        %v2201 = vlaneseq
        %v2202 = vshrl.u32 %v2201, 7
        %v2203 = vsub.s32 7, %v2202
        %v2204 = vrot.slane %v872, %v2203
        %v2205 = vlaneseq
        %v2206 = vshrl.u32 %v2205, 7
        %v2207 = vsub.s32 0, %v2206
        %v2208 = vrot.slane %v874, %v2207
        %v2209 = vlaneseq
        %v2210 = vshrl.u32 %v2209, 7
        %v2211 = vsub.s32 1, %v2210
        %v2212 = vrot.slane %v874, %v2211
        %v2213 = vlaneseq
        %v2214 = vshrl.u32 %v2213, 7
        %v2215 = vsub.s32 2, %v2214
        %v2216 = vrot.slane %v874, %v2215
        %v2217 = vlaneseq
        %v2218 = vshrl.u32 %v2217, 7
        %v2219 = vsub.s32 3, %v2218
        %v2220 = vrot.slane %v874, %v2219
        %v2221 = vlaneseq
        %v2222 = vshrl.u32 %v2221, 7
        %v2223 = vsub.s32 4, %v2222
        %v2224 = vrot.slane %v874, %v2223
        %v2225 = vlaneseq
        %v2226 = vshrl.u32 %v2225, 7
        %v2227 = vsub.s32 5, %v2226
        %v2228 = vrot.slane %v874, %v2227
        %v2229 = vlaneseq
        %v2230 = vshrl.u32 %v2229, 7
        %v2231 = vsub.s32 6, %v2230
        %v2232 = vrot.slane %v874, %v2231
        %v2233 = vlaneseq
        %v2234 = vshrl.u32 %v2233, 7
        %v2235 = vsub.s32 7, %v2234
        %v2236 = vrot.slane %v874, %v2235
        %v2237 = vlaneseq
        %v2238 = vshrl.u32 %v2237, 7
        %v2239 = vsub.s32 0, %v2238
        %v2240 = vrot.slane %v876, %v2239
        %v2241 = vlaneseq
        %v2242 = vshrl.u32 %v2241, 7
        %v2243 = vsub.s32 1, %v2242
        %v2244 = vrot.slane %v876, %v2243
        %v2245 = vlaneseq
        %v2246 = vshrl.u32 %v2245, 7
        %v2247 = vsub.s32 2, %v2246
        %v2248 = vrot.slane %v876, %v2247
        %v2249 = vlaneseq
        %v2250 = vshrl.u32 %v2249, 7
        %v2251 = vsub.s32 3, %v2250
        %v2252 = vrot.slane %v876, %v2251
        %v2253 = vlaneseq
        %v2254 = vshrl.u32 %v2253, 7
        %v2255 = vsub.s32 4, %v2254
        %v2256 = vrot.slane %v876, %v2255
        %v2257 = vlaneseq
        %v2258 = vshrl.u32 %v2257, 7
        %v2259 = vsub.s32 5, %v2258
        %v2260 = vrot.slane %v876, %v2259
        %v2261 = vlaneseq
        %v2262 = vshrl.u32 %v2261, 7
        %v2263 = vsub.s32 6, %v2262
        %v2264 = vrot.slane %v876, %v2263
        %v2265 = vlaneseq
        %v2266 = vshrl.u32 %v2265, 7
        %v2267 = vsub.s32 7, %v2266
        %v2268 = vrot.slane %v876, %v2267
        %v2269 = vlaneseq
        %v2270 = vshrl.u32 %v2269, 7
        %v2271 = vsub.s32 0, %v2270
        %v2272 = vrot.slane %v878, %v2271
        %v2273 = vlaneseq
        %v2274 = vshrl.u32 %v2273, 7
        %v2275 = vsub.s32 1, %v2274
        %v2276 = vrot.slane %v878, %v2275
        %v2277 = vlaneseq
        %v2278 = vshrl.u32 %v2277, 7
        %v2279 = vsub.s32 2, %v2278
        %v2280 = vrot.slane %v878, %v2279
        %v2281 = vlaneseq
        %v2282 = vshrl.u32 %v2281, 7
        %v2283 = vsub.s32 3, %v2282
        %v2284 = vrot.slane %v878, %v2283
        %v2285 = vlaneseq
        %v2286 = vshrl.u32 %v2285, 7
        %v2287 = vsub.s32 4, %v2286
        %v2288 = vrot.slane %v878, %v2287
        %v2289 = vlaneseq
        %v2290 = vshrl.u32 %v2289, 7
        %v2291 = vsub.s32 5, %v2290
        %v2292 = vrot.slane %v878, %v2291
        %v2293 = vlaneseq
        %v2294 = vshrl.u32 %v2293, 7
        %v2295 = vsub.s32 6, %v2294
        %v2296 = vrot.slane %v878, %v2295
        %v2297 = vlaneseq
        %v2298 = vshrl.u32 %v2297, 7
        %v2299 = vsub.s32 7, %v2298
        %v2300 = vrot.slane %v878, %v2299
        %v2301 = vlaneseq
        %v2302 = vshrl.u32 %v2301, 7
        %v2303 = vsub.s32 0, %v2302
        %v2304 = vrot.slane %v880, %v2303
        %v2305 = vlaneseq
        %v2306 = vshrl.u32 %v2305, 7
        %v2307 = vsub.s32 1, %v2306
        %v2308 = vrot.slane %v880, %v2307
        %v2309 = vlaneseq
        %v2310 = vshrl.u32 %v2309, 7
        %v2311 = vsub.s32 2, %v2310
        %v2312 = vrot.slane %v880, %v2311
        %v2313 = vlaneseq
        %v2314 = vshrl.u32 %v2313, 7
        %v2315 = vsub.s32 3, %v2314
        %v2316 = vrot.slane %v880, %v2315
        %v2317 = vlaneseq
        %v2318 = vshrl.u32 %v2317, 7
        %v2319 = vsub.s32 4, %v2318
        %v2320 = vrot.slane %v880, %v2319
        %v2321 = vlaneseq
        %v2322 = vshrl.u32 %v2321, 7
        %v2323 = vsub.s32 5, %v2322
        %v2324 = vrot.slane %v880, %v2323
        %v2325 = vlaneseq
        %v2326 = vshrl.u32 %v2325, 7
        %v2327 = vsub.s32 6, %v2326
        %v2328 = vrot.slane %v880, %v2327
        %v2329 = vlaneseq
        %v2330 = vshrl.u32 %v2329, 7
        %v2331 = vsub.s32 7, %v2330
        %v2332 = vrot.slane %v880, %v2331
        %v2333 = vlaneseq
        %v2334 = vshrl.u32 %v2333, 7
        %v2335 = vsub.s32 0, %v2334
        %v2336 = vrot.slane %v882, %v2335
        %v2337 = vlaneseq
        %v2338 = vshrl.u32 %v2337, 7
        %v2339 = vsub.s32 1, %v2338
        %v2340 = vrot.slane %v882, %v2339
        %v2341 = vlaneseq
        %v2342 = vshrl.u32 %v2341, 7
        %v2343 = vsub.s32 2, %v2342
        %v2344 = vrot.slane %v882, %v2343
        %v2345 = vlaneseq
        %v2346 = vshrl.u32 %v2345, 7
        %v2347 = vsub.s32 3, %v2346
        %v2348 = vrot.slane %v882, %v2347
        %v2349 = vlaneseq
        %v2350 = vshrl.u32 %v2349, 7
        %v2351 = vsub.s32 4, %v2350
        %v2352 = vrot.slane %v882, %v2351
        %v2353 = vlaneseq
        %v2354 = vshrl.u32 %v2353, 7
        %v2355 = vsub.s32 5, %v2354
        %v2356 = vrot.slane %v882, %v2355
        %v2357 = vlaneseq
        %v2358 = vshrl.u32 %v2357, 7
        %v2359 = vsub.s32 6, %v2358
        %v2360 = vrot.slane %v882, %v2359
        %v2361 = vlaneseq
        %v2362 = vshrl.u32 %v2361, 7
        %v2363 = vsub.s32 7, %v2362
        %v2364 = vrot.slane %v882, %v2363
        %v2365 = vlaneseq
        %v2366 = vshrl.u32 %v2365, 7
        %v2367 = vsub.s32 0, %v2366
        %v2368 = vrot.slane %v884, %v2367
        %v2369 = vlaneseq
        %v2370 = vshrl.u32 %v2369, 7
        %v2371 = vsub.s32 1, %v2370
        %v2372 = vrot.slane %v884, %v2371
        %v2373 = vlaneseq
        %v2374 = vshrl.u32 %v2373, 7
        %v2375 = vsub.s32 2, %v2374
        %v2376 = vrot.slane %v884, %v2375
        %v2377 = vlaneseq
        %v2378 = vshrl.u32 %v2377, 7
        %v2379 = vsub.s32 3, %v2378
        %v2380 = vrot.slane %v884, %v2379
        %v2381 = vlaneseq
        %v2382 = vshrl.u32 %v2381, 7
        %v2383 = vsub.s32 4, %v2382
        %v2384 = vrot.slane %v884, %v2383
        %v2385 = vlaneseq
        %v2386 = vshrl.u32 %v2385, 7
        %v2387 = vsub.s32 5, %v2386
        %v2388 = vrot.slane %v884, %v2387
        %v2389 = vlaneseq
        %v2390 = vshrl.u32 %v2389, 7
        %v2391 = vsub.s32 6, %v2390
        %v2392 = vrot.slane %v884, %v2391
        %v2393 = vlaneseq
        %v2394 = vshrl.u32 %v2393, 7
        %v2395 = vsub.s32 7, %v2394
        %v2396 = vrot.slane %v884, %v2395
        %v2397 = vlaneseq
        %v2398 = vshrl.u32 %v2397, 7
        %v2399 = vsub.s32 0, %v2398
        %v2400 = vrot.slane %v886, %v2399
        %v2401 = vlaneseq
        %v2402 = vshrl.u32 %v2401, 7
        %v2403 = vsub.s32 1, %v2402
        %v2404 = vrot.slane %v886, %v2403
        %v2405 = vlaneseq
        %v2406 = vshrl.u32 %v2405, 7
        %v2407 = vsub.s32 2, %v2406
        %v2408 = vrot.slane %v886, %v2407
        %v2409 = vlaneseq
        %v2410 = vshrl.u32 %v2409, 7
        %v2411 = vsub.s32 3, %v2410
        %v2412 = vrot.slane %v886, %v2411
        %v2413 = vlaneseq
        %v2414 = vshrl.u32 %v2413, 7
        %v2415 = vsub.s32 4, %v2414
        %v2416 = vrot.slane %v886, %v2415
        %v2417 = vlaneseq
        %v2418 = vshrl.u32 %v2417, 7
        %v2419 = vsub.s32 5, %v2418
        %v2420 = vrot.slane %v886, %v2419
        %v2421 = vlaneseq
        %v2422 = vshrl.u32 %v2421, 7
        %v2423 = vsub.s32 6, %v2422
        %v2424 = vrot.slane %v886, %v2423
        %v2425 = vlaneseq
        %v2426 = vshrl.u32 %v2425, 7
        %v2427 = vsub.s32 7, %v2426
        %v2428 = vrot.slane %v886, %v2427
        %v2429 = vlaneseq
        %v2430 = vshrl.u32 %v2429, 7
        %v2431 = vsub.s32 0, %v2430
        %v2432 = vrot.slane %v888, %v2431
        %v2433 = vlaneseq
        %v2434 = vshrl.u32 %v2433, 7
        %v2435 = vsub.s32 1, %v2434
        %v2436 = vrot.slane %v888, %v2435
        %v2437 = vlaneseq
        %v2438 = vshrl.u32 %v2437, 7
        %v2439 = vsub.s32 2, %v2438
        %v2440 = vrot.slane %v888, %v2439
        %v2441 = vlaneseq
        %v2442 = vshrl.u32 %v2441, 7
        %v2443 = vsub.s32 3, %v2442
        %v2444 = vrot.slane %v888, %v2443
        %v2445 = vlaneseq
        %v2446 = vshrl.u32 %v2445, 7
        %v2447 = vsub.s32 4, %v2446
        %v2448 = vrot.slane %v888, %v2447
        %v2449 = vlaneseq
        %v2450 = vshrl.u32 %v2449, 7
        %v2451 = vsub.s32 5, %v2450
        %v2452 = vrot.slane %v888, %v2451
        %v2453 = vlaneseq
        %v2454 = vshrl.u32 %v2453, 7
        %v2455 = vsub.s32 6, %v2454
        %v2456 = vrot.slane %v888, %v2455
        %v2457 = vlaneseq
        %v2458 = vshrl.u32 %v2457, 7
        %v2459 = vsub.s32 7, %v2458
        %v2460 = vrot.slane %v888, %v2459
        %v2461 = vlaneseq
        %v2462 = vshrl.u32 %v2461, 7
        %v2463 = vsub.s32 0, %v2462
        %v2464 = vrot.slane %v890, %v2463
        %v2465 = vlaneseq
        %v2466 = vshrl.u32 %v2465, 7
        %v2467 = vsub.s32 1, %v2466
        %v2468 = vrot.slane %v890, %v2467
        %v2469 = vlaneseq
        %v2470 = vshrl.u32 %v2469, 7
        %v2471 = vsub.s32 2, %v2470
        %v2472 = vrot.slane %v890, %v2471
        %v2473 = vlaneseq
        %v2474 = vshrl.u32 %v2473, 7
        %v2475 = vsub.s32 3, %v2474
        %v2476 = vrot.slane %v890, %v2475
        %v2477 = vlaneseq
        %v2478 = vshrl.u32 %v2477, 7
        %v2479 = vsub.s32 4, %v2478
        %v2480 = vrot.slane %v890, %v2479
        %v2481 = vlaneseq
        %v2482 = vshrl.u32 %v2481, 7
        %v2483 = vsub.s32 5, %v2482
        %v2484 = vrot.slane %v890, %v2483
        %v2485 = vlaneseq
        %v2486 = vshrl.u32 %v2485, 7
        %v2487 = vsub.s32 6, %v2486
        %v2488 = vrot.slane %v890, %v2487
        %v2489 = vlaneseq
        %v2490 = vshrl.u32 %v2489, 7
        %v2491 = vsub.s32 7, %v2490
        %v2492 = vrot.slane %v890, %v2491
        %v2493 = vlaneseq
        %v2494 = vshrl.u32 %v2493, 7
        %v2495 = vsub.s32 0, %v2494
        %v2496 = vrot.slane %v892, %v2495
        %v2497 = vlaneseq
        %v2498 = vshrl.u32 %v2497, 7
        %v2499 = vsub.s32 1, %v2498
        %v2500 = vrot.slane %v892, %v2499
        %v2501 = vlaneseq
        %v2502 = vshrl.u32 %v2501, 7
        %v2503 = vsub.s32 2, %v2502
        %v2504 = vrot.slane %v892, %v2503
        %v2505 = vlaneseq
        %v2506 = vshrl.u32 %v2505, 7
        %v2507 = vsub.s32 3, %v2506
        %v2508 = vrot.slane %v892, %v2507
        %v2509 = vlaneseq
        %v2510 = vshrl.u32 %v2509, 7
        %v2511 = vsub.s32 4, %v2510
        %v2512 = vrot.slane %v892, %v2511
        %v2513 = vlaneseq
        %v2514 = vshrl.u32 %v2513, 7
        %v2515 = vsub.s32 5, %v2514
        %v2516 = vrot.slane %v892, %v2515
        %v2517 = vlaneseq
        %v2518 = vshrl.u32 %v2517, 7
        %v2519 = vsub.s32 6, %v2518
        %v2520 = vrot.slane %v892, %v2519
        %v2521 = vlaneseq
        %v2522 = vshrl.u32 %v2521, 7
        %v2523 = vsub.s32 7, %v2522
        %v2524 = vrot.slane %v892, %v2523
        %v2525 = vlaneseq
        %v2526 = vshrl.u32 %v2525, 7
        %v2527 = vsub.s32 0, %v2526
        %v2528 = vrot.slane %v894, %v2527
        %v2529 = vlaneseq
        %v2530 = vshrl.u32 %v2529, 7
        %v2531 = vsub.s32 1, %v2530
        %v2532 = vrot.slane %v894, %v2531
        %v2533 = vlaneseq
        %v2534 = vshrl.u32 %v2533, 7
        %v2535 = vsub.s32 2, %v2534
        %v2536 = vrot.slane %v894, %v2535
        %v2537 = vlaneseq
        %v2538 = vshrl.u32 %v2537, 7
        %v2539 = vsub.s32 3, %v2538
        %v2540 = vrot.slane %v894, %v2539
        %v2541 = vlaneseq
        %v2542 = vshrl.u32 %v2541, 7
        %v2543 = vsub.s32 4, %v2542
        %v2544 = vrot.slane %v894, %v2543
        %v2545 = vlaneseq
        %v2546 = vshrl.u32 %v2545, 7
        %v2547 = vsub.s32 5, %v2546
        %v2548 = vrot.slane %v894, %v2547
        %v2549 = vlaneseq
        %v2550 = vshrl.u32 %v2549, 7
        %v2551 = vsub.s32 6, %v2550
        %v2552 = vrot.slane %v894, %v2551
        %v2553 = vlaneseq
        %v2554 = vshrl.u32 %v2553, 7
        %v2555 = vsub.s32 7, %v2554
        %v2556 = vrot.slane %v894, %v2555
        %v2557 = vlaneseq
        %v2558 = vshrl.u32 %v2557, 7
        %v2559 = vsub.s32 0, %v2558
        %v2560 = vrot.slane %v896, %v2559
        %v2561 = vlaneseq
        %v2562 = vshrl.u32 %v2561, 7
        %v2563 = vsub.s32 1, %v2562
        %v2564 = vrot.slane %v896, %v2563
        %v2565 = vlaneseq
        %v2566 = vshrl.u32 %v2565, 7
        %v2567 = vsub.s32 2, %v2566
        %v2568 = vrot.slane %v896, %v2567
        %v2569 = vlaneseq
        %v2570 = vshrl.u32 %v2569, 7
        %v2571 = vsub.s32 3, %v2570
        %v2572 = vrot.slane %v896, %v2571
        %v2573 = vlaneseq
        %v2574 = vshrl.u32 %v2573, 7
        %v2575 = vsub.s32 4, %v2574
        %v2576 = vrot.slane %v896, %v2575
        %v2577 = vlaneseq
        %v2578 = vshrl.u32 %v2577, 7
        %v2579 = vsub.s32 5, %v2578
        %v2580 = vrot.slane %v896, %v2579
        %v2581 = vlaneseq
        %v2582 = vshrl.u32 %v2581, 7
        %v2583 = vsub.s32 6, %v2582
        %v2584 = vrot.slane %v896, %v2583
        %v2585 = vlaneseq
        %v2586 = vshrl.u32 %v2585, 7
        %v2587 = vsub.s32 7, %v2586
        %v2588 = vrot.slane %v896, %v2587
        %v2589 = vlaneseq
        %v2590 = vshrl.u32 %v2589, 7
        %v2591 = vsub.s32 0, %v2590
        %v2592 = vrot.slane %v898, %v2591
        %v2593 = vlaneseq
        %v2594 = vshrl.u32 %v2593, 7
        %v2595 = vsub.s32 1, %v2594
        %v2596 = vrot.slane %v898, %v2595
        %v2597 = vlaneseq
        %v2598 = vshrl.u32 %v2597, 7
        %v2599 = vsub.s32 2, %v2598
        %v2600 = vrot.slane %v898, %v2599
        %v2601 = vlaneseq
        %v2602 = vshrl.u32 %v2601, 7
        %v2603 = vsub.s32 3, %v2602
        %v2604 = vrot.slane %v898, %v2603
        %v2605 = vlaneseq
        %v2606 = vshrl.u32 %v2605, 7
        %v2607 = vsub.s32 4, %v2606
        %v2608 = vrot.slane %v898, %v2607
        %v2609 = vlaneseq
        %v2610 = vshrl.u32 %v2609, 7
        %v2611 = vsub.s32 5, %v2610
        %v2612 = vrot.slane %v898, %v2611
        %v2613 = vlaneseq
        %v2614 = vshrl.u32 %v2613, 7
        %v2615 = vsub.s32 6, %v2614
        %v2616 = vrot.slane %v898, %v2615
        %v2617 = vlaneseq
        %v2618 = vshrl.u32 %v2617, 7
        %v2619 = vsub.s32 7, %v2618
        %v2620 = vrot.slane %v898, %v2619
        %v2621 = vlaneseq
        %v2622 = vshrl.u32 %v2621, 7
        %v2623 = vsub.s32 0, %v2622
        %v2624 = vrot.slane %v900, %v2623
        %v2625 = vlaneseq
        %v2626 = vshrl.u32 %v2625, 7
        %v2627 = vsub.s32 1, %v2626
        %v2628 = vrot.slane %v900, %v2627
        %v2629 = vlaneseq
        %v2630 = vshrl.u32 %v2629, 7
        %v2631 = vsub.s32 2, %v2630
        %v2632 = vrot.slane %v900, %v2631
        %v2633 = vlaneseq
        %v2634 = vshrl.u32 %v2633, 7
        %v2635 = vsub.s32 3, %v2634
        %v2636 = vrot.slane %v900, %v2635
        %v2637 = vlaneseq
        %v2638 = vshrl.u32 %v2637, 7
        %v2639 = vsub.s32 4, %v2638
        %v2640 = vrot.slane %v900, %v2639
        %v2641 = vlaneseq
        %v2642 = vshrl.u32 %v2641, 7
        %v2643 = vsub.s32 5, %v2642
        %v2644 = vrot.slane %v900, %v2643
        %v2645 = vlaneseq
        %v2646 = vshrl.u32 %v2645, 7
        %v2647 = vsub.s32 6, %v2646
        %v2648 = vrot.slane %v900, %v2647
        %v2649 = vlaneseq
        %v2650 = vshrl.u32 %v2649, 7
        %v2651 = vsub.s32 7, %v2650
        %v2652 = vrot.slane %v900, %v2651
        %v2653 = vlaneseq
        %v2654 = vshrl.u32 %v2653, 7
        %v2655 = vsub.s32 0, %v2654
        %v2656 = vrot.slane %v902, %v2655
        %v2657 = vlaneseq
        %v2658 = vshrl.u32 %v2657, 7
        %v2659 = vsub.s32 1, %v2658
        %v2660 = vrot.slane %v902, %v2659
        %v2661 = vlaneseq
        %v2662 = vshrl.u32 %v2661, 7
        %v2663 = vsub.s32 2, %v2662
        %v2664 = vrot.slane %v902, %v2663
        %v2665 = vlaneseq
        %v2666 = vshrl.u32 %v2665, 7
        %v2667 = vsub.s32 3, %v2666
        %v2668 = vrot.slane %v902, %v2667
        %v2669 = vlaneseq
        %v2670 = vshrl.u32 %v2669, 7
        %v2671 = vsub.s32 4, %v2670
        %v2672 = vrot.slane %v902, %v2671
        %v2673 = vlaneseq
        %v2674 = vshrl.u32 %v2673, 7
        %v2675 = vsub.s32 5, %v2674
        %v2676 = vrot.slane %v902, %v2675
        %v2677 = vlaneseq
        %v2678 = vshrl.u32 %v2677, 7
        %v2679 = vsub.s32 6, %v2678
        %v2680 = vrot.slane %v902, %v2679
        %v2681 = vlaneseq
        %v2682 = vshrl.u32 %v2681, 7
        %v2683 = vsub.s32 7, %v2682
        %v2684 = vrot.slane %v902, %v2683
        %v2685 = vlaneseq
        %v2686 = vshrl.u32 %v2685, 7
        %v2687 = vsub.s32 0, %v2686
        %v2688 = vrot.slane %v904, %v2687
        %v2689 = vlaneseq
        %v2690 = vshrl.u32 %v2689, 7
        %v2691 = vsub.s32 1, %v2690
        %v2692 = vrot.slane %v904, %v2691
        %v2693 = vlaneseq
        %v2694 = vshrl.u32 %v2693, 7
        %v2695 = vsub.s32 2, %v2694
        %v2696 = vrot.slane %v904, %v2695
        %v2697 = vlaneseq
        %v2698 = vshrl.u32 %v2697, 7
        %v2699 = vsub.s32 3, %v2698
        %v2700 = vrot.slane %v904, %v2699
        %v2701 = vlaneseq
        %v2702 = vshrl.u32 %v2701, 7
        %v2703 = vsub.s32 4, %v2702
        %v2704 = vrot.slane %v904, %v2703
        %v2705 = vlaneseq
        %v2706 = vshrl.u32 %v2705, 7
        %v2707 = vsub.s32 5, %v2706
        %v2708 = vrot.slane %v904, %v2707
        %v2709 = vlaneseq
        %v2710 = vshrl.u32 %v2709, 7
        %v2711 = vsub.s32 6, %v2710
        %v2712 = vrot.slane %v904, %v2711
        %v2713 = vlaneseq
        %v2714 = vshrl.u32 %v2713, 7
        %v2715 = vsub.s32 7, %v2714
        %v2716 = vrot.slane %v904, %v2715
        %v2717 = vlaneseq
        %v2718 = vshrl.u32 %v2717, 7
        %v2719 = vsub.s32 0, %v2718
        %v2720 = vrot.slane %v906, %v2719
        %v2721 = vlaneseq
        %v2722 = vshrl.u32 %v2721, 7
        %v2723 = vsub.s32 1, %v2722
        %v2724 = vrot.slane %v906, %v2723
        %v2725 = vlaneseq
        %v2726 = vshrl.u32 %v2725, 7
        %v2727 = vsub.s32 2, %v2726
        %v2728 = vrot.slane %v906, %v2727
        %v2729 = vlaneseq
        %v2730 = vshrl.u32 %v2729, 7
        %v2731 = vsub.s32 3, %v2730
        %v2732 = vrot.slane %v906, %v2731
        %v2733 = vlaneseq
        %v2734 = vshrl.u32 %v2733, 7
        %v2735 = vsub.s32 4, %v2734
        %v2736 = vrot.slane %v906, %v2735
        %v2737 = vlaneseq
        %v2738 = vshrl.u32 %v2737, 7
        %v2739 = vsub.s32 5, %v2738
        %v2740 = vrot.slane %v906, %v2739
        %v2741 = vlaneseq
        %v2742 = vshrl.u32 %v2741, 7
        %v2743 = vsub.s32 6, %v2742
        %v2744 = vrot.slane %v906, %v2743
        %v2745 = vlaneseq
        %v2746 = vshrl.u32 %v2745, 7
        %v2747 = vsub.s32 7, %v2746
        %v2748 = vrot.slane %v906, %v2747
        %v2749 = vlaneseq
        %v2750 = vshrl.u32 %v2749, 7
        %v2751 = vsub.s32 0, %v2750
        %v2752 = vrot.slane %v908, %v2751
        %v2753 = vlaneseq
        %v2754 = vshrl.u32 %v2753, 7
        %v2755 = vsub.s32 1, %v2754
        %v2756 = vrot.slane %v908, %v2755
        %v2757 = vlaneseq
        %v2758 = vshrl.u32 %v2757, 7
        %v2759 = vsub.s32 2, %v2758
        %v2760 = vrot.slane %v908, %v2759
        %v2761 = vlaneseq
        %v2762 = vshrl.u32 %v2761, 7
        %v2763 = vsub.s32 3, %v2762
        %v2764 = vrot.slane %v908, %v2763
        %v2765 = vlaneseq
        %v2766 = vshrl.u32 %v2765, 7
        %v2767 = vsub.s32 4, %v2766
        %v2768 = vrot.slane %v908, %v2767
        %v2769 = vlaneseq
        %v2770 = vshrl.u32 %v2769, 7
        %v2771 = vsub.s32 5, %v2770
        %v2772 = vrot.slane %v908, %v2771
        %v2773 = vlaneseq
        %v2774 = vshrl.u32 %v2773, 7
        %v2775 = vsub.s32 6, %v2774
        %v2776 = vrot.slane %v908, %v2775
        %v2777 = vlaneseq
        %v2778 = vshrl.u32 %v2777, 7
        %v2779 = vsub.s32 7, %v2778
        %v2780 = vrot.slane %v908, %v2779
        %v2781 = vlaneseq
        %v2782 = vshrl.u32 %v2781, 7
        %v2783 = vsub.s32 0, %v2782
        %v2784 = vrot.slane %v910, %v2783
        %v2785 = vlaneseq
        %v2786 = vshrl.u32 %v2785, 7
        %v2787 = vsub.s32 1, %v2786
        %v2788 = vrot.slane %v910, %v2787
        %v2789 = vlaneseq
        %v2790 = vshrl.u32 %v2789, 7
        %v2791 = vsub.s32 2, %v2790
        %v2792 = vrot.slane %v910, %v2791
        %v2793 = vlaneseq
        %v2794 = vshrl.u32 %v2793, 7
        %v2795 = vsub.s32 3, %v2794
        %v2796 = vrot.slane %v910, %v2795
        %v2797 = vlaneseq
        %v2798 = vshrl.u32 %v2797, 7
        %v2799 = vsub.s32 4, %v2798
        %v2800 = vrot.slane %v910, %v2799
        %v2801 = vlaneseq
        %v2802 = vshrl.u32 %v2801, 7
        %v2803 = vsub.s32 5, %v2802
        %v2804 = vrot.slane %v910, %v2803
        %v2805 = vlaneseq
        %v2806 = vshrl.u32 %v2805, 7
        %v2807 = vsub.s32 6, %v2806
        %v2808 = vrot.slane %v910, %v2807
        %v2809 = vlaneseq
        %v2810 = vshrl.u32 %v2809, 7
        %v2811 = vsub.s32 7, %v2810
        %v2812 = vrot.slane %v910, %v2811
        %v2813 = vlaneseq
        %v2814 = vshrl.u32 %v2813, 7
        %v2815 = vsub.s32 0, %v2814
        %v2816 = vrot.slane %v912, %v2815
        %v2817 = vlaneseq
        %v2818 = vshrl.u32 %v2817, 7
        %v2819 = vsub.s32 1, %v2818
        %v2820 = vrot.slane %v912, %v2819
        %v2821 = vlaneseq
        %v2822 = vshrl.u32 %v2821, 7
        %v2823 = vsub.s32 2, %v2822
        %v2824 = vrot.slane %v912, %v2823
        %v2825 = vlaneseq
        %v2826 = vshrl.u32 %v2825, 7
        %v2827 = vsub.s32 3, %v2826
        %v2828 = vrot.slane %v912, %v2827
        %v2829 = vlaneseq
        %v2830 = vshrl.u32 %v2829, 7
        %v2831 = vsub.s32 4, %v2830
        %v2832 = vrot.slane %v912, %v2831
        %v2833 = vlaneseq
        %v2834 = vshrl.u32 %v2833, 7
        %v2835 = vsub.s32 5, %v2834
        %v2836 = vrot.slane %v912, %v2835
        %v2837 = vlaneseq
        %v2838 = vshrl.u32 %v2837, 7
        %v2839 = vsub.s32 6, %v2838
        %v2840 = vrot.slane %v912, %v2839
        %v2841 = vlaneseq
        %v2842 = vshrl.u32 %v2841, 7
        %v2843 = vsub.s32 7, %v2842
        %v2844 = vrot.slane %v912, %v2843
        %v2845 = vlaneseq
        %v2846 = vshrl.u32 %v2845, 7
        %v2847 = vsub.s32 0, %v2846
        %v2848 = vrot.slane %v914, %v2847
        %v2849 = vlaneseq
        %v2850 = vshrl.u32 %v2849, 7
        %v2851 = vsub.s32 1, %v2850
        %v2852 = vrot.slane %v914, %v2851
        %v2853 = vlaneseq
        %v2854 = vshrl.u32 %v2853, 7
        %v2855 = vsub.s32 2, %v2854
        %v2856 = vrot.slane %v914, %v2855
        %v2857 = vlaneseq
        %v2858 = vshrl.u32 %v2857, 7
        %v2859 = vsub.s32 3, %v2858
        %v2860 = vrot.slane %v914, %v2859
        %v2861 = vlaneseq
        %v2862 = vshrl.u32 %v2861, 7
        %v2863 = vsub.s32 4, %v2862
        %v2864 = vrot.slane %v914, %v2863
        %v2865 = vlaneseq
        %v2866 = vshrl.u32 %v2865, 7
        %v2867 = vsub.s32 5, %v2866
        %v2868 = vrot.slane %v914, %v2867
        %v2869 = vlaneseq
        %v2870 = vshrl.u32 %v2869, 7
        %v2871 = vsub.s32 6, %v2870
        %v2872 = vrot.slane %v914, %v2871
        %v2873 = vlaneseq
        %v2874 = vshrl.u32 %v2873, 7
        %v2875 = vsub.s32 7, %v2874
        %v2876 = vrot.slane %v914, %v2875
        %v2877 = vlaneseq
        %v2878 = vshrl.u32 %v2877, 7
        %v2879 = vsub.s32 0, %v2878
        %v2880 = vrot.slane %v916, %v2879
        %v2881 = vlaneseq
        %v2882 = vshrl.u32 %v2881, 7
        %v2883 = vsub.s32 1, %v2882
        %v2884 = vrot.slane %v916, %v2883
        %v2885 = vlaneseq
        %v2886 = vshrl.u32 %v2885, 7
        %v2887 = vsub.s32 2, %v2886
        %v2888 = vrot.slane %v916, %v2887
        %v2889 = vlaneseq
        %v2890 = vshrl.u32 %v2889, 7
        %v2891 = vsub.s32 3, %v2890
        %v2892 = vrot.slane %v916, %v2891
        %v2893 = vlaneseq
        %v2894 = vshrl.u32 %v2893, 7
        %v2895 = vsub.s32 4, %v2894
        %v2896 = vrot.slane %v916, %v2895
        %v2897 = vlaneseq
        %v2898 = vshrl.u32 %v2897, 7
        %v2899 = vsub.s32 5, %v2898
        %v2900 = vrot.slane %v916, %v2899
        %v2901 = vlaneseq
        %v2902 = vshrl.u32 %v2901, 7
        %v2903 = vsub.s32 6, %v2902
        %v2904 = vrot.slane %v916, %v2903
        %v2905 = vlaneseq
        %v2906 = vshrl.u32 %v2905, 7
        %v2907 = vsub.s32 7, %v2906
        %v2908 = vrot.slane %v916, %v2907
        %v2909 = vlaneseq
        %v2910 = vshrl.u32 %v2909, 7
        %v2911 = vsub.s32 0, %v2910
        %v2912 = vrot.slane %v918, %v2911
        %v2913 = vlaneseq
        %v2914 = vshrl.u32 %v2913, 7
        %v2915 = vsub.s32 1, %v2914
        %v2916 = vrot.slane %v918, %v2915
        %v2917 = vlaneseq
        %v2918 = vshrl.u32 %v2917, 7
        %v2919 = vsub.s32 2, %v2918
        %v2920 = vrot.slane %v918, %v2919
        %v2921 = vlaneseq
        %v2922 = vshrl.u32 %v2921, 7
        %v2923 = vsub.s32 3, %v2922
        %v2924 = vrot.slane %v918, %v2923
        %v2925 = vlaneseq
        %v2926 = vshrl.u32 %v2925, 7
        %v2927 = vsub.s32 4, %v2926
        %v2928 = vrot.slane %v918, %v2927
        %v2929 = vlaneseq
        %v2930 = vshrl.u32 %v2929, 7
        %v2931 = vsub.s32 5, %v2930
        %v2932 = vrot.slane %v918, %v2931
        %v2933 = vlaneseq
        %v2934 = vshrl.u32 %v2933, 7
        %v2935 = vsub.s32 6, %v2934
        %v2936 = vrot.slane %v918, %v2935
        %v2937 = vlaneseq
        %v2938 = vshrl.u32 %v2937, 7
        %v2939 = vsub.s32 7, %v2938
        %v2940 = vrot.slane %v918, %v2939
        %v2941 = vlaneseq
        %v2942 = vshrl.u32 %v2941, 7
        %v2943 = vsub.s32 0, %v2942
        %v2944 = vrot.slane %v920, %v2943
        %v2945 = vlaneseq
        %v2946 = vshrl.u32 %v2945, 7
        %v2947 = vsub.s32 1, %v2946
        %v2948 = vrot.slane %v920, %v2947
        %v2949 = vlaneseq
        %v2950 = vshrl.u32 %v2949, 7
        %v2951 = vsub.s32 2, %v2950
        %v2952 = vrot.slane %v920, %v2951
        %v2953 = vlaneseq
        %v2954 = vshrl.u32 %v2953, 7
        %v2955 = vsub.s32 3, %v2954
        %v2956 = vrot.slane %v920, %v2955
        %v2957 = vlaneseq
        %v2958 = vshrl.u32 %v2957, 7
        %v2959 = vsub.s32 4, %v2958
        %v2960 = vrot.slane %v920, %v2959
        %v2961 = vlaneseq
        %v2962 = vshrl.u32 %v2961, 7
        %v2963 = vsub.s32 5, %v2962
        %v2964 = vrot.slane %v920, %v2963
        %v2965 = vlaneseq
        %v2966 = vshrl.u32 %v2965, 7
        %v2967 = vsub.s32 6, %v2966
        %v2968 = vrot.slane %v920, %v2967
        %v2969 = vlaneseq
        %v2970 = vshrl.u32 %v2969, 7
        %v2971 = vsub.s32 7, %v2970
        %v2972 = vrot.slane %v920, %v2971
        %v2973 = vlaneseq
        %v2974 = vshrl.u32 %v2973, 7
        %v2975 = vsub.s32 0, %v2974
        %v2976 = vrot.slane %v922, %v2975
        %v2977 = vlaneseq
        %v2978 = vshrl.u32 %v2977, 7
        %v2979 = vsub.s32 1, %v2978
        %v2980 = vrot.slane %v922, %v2979
        %v2981 = vlaneseq
        %v2982 = vshrl.u32 %v2981, 7
        %v2983 = vsub.s32 2, %v2982
        %v2984 = vrot.slane %v922, %v2983
        %v2985 = vlaneseq
        %v2986 = vshrl.u32 %v2985, 7
        %v2987 = vsub.s32 3, %v2986
        %v2988 = vrot.slane %v922, %v2987
        %v2989 = vlaneseq
        %v2990 = vshrl.u32 %v2989, 7
        %v2991 = vsub.s32 4, %v2990
        %v2992 = vrot.slane %v922, %v2991
        %v2993 = vlaneseq
        %v2994 = vshrl.u32 %v2993, 7
        %v2995 = vsub.s32 5, %v2994
        %v2996 = vrot.slane %v922, %v2995
        %v2997 = vlaneseq
        %v2998 = vshrl.u32 %v2997, 7
        %v2999 = vsub.s32 6, %v2998
        %v3000 = vrot.slane %v922, %v2999
        %v3001 = vlaneseq
        %v3002 = vshrl.u32 %v3001, 7
        %v3003 = vsub.s32 7, %v3002
        %v3004 = vrot.slane %v922, %v3003
        %v3005 = vlaneseq
        %v3006 = vshrl.u32 %v3005, 7
        %v3007 = vsub.s32 0, %v3006
        %v3008 = vrot.slane %v924, %v3007
        %v3009 = vlaneseq
        %v3010 = vshrl.u32 %v3009, 7
        %v3011 = vsub.s32 1, %v3010
        %v3012 = vrot.slane %v924, %v3011
        %v3013 = vlaneseq
        %v3014 = vshrl.u32 %v3013, 7
        %v3015 = vsub.s32 2, %v3014
        %v3016 = vrot.slane %v924, %v3015
        %v3017 = vlaneseq
        %v3018 = vshrl.u32 %v3017, 7
        %v3019 = vsub.s32 3, %v3018
        %v3020 = vrot.slane %v924, %v3019
        %v3021 = vlaneseq
        %v3022 = vshrl.u32 %v3021, 7
        %v3023 = vsub.s32 4, %v3022
        %v3024 = vrot.slane %v924, %v3023
        %v3025 = vlaneseq
        %v3026 = vshrl.u32 %v3025, 7
        %v3027 = vsub.s32 5, %v3026
        %v3028 = vrot.slane %v924, %v3027
        %v3029 = vlaneseq
        %v3030 = vshrl.u32 %v3029, 7
        %v3031 = vsub.s32 6, %v3030
        %v3032 = vrot.slane %v924, %v3031
        %v3033 = vlaneseq
        %v3034 = vshrl.u32 %v3033, 7
        %v3035 = vsub.s32 7, %v3034
        %v3036 = vrot.slane %v924, %v3035
        %v3037 = vcombine.low %v992, %v996
        %v3038 = vcombine.low %v1000, %v1004
        %v3039 = vcombine.low %v1008, %v1012
        %v3040 = vcombine.low %v1016, %v1020
        %v3042 = vunpack.c.l.s4 1966171168
        %v3043 = vunpack.c.0.s8 %v3042
        %v3044 = vlaneseq
        %v3045 = vshrl.u32 %v3044, 7
        %v3046 = vsub.s32 %v3043, %v3045
        %v3047 = vrot.slane %v3037, %v3046
        %v3049 = vunpack.c.l.s4 1966171168
        %v3050 = vunpack.c.0.s8 %v3049
        %v3051 = vlaneseq
        %v3052 = vshrl.u32 %v3051, 7
        %v3053 = vsub.s32 %v3050, %v3052
        %v3054 = vrot.slane %v3038, %v3053
        %v3056 = vunpack.c.l.s4 1966171168
        %v3057 = vunpack.c.0.s8 %v3056
        %v3058 = vlaneseq
        %v3059 = vshrl.u32 %v3058, 7
        %v3060 = vsub.s32 %v3057, %v3059
        %v3061 = vrot.slane %v3039, %v3060
        %v3063 = vunpack.c.l.s4 1966171168
        %v3064 = vunpack.c.0.s8 %v3063
        %v3065 = vlaneseq
        %v3066 = vshrl.u32 %v3065, 7
        %v3067 = vsub.s32 %v3064, %v3066
        %v3068 = vrot.slane %v3040, %v3067
        %v3069 = vcombine.low %v3047, %v3054
        %v3070 = vcombine.low %v3061, %v3068
        %v3072 = vunpack.c.l.s4 1966171168
        %v3073 = vunpack.c.0.s8 %v3072
        %v3074 = vlaneseq
        %v3075 = vshrl.u32 %v3074, 7
        %v3076 = vsub.s32 %v3073, %v3075
        %v3077 = vrot.slane %v3069, %v3076
        %v3079 = vunpack.c.l.s4 1966171168
        %v3080 = vunpack.c.0.s8 %v3079
        %v3081 = vlaneseq
        %v3082 = vshrl.u32 %v3081, 7
        %v3083 = vsub.s32 %v3080, %v3082
        %v3084 = vrot.slane %v3070, %v3083
        %v3085 = vcombine.low %v3077, %v3084
        %v3086 = vcombine.low %v1024, %v1028
        %v3087 = vcombine.low %v1032, %v1036
        %v3088 = vcombine.low %v1040, %v1044
        %v3089 = vcombine.low %v1048, %v1052
        %v3091 = vunpack.c.l.s4 1966171168
        %v3092 = vunpack.c.0.s8 %v3091
        %v3093 = vlaneseq
        %v3094 = vshrl.u32 %v3093, 7
        %v3095 = vsub.s32 %v3092, %v3094
        %v3096 = vrot.slane %v3086, %v3095
        %v3098 = vunpack.c.l.s4 1966171168
        %v3099 = vunpack.c.0.s8 %v3098
        %v3100 = vlaneseq
        %v3101 = vshrl.u32 %v3100, 7
        %v3102 = vsub.s32 %v3099, %v3101
        %v3103 = vrot.slane %v3087, %v3102
        %v3105 = vunpack.c.l.s4 1966171168
        %v3106 = vunpack.c.0.s8 %v3105
        %v3107 = vlaneseq
        %v3108 = vshrl.u32 %v3107, 7
        %v3109 = vsub.s32 %v3106, %v3108
        %v3110 = vrot.slane %v3088, %v3109
        %v3112 = vunpack.c.l.s4 1966171168
        %v3113 = vunpack.c.0.s8 %v3112
        %v3114 = vlaneseq
        %v3115 = vshrl.u32 %v3114, 7
        %v3116 = vsub.s32 %v3113, %v3115
        %v3117 = vrot.slane %v3089, %v3116
        %v3118 = vcombine.low %v3096, %v3103
        %v3119 = vcombine.low %v3110, %v3117
        %v3121 = vunpack.c.l.s4 1966171168
        %v3122 = vunpack.c.0.s8 %v3121
        %v3123 = vlaneseq
        %v3124 = vshrl.u32 %v3123, 7
        %v3125 = vsub.s32 %v3122, %v3124
        %v3126 = vrot.slane %v3118, %v3125
        %v3128 = vunpack.c.l.s4 1966171168
        %v3129 = vunpack.c.0.s8 %v3128
        %v3130 = vlaneseq
        %v3131 = vshrl.u32 %v3130, 7
        %v3132 = vsub.s32 %v3129, %v3131
        %v3133 = vrot.slane %v3119, %v3132
        %v3134 = vcombine.low %v3126, %v3133
        %v3135 = vcombine.low %v1056, %v1060
        %v3136 = vcombine.low %v1064, %v1068
        %v3137 = vcombine.low %v1072, %v1076
        %v3138 = vcombine.low %v1080, %v1084
        %v3140 = vunpack.c.l.s4 1966171168
        %v3141 = vunpack.c.0.s8 %v3140
        %v3142 = vlaneseq
        %v3143 = vshrl.u32 %v3142, 7
        %v3144 = vsub.s32 %v3141, %v3143
        %v3145 = vrot.slane %v3135, %v3144
        %v3147 = vunpack.c.l.s4 1966171168
        %v3148 = vunpack.c.0.s8 %v3147
        %v3149 = vlaneseq
        %v3150 = vshrl.u32 %v3149, 7
        %v3151 = vsub.s32 %v3148, %v3150
        %v3152 = vrot.slane %v3136, %v3151
        %v3154 = vunpack.c.l.s4 1966171168
        %v3155 = vunpack.c.0.s8 %v3154
        %v3156 = vlaneseq
        %v3157 = vshrl.u32 %v3156, 7
        %v3158 = vsub.s32 %v3155, %v3157
        %v3159 = vrot.slane %v3137, %v3158
        %v3161 = vunpack.c.l.s4 1966171168
        %v3162 = vunpack.c.0.s8 %v3161
        %v3163 = vlaneseq
        %v3164 = vshrl.u32 %v3163, 7
        %v3165 = vsub.s32 %v3162, %v3164
        %v3166 = vrot.slane %v3138, %v3165
        %v3167 = vcombine.low %v3145, %v3152
        %v3168 = vcombine.low %v3159, %v3166
        %v3170 = vunpack.c.l.s4 1966171168
        %v3171 = vunpack.c.0.s8 %v3170
        %v3172 = vlaneseq
        %v3173 = vshrl.u32 %v3172, 7
        %v3174 = vsub.s32 %v3171, %v3173
        %v3175 = vrot.slane %v3167, %v3174
        %v3177 = vunpack.c.l.s4 1966171168
        %v3178 = vunpack.c.0.s8 %v3177
        %v3179 = vlaneseq
        %v3180 = vshrl.u32 %v3179, 7
        %v3181 = vsub.s32 %v3178, %v3180
        %v3182 = vrot.slane %v3168, %v3181
        %v3183 = vcombine.low %v3175, %v3182
        %v3184 = vcombine.low %v1088, %v1092
        %v3185 = vcombine.low %v1096, %v1100
        %v3186 = vcombine.low %v1104, %v1108
        %v3187 = vcombine.low %v1112, %v1116
        %v3189 = vunpack.c.l.s4 1966171168
        %v3190 = vunpack.c.0.s8 %v3189
        %v3191 = vlaneseq
        %v3192 = vshrl.u32 %v3191, 7
        %v3193 = vsub.s32 %v3190, %v3192
        %v3194 = vrot.slane %v3184, %v3193
        %v3196 = vunpack.c.l.s4 1966171168
        %v3197 = vunpack.c.0.s8 %v3196
        %v3198 = vlaneseq
        %v3199 = vshrl.u32 %v3198, 7
        %v3200 = vsub.s32 %v3197, %v3199
        %v3201 = vrot.slane %v3185, %v3200
        %v3203 = vunpack.c.l.s4 1966171168
        %v3204 = vunpack.c.0.s8 %v3203
        %v3205 = vlaneseq
        %v3206 = vshrl.u32 %v3205, 7
        %v3207 = vsub.s32 %v3204, %v3206
        %v3208 = vrot.slane %v3186, %v3207
        %v3210 = vunpack.c.l.s4 1966171168
        %v3211 = vunpack.c.0.s8 %v3210
        %v3212 = vlaneseq
        %v3213 = vshrl.u32 %v3212, 7
        %v3214 = vsub.s32 %v3211, %v3213
        %v3215 = vrot.slane %v3187, %v3214
        %v3216 = vcombine.low %v3194, %v3201
        %v3217 = vcombine.low %v3208, %v3215
        %v3219 = vunpack.c.l.s4 1966171168
        %v3220 = vunpack.c.0.s8 %v3219
        %v3221 = vlaneseq
        %v3222 = vshrl.u32 %v3221, 7
        %v3223 = vsub.s32 %v3220, %v3222
        %v3224 = vrot.slane %v3216, %v3223
        %v3226 = vunpack.c.l.s4 1966171168
        %v3227 = vunpack.c.0.s8 %v3226
        %v3228 = vlaneseq
        %v3229 = vshrl.u32 %v3228, 7
        %v3230 = vsub.s32 %v3227, %v3229
        %v3231 = vrot.slane %v3217, %v3230
        %v3232 = vcombine.low %v3224, %v3231
        %v3233 = vcombine.low %v1120, %v1124
        %v3234 = vcombine.low %v1128, %v1132
        %v3235 = vcombine.low %v1136, %v1140
        %v3236 = vcombine.low %v1144, %v1148
        %v3238 = vunpack.c.l.s4 1966171168
        %v3239 = vunpack.c.0.s8 %v3238
        %v3240 = vlaneseq
        %v3241 = vshrl.u32 %v3240, 7
        %v3242 = vsub.s32 %v3239, %v3241
        %v3243 = vrot.slane %v3233, %v3242
        %v3245 = vunpack.c.l.s4 1966171168
        %v3246 = vunpack.c.0.s8 %v3245
        %v3247 = vlaneseq
        %v3248 = vshrl.u32 %v3247, 7
        %v3249 = vsub.s32 %v3246, %v3248
        %v3250 = vrot.slane %v3234, %v3249
        %v3252 = vunpack.c.l.s4 1966171168
        %v3253 = vunpack.c.0.s8 %v3252
        %v3254 = vlaneseq
        %v3255 = vshrl.u32 %v3254, 7
        %v3256 = vsub.s32 %v3253, %v3255
        %v3257 = vrot.slane %v3235, %v3256
        %v3259 = vunpack.c.l.s4 1966171168
        %v3260 = vunpack.c.0.s8 %v3259
        %v3261 = vlaneseq
        %v3262 = vshrl.u32 %v3261, 7
        %v3263 = vsub.s32 %v3260, %v3262
        %v3264 = vrot.slane %v3236, %v3263
        %v3265 = vcombine.low %v3243, %v3250
        %v3266 = vcombine.low %v3257, %v3264
        %v3268 = vunpack.c.l.s4 1966171168
        %v3269 = vunpack.c.0.s8 %v3268
        %v3270 = vlaneseq
        %v3271 = vshrl.u32 %v3270, 7
        %v3272 = vsub.s32 %v3269, %v3271
        %v3273 = vrot.slane %v3265, %v3272
        %v3275 = vunpack.c.l.s4 1966171168
        %v3276 = vunpack.c.0.s8 %v3275
        %v3277 = vlaneseq
        %v3278 = vshrl.u32 %v3277, 7
        %v3279 = vsub.s32 %v3276, %v3278
        %v3280 = vrot.slane %v3266, %v3279
        %v3281 = vcombine.low %v3273, %v3280
        %v3282 = vcombine.low %v1152, %v1156
        %v3283 = vcombine.low %v1160, %v1164
        %v3284 = vcombine.low %v1168, %v1172
        %v3285 = vcombine.low %v1176, %v1180
        %v3287 = vunpack.c.l.s4 1966171168
        %v3288 = vunpack.c.0.s8 %v3287
        %v3289 = vlaneseq
        %v3290 = vshrl.u32 %v3289, 7
        %v3291 = vsub.s32 %v3288, %v3290
        %v3292 = vrot.slane %v3282, %v3291
        %v3294 = vunpack.c.l.s4 1966171168
        %v3295 = vunpack.c.0.s8 %v3294
        %v3296 = vlaneseq
        %v3297 = vshrl.u32 %v3296, 7
        %v3298 = vsub.s32 %v3295, %v3297
        %v3299 = vrot.slane %v3283, %v3298
        %v3301 = vunpack.c.l.s4 1966171168
        %v3302 = vunpack.c.0.s8 %v3301
        %v3303 = vlaneseq
        %v3304 = vshrl.u32 %v3303, 7
        %v3305 = vsub.s32 %v3302, %v3304
        %v3306 = vrot.slane %v3284, %v3305
        %v3308 = vunpack.c.l.s4 1966171168
        %v3309 = vunpack.c.0.s8 %v3308
        %v3310 = vlaneseq
        %v3311 = vshrl.u32 %v3310, 7
        %v3312 = vsub.s32 %v3309, %v3311
        %v3313 = vrot.slane %v3285, %v3312
        %v3314 = vcombine.low %v3292, %v3299
        %v3315 = vcombine.low %v3306, %v3313
        %v3317 = vunpack.c.l.s4 1966171168
        %v3318 = vunpack.c.0.s8 %v3317
        %v3319 = vlaneseq
        %v3320 = vshrl.u32 %v3319, 7
        %v3321 = vsub.s32 %v3318, %v3320
        %v3322 = vrot.slane %v3314, %v3321
        %v3324 = vunpack.c.l.s4 1966171168
        %v3325 = vunpack.c.0.s8 %v3324
        %v3326 = vlaneseq
        %v3327 = vshrl.u32 %v3326, 7
        %v3328 = vsub.s32 %v3325, %v3327
        %v3329 = vrot.slane %v3315, %v3328
        %v3330 = vcombine.low %v3322, %v3329
        %v3331 = vcombine.low %v1184, %v1188
        %v3332 = vcombine.low %v1192, %v1196
        %v3333 = vcombine.low %v1200, %v1204
        %v3334 = vcombine.low %v1208, %v1212
        %v3336 = vunpack.c.l.s4 1966171168
        %v3337 = vunpack.c.0.s8 %v3336
        %v3338 = vlaneseq
        %v3339 = vshrl.u32 %v3338, 7
        %v3340 = vsub.s32 %v3337, %v3339
        %v3341 = vrot.slane %v3331, %v3340
        %v3343 = vunpack.c.l.s4 1966171168
        %v3344 = vunpack.c.0.s8 %v3343
        %v3345 = vlaneseq
        %v3346 = vshrl.u32 %v3345, 7
        %v3347 = vsub.s32 %v3344, %v3346
        %v3348 = vrot.slane %v3332, %v3347
        %v3350 = vunpack.c.l.s4 1966171168
        %v3351 = vunpack.c.0.s8 %v3350
        %v3352 = vlaneseq
        %v3353 = vshrl.u32 %v3352, 7
        %v3354 = vsub.s32 %v3351, %v3353
        %v3355 = vrot.slane %v3333, %v3354
        %v3357 = vunpack.c.l.s4 1966171168
        %v3358 = vunpack.c.0.s8 %v3357
        %v3359 = vlaneseq
        %v3360 = vshrl.u32 %v3359, 7
        %v3361 = vsub.s32 %v3358, %v3360
        %v3362 = vrot.slane %v3334, %v3361
        %v3363 = vcombine.low %v3341, %v3348
        %v3364 = vcombine.low %v3355, %v3362
        %v3366 = vunpack.c.l.s4 1966171168
        %v3367 = vunpack.c.0.s8 %v3366
        %v3368 = vlaneseq
        %v3369 = vshrl.u32 %v3368, 7
        %v3370 = vsub.s32 %v3367, %v3369
        %v3371 = vrot.slane %v3363, %v3370
        %v3373 = vunpack.c.l.s4 1966171168
        %v3374 = vunpack.c.0.s8 %v3373
        %v3375 = vlaneseq
        %v3376 = vshrl.u32 %v3375, 7
        %v3377 = vsub.s32 %v3374, %v3376
        %v3378 = vrot.slane %v3364, %v3377
        %v3379 = vcombine.low %v3371, %v3378
        %v3380 = vcombine.low %v1216, %v1220
        %v3381 = vcombine.low %v1224, %v1228
        %v3382 = vcombine.low %v1232, %v1236
        %v3383 = vcombine.low %v1240, %v1244
        %v3385 = vunpack.c.l.s4 1966171168
        %v3386 = vunpack.c.0.s8 %v3385
        %v3387 = vlaneseq
        %v3388 = vshrl.u32 %v3387, 7
        %v3389 = vsub.s32 %v3386, %v3388
        %v3390 = vrot.slane %v3380, %v3389
        %v3392 = vunpack.c.l.s4 1966171168
        %v3393 = vunpack.c.0.s8 %v3392
        %v3394 = vlaneseq
        %v3395 = vshrl.u32 %v3394, 7
        %v3396 = vsub.s32 %v3393, %v3395
        %v3397 = vrot.slane %v3381, %v3396
        %v3399 = vunpack.c.l.s4 1966171168
        %v3400 = vunpack.c.0.s8 %v3399
        %v3401 = vlaneseq
        %v3402 = vshrl.u32 %v3401, 7
        %v3403 = vsub.s32 %v3400, %v3402
        %v3404 = vrot.slane %v3382, %v3403
        %v3406 = vunpack.c.l.s4 1966171168
        %v3407 = vunpack.c.0.s8 %v3406
        %v3408 = vlaneseq
        %v3409 = vshrl.u32 %v3408, 7
        %v3410 = vsub.s32 %v3407, %v3409
        %v3411 = vrot.slane %v3383, %v3410
        %v3412 = vcombine.low %v3390, %v3397
        %v3413 = vcombine.low %v3404, %v3411
        %v3415 = vunpack.c.l.s4 1966171168
        %v3416 = vunpack.c.0.s8 %v3415
        %v3417 = vlaneseq
        %v3418 = vshrl.u32 %v3417, 7
        %v3419 = vsub.s32 %v3416, %v3418
        %v3420 = vrot.slane %v3412, %v3419
        %v3422 = vunpack.c.l.s4 1966171168
        %v3423 = vunpack.c.0.s8 %v3422
        %v3424 = vlaneseq
        %v3425 = vshrl.u32 %v3424, 7
        %v3426 = vsub.s32 %v3423, %v3425
        %v3427 = vrot.slane %v3413, %v3426
        %v3428 = vcombine.low %v3420, %v3427
        %v3429 = vcombine.low %v1248, %v1252
        %v3430 = vcombine.low %v1256, %v1260
        %v3431 = vcombine.low %v1264, %v1268
        %v3432 = vcombine.low %v1272, %v1276
        %v3434 = vunpack.c.l.s4 1966171168
        %v3435 = vunpack.c.0.s8 %v3434
        %v3436 = vlaneseq
        %v3437 = vshrl.u32 %v3436, 7
        %v3438 = vsub.s32 %v3435, %v3437
        %v3439 = vrot.slane %v3429, %v3438
        %v3441 = vunpack.c.l.s4 1966171168
        %v3442 = vunpack.c.0.s8 %v3441
        %v3443 = vlaneseq
        %v3444 = vshrl.u32 %v3443, 7
        %v3445 = vsub.s32 %v3442, %v3444
        %v3446 = vrot.slane %v3430, %v3445
        %v3448 = vunpack.c.l.s4 1966171168
        %v3449 = vunpack.c.0.s8 %v3448
        %v3450 = vlaneseq
        %v3451 = vshrl.u32 %v3450, 7
        %v3452 = vsub.s32 %v3449, %v3451
        %v3453 = vrot.slane %v3431, %v3452
        %v3455 = vunpack.c.l.s4 1966171168
        %v3456 = vunpack.c.0.s8 %v3455
        %v3457 = vlaneseq
        %v3458 = vshrl.u32 %v3457, 7
        %v3459 = vsub.s32 %v3456, %v3458
        %v3460 = vrot.slane %v3432, %v3459
        %v3461 = vcombine.low %v3439, %v3446
        %v3462 = vcombine.low %v3453, %v3460
        %v3464 = vunpack.c.l.s4 1966171168
        %v3465 = vunpack.c.0.s8 %v3464
        %v3466 = vlaneseq
        %v3467 = vshrl.u32 %v3466, 7
        %v3468 = vsub.s32 %v3465, %v3467
        %v3469 = vrot.slane %v3461, %v3468
        %v3471 = vunpack.c.l.s4 1966171168
        %v3472 = vunpack.c.0.s8 %v3471
        %v3473 = vlaneseq
        %v3474 = vshrl.u32 %v3473, 7
        %v3475 = vsub.s32 %v3472, %v3474
        %v3476 = vrot.slane %v3462, %v3475
        %v3477 = vcombine.low %v3469, %v3476
        %v3478 = vcombine.low %v1280, %v1284
        %v3479 = vcombine.low %v1288, %v1292
        %v3480 = vcombine.low %v1296, %v1300
        %v3481 = vcombine.low %v1304, %v1308
        %v3483 = vunpack.c.l.s4 1966171168
        %v3484 = vunpack.c.0.s8 %v3483
        %v3485 = vlaneseq
        %v3486 = vshrl.u32 %v3485, 7
        %v3487 = vsub.s32 %v3484, %v3486
        %v3488 = vrot.slane %v3478, %v3487
        %v3490 = vunpack.c.l.s4 1966171168
        %v3491 = vunpack.c.0.s8 %v3490
        %v3492 = vlaneseq
        %v3493 = vshrl.u32 %v3492, 7
        %v3494 = vsub.s32 %v3491, %v3493
        %v3495 = vrot.slane %v3479, %v3494
        %v3497 = vunpack.c.l.s4 1966171168
        %v3498 = vunpack.c.0.s8 %v3497
        %v3499 = vlaneseq
        %v3500 = vshrl.u32 %v3499, 7
        %v3501 = vsub.s32 %v3498, %v3500
        %v3502 = vrot.slane %v3480, %v3501
        %v3504 = vunpack.c.l.s4 1966171168
        %v3505 = vunpack.c.0.s8 %v3504
        %v3506 = vlaneseq
        %v3507 = vshrl.u32 %v3506, 7
        %v3508 = vsub.s32 %v3505, %v3507
        %v3509 = vrot.slane %v3481, %v3508
        %v3510 = vcombine.low %v3488, %v3495
        %v3511 = vcombine.low %v3502, %v3509
        %v3513 = vunpack.c.l.s4 1966171168
        %v3514 = vunpack.c.0.s8 %v3513
        %v3515 = vlaneseq
        %v3516 = vshrl.u32 %v3515, 7
        %v3517 = vsub.s32 %v3514, %v3516
        %v3518 = vrot.slane %v3510, %v3517
        %v3520 = vunpack.c.l.s4 1966171168
        %v3521 = vunpack.c.0.s8 %v3520
        %v3522 = vlaneseq
        %v3523 = vshrl.u32 %v3522, 7
        %v3524 = vsub.s32 %v3521, %v3523
        %v3525 = vrot.slane %v3511, %v3524
        %v3526 = vcombine.low %v3518, %v3525
        %v3527 = vcombine.low %v1312, %v1316
        %v3528 = vcombine.low %v1320, %v1324
        %v3529 = vcombine.low %v1328, %v1332
        %v3530 = vcombine.low %v1336, %v1340
        %v3532 = vunpack.c.l.s4 1966171168
        %v3533 = vunpack.c.0.s8 %v3532
        %v3534 = vlaneseq
        %v3535 = vshrl.u32 %v3534, 7
        %v3536 = vsub.s32 %v3533, %v3535
        %v3537 = vrot.slane %v3527, %v3536
        %v3539 = vunpack.c.l.s4 1966171168
        %v3540 = vunpack.c.0.s8 %v3539
        %v3541 = vlaneseq
        %v3542 = vshrl.u32 %v3541, 7
        %v3543 = vsub.s32 %v3540, %v3542
        %v3544 = vrot.slane %v3528, %v3543
        %v3546 = vunpack.c.l.s4 1966171168
        %v3547 = vunpack.c.0.s8 %v3546
        %v3548 = vlaneseq
        %v3549 = vshrl.u32 %v3548, 7
        %v3550 = vsub.s32 %v3547, %v3549
        %v3551 = vrot.slane %v3529, %v3550
        %v3553 = vunpack.c.l.s4 1966171168
        %v3554 = vunpack.c.0.s8 %v3553
        %v3555 = vlaneseq
        %v3556 = vshrl.u32 %v3555, 7
        %v3557 = vsub.s32 %v3554, %v3556
        %v3558 = vrot.slane %v3530, %v3557
        %v3559 = vcombine.low %v3537, %v3544
        %v3560 = vcombine.low %v3551, %v3558
        %v3562 = vunpack.c.l.s4 1966171168
        %v3563 = vunpack.c.0.s8 %v3562
        %v3564 = vlaneseq
        %v3565 = vshrl.u32 %v3564, 7
        %v3566 = vsub.s32 %v3563, %v3565
        %v3567 = vrot.slane %v3559, %v3566
        %v3569 = vunpack.c.l.s4 1966171168
        %v3570 = vunpack.c.0.s8 %v3569
        %v3571 = vlaneseq
        %v3572 = vshrl.u32 %v3571, 7
        %v3573 = vsub.s32 %v3570, %v3572
        %v3574 = vrot.slane %v3560, %v3573
        %v3575 = vcombine.low %v3567, %v3574
        %v3576 = vcombine.low %v1344, %v1348
        %v3577 = vcombine.low %v1352, %v1356
        %v3578 = vcombine.low %v1360, %v1364
        %v3579 = vcombine.low %v1368, %v1372
        %v3581 = vunpack.c.l.s4 1966171168
        %v3582 = vunpack.c.0.s8 %v3581
        %v3583 = vlaneseq
        %v3584 = vshrl.u32 %v3583, 7
        %v3585 = vsub.s32 %v3582, %v3584
        %v3586 = vrot.slane %v3576, %v3585
        %v3588 = vunpack.c.l.s4 1966171168
        %v3589 = vunpack.c.0.s8 %v3588
        %v3590 = vlaneseq
        %v3591 = vshrl.u32 %v3590, 7
        %v3592 = vsub.s32 %v3589, %v3591
        %v3593 = vrot.slane %v3577, %v3592
        %v3595 = vunpack.c.l.s4 1966171168
        %v3596 = vunpack.c.0.s8 %v3595
        %v3597 = vlaneseq
        %v3598 = vshrl.u32 %v3597, 7
        %v3599 = vsub.s32 %v3596, %v3598
        %v3600 = vrot.slane %v3578, %v3599
        %v3602 = vunpack.c.l.s4 1966171168
        %v3603 = vunpack.c.0.s8 %v3602
        %v3604 = vlaneseq
        %v3605 = vshrl.u32 %v3604, 7
        %v3606 = vsub.s32 %v3603, %v3605
        %v3607 = vrot.slane %v3579, %v3606
        %v3608 = vcombine.low %v3586, %v3593
        %v3609 = vcombine.low %v3600, %v3607
        %v3611 = vunpack.c.l.s4 1966171168
        %v3612 = vunpack.c.0.s8 %v3611
        %v3613 = vlaneseq
        %v3614 = vshrl.u32 %v3613, 7
        %v3615 = vsub.s32 %v3612, %v3614
        %v3616 = vrot.slane %v3608, %v3615
        %v3618 = vunpack.c.l.s4 1966171168
        %v3619 = vunpack.c.0.s8 %v3618
        %v3620 = vlaneseq
        %v3621 = vshrl.u32 %v3620, 7
        %v3622 = vsub.s32 %v3619, %v3621
        %v3623 = vrot.slane %v3609, %v3622
        %v3624 = vcombine.low %v3616, %v3623
        %v3625 = vcombine.low %v1376, %v1380
        %v3626 = vcombine.low %v1384, %v1388
        %v3627 = vcombine.low %v1392, %v1396
        %v3628 = vcombine.low %v1400, %v1404
        %v3630 = vunpack.c.l.s4 1966171168
        %v3631 = vunpack.c.0.s8 %v3630
        %v3632 = vlaneseq
        %v3633 = vshrl.u32 %v3632, 7
        %v3634 = vsub.s32 %v3631, %v3633
        %v3635 = vrot.slane %v3625, %v3634
        %v3637 = vunpack.c.l.s4 1966171168
        %v3638 = vunpack.c.0.s8 %v3637
        %v3639 = vlaneseq
        %v3640 = vshrl.u32 %v3639, 7
        %v3641 = vsub.s32 %v3638, %v3640
        %v3642 = vrot.slane %v3626, %v3641
        %v3644 = vunpack.c.l.s4 1966171168
        %v3645 = vunpack.c.0.s8 %v3644
        %v3646 = vlaneseq
        %v3647 = vshrl.u32 %v3646, 7
        %v3648 = vsub.s32 %v3645, %v3647
        %v3649 = vrot.slane %v3627, %v3648
        %v3651 = vunpack.c.l.s4 1966171168
        %v3652 = vunpack.c.0.s8 %v3651
        %v3653 = vlaneseq
        %v3654 = vshrl.u32 %v3653, 7
        %v3655 = vsub.s32 %v3652, %v3654
        %v3656 = vrot.slane %v3628, %v3655
        %v3657 = vcombine.low %v3635, %v3642
        %v3658 = vcombine.low %v3649, %v3656
        %v3660 = vunpack.c.l.s4 1966171168
        %v3661 = vunpack.c.0.s8 %v3660
        %v3662 = vlaneseq
        %v3663 = vshrl.u32 %v3662, 7
        %v3664 = vsub.s32 %v3661, %v3663
        %v3665 = vrot.slane %v3657, %v3664
        %v3667 = vunpack.c.l.s4 1966171168
        %v3668 = vunpack.c.0.s8 %v3667
        %v3669 = vlaneseq
        %v3670 = vshrl.u32 %v3669, 7
        %v3671 = vsub.s32 %v3668, %v3670
        %v3672 = vrot.slane %v3658, %v3671
        %v3673 = vcombine.low %v3665, %v3672
        %v3674 = vcombine.low %v1408, %v1412
        %v3675 = vcombine.low %v1416, %v1420
        %v3676 = vcombine.low %v1424, %v1428
        %v3677 = vcombine.low %v1432, %v1436
        %v3679 = vunpack.c.l.s4 1966171168
        %v3680 = vunpack.c.0.s8 %v3679
        %v3681 = vlaneseq
        %v3682 = vshrl.u32 %v3681, 7
        %v3683 = vsub.s32 %v3680, %v3682
        %v3684 = vrot.slane %v3674, %v3683
        %v3686 = vunpack.c.l.s4 1966171168
        %v3687 = vunpack.c.0.s8 %v3686
        %v3688 = vlaneseq
        %v3689 = vshrl.u32 %v3688, 7
        %v3690 = vsub.s32 %v3687, %v3689
        %v3691 = vrot.slane %v3675, %v3690
        %v3693 = vunpack.c.l.s4 1966171168
        %v3694 = vunpack.c.0.s8 %v3693
        %v3695 = vlaneseq
        %v3696 = vshrl.u32 %v3695, 7
        %v3697 = vsub.s32 %v3694, %v3696
        %v3698 = vrot.slane %v3676, %v3697
        %v3700 = vunpack.c.l.s4 1966171168
        %v3701 = vunpack.c.0.s8 %v3700
        %v3702 = vlaneseq
        %v3703 = vshrl.u32 %v3702, 7
        %v3704 = vsub.s32 %v3701, %v3703
        %v3705 = vrot.slane %v3677, %v3704
        %v3706 = vcombine.low %v3684, %v3691
        %v3707 = vcombine.low %v3698, %v3705
        %v3709 = vunpack.c.l.s4 1966171168
        %v3710 = vunpack.c.0.s8 %v3709
        %v3711 = vlaneseq
        %v3712 = vshrl.u32 %v3711, 7
        %v3713 = vsub.s32 %v3710, %v3712
        %v3714 = vrot.slane %v3706, %v3713
        %v3716 = vunpack.c.l.s4 1966171168
        %v3717 = vunpack.c.0.s8 %v3716
        %v3718 = vlaneseq
        %v3719 = vshrl.u32 %v3718, 7
        %v3720 = vsub.s32 %v3717, %v3719
        %v3721 = vrot.slane %v3707, %v3720
        %v3722 = vcombine.low %v3714, %v3721
        %v3723 = vcombine.low %v1440, %v1444
        %v3724 = vcombine.low %v1448, %v1452
        %v3725 = vcombine.low %v1456, %v1460
        %v3726 = vcombine.low %v1464, %v1468
        %v3728 = vunpack.c.l.s4 1966171168
        %v3729 = vunpack.c.0.s8 %v3728
        %v3730 = vlaneseq
        %v3731 = vshrl.u32 %v3730, 7
        %v3732 = vsub.s32 %v3729, %v3731
        %v3733 = vrot.slane %v3723, %v3732
        %v3735 = vunpack.c.l.s4 1966171168
        %v3736 = vunpack.c.0.s8 %v3735
        %v3737 = vlaneseq
        %v3738 = vshrl.u32 %v3737, 7
        %v3739 = vsub.s32 %v3736, %v3738
        %v3740 = vrot.slane %v3724, %v3739
        %v3742 = vunpack.c.l.s4 1966171168
        %v3743 = vunpack.c.0.s8 %v3742
        %v3744 = vlaneseq
        %v3745 = vshrl.u32 %v3744, 7
        %v3746 = vsub.s32 %v3743, %v3745
        %v3747 = vrot.slane %v3725, %v3746
        %v3749 = vunpack.c.l.s4 1966171168
        %v3750 = vunpack.c.0.s8 %v3749
        %v3751 = vlaneseq
        %v3752 = vshrl.u32 %v3751, 7
        %v3753 = vsub.s32 %v3750, %v3752
        %v3754 = vrot.slane %v3726, %v3753
        %v3755 = vcombine.low %v3733, %v3740
        %v3756 = vcombine.low %v3747, %v3754
        %v3758 = vunpack.c.l.s4 1966171168
        %v3759 = vunpack.c.0.s8 %v3758
        %v3760 = vlaneseq
        %v3761 = vshrl.u32 %v3760, 7
        %v3762 = vsub.s32 %v3759, %v3761
        %v3763 = vrot.slane %v3755, %v3762
        %v3765 = vunpack.c.l.s4 1966171168
        %v3766 = vunpack.c.0.s8 %v3765
        %v3767 = vlaneseq
        %v3768 = vshrl.u32 %v3767, 7
        %v3769 = vsub.s32 %v3766, %v3768
        %v3770 = vrot.slane %v3756, %v3769
        %v3771 = vcombine.low %v3763, %v3770
        %v3772 = vcombine.low %v1472, %v1476
        %v3773 = vcombine.low %v1480, %v1484
        %v3774 = vcombine.low %v1488, %v1492
        %v3775 = vcombine.low %v1496, %v1500
        %v3777 = vunpack.c.l.s4 1966171168
        %v3778 = vunpack.c.0.s8 %v3777
        %v3779 = vlaneseq
        %v3780 = vshrl.u32 %v3779, 7
        %v3781 = vsub.s32 %v3778, %v3780
        %v3782 = vrot.slane %v3772, %v3781
        %v3784 = vunpack.c.l.s4 1966171168
        %v3785 = vunpack.c.0.s8 %v3784
        %v3786 = vlaneseq
        %v3787 = vshrl.u32 %v3786, 7
        %v3788 = vsub.s32 %v3785, %v3787
        %v3789 = vrot.slane %v3773, %v3788
        %v3791 = vunpack.c.l.s4 1966171168
        %v3792 = vunpack.c.0.s8 %v3791
        %v3793 = vlaneseq
        %v3794 = vshrl.u32 %v3793, 7
        %v3795 = vsub.s32 %v3792, %v3794
        %v3796 = vrot.slane %v3774, %v3795
        %v3798 = vunpack.c.l.s4 1966171168
        %v3799 = vunpack.c.0.s8 %v3798
        %v3800 = vlaneseq
        %v3801 = vshrl.u32 %v3800, 7
        %v3802 = vsub.s32 %v3799, %v3801
        %v3803 = vrot.slane %v3775, %v3802
        %v3804 = vcombine.low %v3782, %v3789
        %v3805 = vcombine.low %v3796, %v3803
        %v3807 = vunpack.c.l.s4 1966171168
        %v3808 = vunpack.c.0.s8 %v3807
        %v3809 = vlaneseq
        %v3810 = vshrl.u32 %v3809, 7
        %v3811 = vsub.s32 %v3808, %v3810
        %v3812 = vrot.slane %v3804, %v3811
        %v3814 = vunpack.c.l.s4 1966171168
        %v3815 = vunpack.c.0.s8 %v3814
        %v3816 = vlaneseq
        %v3817 = vshrl.u32 %v3816, 7
        %v3818 = vsub.s32 %v3815, %v3817
        %v3819 = vrot.slane %v3805, %v3818
        %v3820 = vcombine.low %v3812, %v3819
        %v3821 = vcombine.low %v1504, %v1508
        %v3822 = vcombine.low %v1512, %v1516
        %v3823 = vcombine.low %v1520, %v1524
        %v3824 = vcombine.low %v1528, %v1532
        %v3826 = vunpack.c.l.s4 1966171168
        %v3827 = vunpack.c.0.s8 %v3826
        %v3828 = vlaneseq
        %v3829 = vshrl.u32 %v3828, 7
        %v3830 = vsub.s32 %v3827, %v3829
        %v3831 = vrot.slane %v3821, %v3830
        %v3833 = vunpack.c.l.s4 1966171168
        %v3834 = vunpack.c.0.s8 %v3833
        %v3835 = vlaneseq
        %v3836 = vshrl.u32 %v3835, 7
        %v3837 = vsub.s32 %v3834, %v3836
        %v3838 = vrot.slane %v3822, %v3837
        %v3840 = vunpack.c.l.s4 1966171168
        %v3841 = vunpack.c.0.s8 %v3840
        %v3842 = vlaneseq
        %v3843 = vshrl.u32 %v3842, 7
        %v3844 = vsub.s32 %v3841, %v3843
        %v3845 = vrot.slane %v3823, %v3844
        %v3847 = vunpack.c.l.s4 1966171168
        %v3848 = vunpack.c.0.s8 %v3847
        %v3849 = vlaneseq
        %v3850 = vshrl.u32 %v3849, 7
        %v3851 = vsub.s32 %v3848, %v3850
        %v3852 = vrot.slane %v3824, %v3851
        %v3853 = vcombine.low %v3831, %v3838
        %v3854 = vcombine.low %v3845, %v3852
        %v3856 = vunpack.c.l.s4 1966171168
        %v3857 = vunpack.c.0.s8 %v3856
        %v3858 = vlaneseq
        %v3859 = vshrl.u32 %v3858, 7
        %v3860 = vsub.s32 %v3857, %v3859
        %v3861 = vrot.slane %v3853, %v3860
        %v3863 = vunpack.c.l.s4 1966171168
        %v3864 = vunpack.c.0.s8 %v3863
        %v3865 = vlaneseq
        %v3866 = vshrl.u32 %v3865, 7
        %v3867 = vsub.s32 %v3864, %v3866
        %v3868 = vrot.slane %v3854, %v3867
        %v3869 = vcombine.low %v3861, %v3868
        %v3870 = vcombine.low %v1536, %v1540
        %v3871 = vcombine.low %v1544, %v1548
        %v3872 = vcombine.low %v1552, %v1556
        %v3873 = vcombine.low %v1560, %v1564
        %v3875 = vunpack.c.l.s4 1966171168
        %v3876 = vunpack.c.0.s8 %v3875
        %v3877 = vlaneseq
        %v3878 = vshrl.u32 %v3877, 7
        %v3879 = vsub.s32 %v3876, %v3878
        %v3880 = vrot.slane %v3870, %v3879
        %v3882 = vunpack.c.l.s4 1966171168
        %v3883 = vunpack.c.0.s8 %v3882
        %v3884 = vlaneseq
        %v3885 = vshrl.u32 %v3884, 7
        %v3886 = vsub.s32 %v3883, %v3885
        %v3887 = vrot.slane %v3871, %v3886
        %v3889 = vunpack.c.l.s4 1966171168
        %v3890 = vunpack.c.0.s8 %v3889
        %v3891 = vlaneseq
        %v3892 = vshrl.u32 %v3891, 7
        %v3893 = vsub.s32 %v3890, %v3892
        %v3894 = vrot.slane %v3872, %v3893
        %v3896 = vunpack.c.l.s4 1966171168
        %v3897 = vunpack.c.0.s8 %v3896
        %v3898 = vlaneseq
        %v3899 = vshrl.u32 %v3898, 7
        %v3900 = vsub.s32 %v3897, %v3899
        %v3901 = vrot.slane %v3873, %v3900
        %v3902 = vcombine.low %v3880, %v3887
        %v3903 = vcombine.low %v3894, %v3901
        %v3905 = vunpack.c.l.s4 1966171168
        %v3906 = vunpack.c.0.s8 %v3905
        %v3907 = vlaneseq
        %v3908 = vshrl.u32 %v3907, 7
        %v3909 = vsub.s32 %v3906, %v3908
        %v3910 = vrot.slane %v3902, %v3909
        %v3912 = vunpack.c.l.s4 1966171168
        %v3913 = vunpack.c.0.s8 %v3912
        %v3914 = vlaneseq
        %v3915 = vshrl.u32 %v3914, 7
        %v3916 = vsub.s32 %v3913, %v3915
        %v3917 = vrot.slane %v3903, %v3916
        %v3918 = vcombine.low %v3910, %v3917
        %v3919 = vcombine.low %v1568, %v1572
        %v3920 = vcombine.low %v1576, %v1580
        %v3921 = vcombine.low %v1584, %v1588
        %v3922 = vcombine.low %v1592, %v1596
        %v3924 = vunpack.c.l.s4 1966171168
        %v3925 = vunpack.c.0.s8 %v3924
        %v3926 = vlaneseq
        %v3927 = vshrl.u32 %v3926, 7
        %v3928 = vsub.s32 %v3925, %v3927
        %v3929 = vrot.slane %v3919, %v3928
        %v3931 = vunpack.c.l.s4 1966171168
        %v3932 = vunpack.c.0.s8 %v3931
        %v3933 = vlaneseq
        %v3934 = vshrl.u32 %v3933, 7
        %v3935 = vsub.s32 %v3932, %v3934
        %v3936 = vrot.slane %v3920, %v3935
        %v3938 = vunpack.c.l.s4 1966171168
        %v3939 = vunpack.c.0.s8 %v3938
        %v3940 = vlaneseq
        %v3941 = vshrl.u32 %v3940, 7
        %v3942 = vsub.s32 %v3939, %v3941
        %v3943 = vrot.slane %v3921, %v3942
        %v3945 = vunpack.c.l.s4 1966171168
        %v3946 = vunpack.c.0.s8 %v3945
        %v3947 = vlaneseq
        %v3948 = vshrl.u32 %v3947, 7
        %v3949 = vsub.s32 %v3946, %v3948
        %v3950 = vrot.slane %v3922, %v3949
        %v3951 = vcombine.low %v3929, %v3936
        %v3952 = vcombine.low %v3943, %v3950
        %v3954 = vunpack.c.l.s4 1966171168
        %v3955 = vunpack.c.0.s8 %v3954
        %v3956 = vlaneseq
        %v3957 = vshrl.u32 %v3956, 7
        %v3958 = vsub.s32 %v3955, %v3957
        %v3959 = vrot.slane %v3951, %v3958
        %v3961 = vunpack.c.l.s4 1966171168
        %v3962 = vunpack.c.0.s8 %v3961
        %v3963 = vlaneseq
        %v3964 = vshrl.u32 %v3963, 7
        %v3965 = vsub.s32 %v3962, %v3964
        %v3966 = vrot.slane %v3952, %v3965
        %v3967 = vcombine.low %v3959, %v3966
        %v3968 = vcombine.low %v1600, %v1604
        %v3969 = vcombine.low %v1608, %v1612
        %v3970 = vcombine.low %v1616, %v1620
        %v3971 = vcombine.low %v1624, %v1628
        %v3973 = vunpack.c.l.s4 1966171168
        %v3974 = vunpack.c.0.s8 %v3973
        %v3975 = vlaneseq
        %v3976 = vshrl.u32 %v3975, 7
        %v3977 = vsub.s32 %v3974, %v3976
        %v3978 = vrot.slane %v3968, %v3977
        %v3980 = vunpack.c.l.s4 1966171168
        %v3981 = vunpack.c.0.s8 %v3980
        %v3982 = vlaneseq
        %v3983 = vshrl.u32 %v3982, 7
        %v3984 = vsub.s32 %v3981, %v3983
        %v3985 = vrot.slane %v3969, %v3984
        %v3987 = vunpack.c.l.s4 1966171168
        %v3988 = vunpack.c.0.s8 %v3987
        %v3989 = vlaneseq
        %v3990 = vshrl.u32 %v3989, 7
        %v3991 = vsub.s32 %v3988, %v3990
        %v3992 = vrot.slane %v3970, %v3991
        %v3994 = vunpack.c.l.s4 1966171168
        %v3995 = vunpack.c.0.s8 %v3994
        %v3996 = vlaneseq
        %v3997 = vshrl.u32 %v3996, 7
        %v3998 = vsub.s32 %v3995, %v3997
        %v3999 = vrot.slane %v3971, %v3998
        %v4000 = vcombine.low %v3978, %v3985
        %v4001 = vcombine.low %v3992, %v3999
        %v4003 = vunpack.c.l.s4 1966171168
        %v4004 = vunpack.c.0.s8 %v4003
        %v4005 = vlaneseq
        %v4006 = vshrl.u32 %v4005, 7
        %v4007 = vsub.s32 %v4004, %v4006
        %v4008 = vrot.slane %v4000, %v4007
        %v4010 = vunpack.c.l.s4 1966171168
        %v4011 = vunpack.c.0.s8 %v4010
        %v4012 = vlaneseq
        %v4013 = vshrl.u32 %v4012, 7
        %v4014 = vsub.s32 %v4011, %v4013
        %v4015 = vrot.slane %v4001, %v4014
        %v4016 = vcombine.low %v4008, %v4015
        %v4017 = vcombine.low %v1632, %v1636
        %v4018 = vcombine.low %v1640, %v1644
        %v4019 = vcombine.low %v1648, %v1652
        %v4020 = vcombine.low %v1656, %v1660
        %v4022 = vunpack.c.l.s4 1966171168
        %v4023 = vunpack.c.0.s8 %v4022
        %v4024 = vlaneseq
        %v4025 = vshrl.u32 %v4024, 7
        %v4026 = vsub.s32 %v4023, %v4025
        %v4027 = vrot.slane %v4017, %v4026
        %v4029 = vunpack.c.l.s4 1966171168
        %v4030 = vunpack.c.0.s8 %v4029
        %v4031 = vlaneseq
        %v4032 = vshrl.u32 %v4031, 7
        %v4033 = vsub.s32 %v4030, %v4032
        %v4034 = vrot.slane %v4018, %v4033
        %v4036 = vunpack.c.l.s4 1966171168
        %v4037 = vunpack.c.0.s8 %v4036
        %v4038 = vlaneseq
        %v4039 = vshrl.u32 %v4038, 7
        %v4040 = vsub.s32 %v4037, %v4039
        %v4041 = vrot.slane %v4019, %v4040
        %v4043 = vunpack.c.l.s4 1966171168
        %v4044 = vunpack.c.0.s8 %v4043
        %v4045 = vlaneseq
        %v4046 = vshrl.u32 %v4045, 7
        %v4047 = vsub.s32 %v4044, %v4046
        %v4048 = vrot.slane %v4020, %v4047
        %v4049 = vcombine.low %v4027, %v4034
        %v4050 = vcombine.low %v4041, %v4048
        %v4052 = vunpack.c.l.s4 1966171168
        %v4053 = vunpack.c.0.s8 %v4052
        %v4054 = vlaneseq
        %v4055 = vshrl.u32 %v4054, 7
        %v4056 = vsub.s32 %v4053, %v4055
        %v4057 = vrot.slane %v4049, %v4056
        %v4059 = vunpack.c.l.s4 1966171168
        %v4060 = vunpack.c.0.s8 %v4059
        %v4061 = vlaneseq
        %v4062 = vshrl.u32 %v4061, 7
        %v4063 = vsub.s32 %v4060, %v4062
        %v4064 = vrot.slane %v4050, %v4063
        %v4065 = vcombine.low %v4057, %v4064
        %v4066 = vcombine.low %v1664, %v1668
        %v4067 = vcombine.low %v1672, %v1676
        %v4068 = vcombine.low %v1680, %v1684
        %v4069 = vcombine.low %v1688, %v1692
        %v4071 = vunpack.c.l.s4 1966171168
        %v4072 = vunpack.c.0.s8 %v4071
        %v4073 = vlaneseq
        %v4074 = vshrl.u32 %v4073, 7
        %v4075 = vsub.s32 %v4072, %v4074
        %v4076 = vrot.slane %v4066, %v4075
        %v4078 = vunpack.c.l.s4 1966171168
        %v4079 = vunpack.c.0.s8 %v4078
        %v4080 = vlaneseq
        %v4081 = vshrl.u32 %v4080, 7
        %v4082 = vsub.s32 %v4079, %v4081
        %v4083 = vrot.slane %v4067, %v4082
        %v4085 = vunpack.c.l.s4 1966171168
        %v4086 = vunpack.c.0.s8 %v4085
        %v4087 = vlaneseq
        %v4088 = vshrl.u32 %v4087, 7
        %v4089 = vsub.s32 %v4086, %v4088
        %v4090 = vrot.slane %v4068, %v4089
        %v4092 = vunpack.c.l.s4 1966171168
        %v4093 = vunpack.c.0.s8 %v4092
        %v4094 = vlaneseq
        %v4095 = vshrl.u32 %v4094, 7
        %v4096 = vsub.s32 %v4093, %v4095
        %v4097 = vrot.slane %v4069, %v4096
        %v4098 = vcombine.low %v4076, %v4083
        %v4099 = vcombine.low %v4090, %v4097
        %v4101 = vunpack.c.l.s4 1966171168
        %v4102 = vunpack.c.0.s8 %v4101
        %v4103 = vlaneseq
        %v4104 = vshrl.u32 %v4103, 7
        %v4105 = vsub.s32 %v4102, %v4104
        %v4106 = vrot.slane %v4098, %v4105
        %v4108 = vunpack.c.l.s4 1966171168
        %v4109 = vunpack.c.0.s8 %v4108
        %v4110 = vlaneseq
        %v4111 = vshrl.u32 %v4110, 7
        %v4112 = vsub.s32 %v4109, %v4111
        %v4113 = vrot.slane %v4099, %v4112
        %v4114 = vcombine.low %v4106, %v4113
        %v4115 = vcombine.low %v1696, %v1700
        %v4116 = vcombine.low %v1704, %v1708
        %v4117 = vcombine.low %v1712, %v1716
        %v4118 = vcombine.low %v1720, %v1724
        %v4120 = vunpack.c.l.s4 1966171168
        %v4121 = vunpack.c.0.s8 %v4120
        %v4122 = vlaneseq
        %v4123 = vshrl.u32 %v4122, 7
        %v4124 = vsub.s32 %v4121, %v4123
        %v4125 = vrot.slane %v4115, %v4124
        %v4127 = vunpack.c.l.s4 1966171168
        %v4128 = vunpack.c.0.s8 %v4127
        %v4129 = vlaneseq
        %v4130 = vshrl.u32 %v4129, 7
        %v4131 = vsub.s32 %v4128, %v4130
        %v4132 = vrot.slane %v4116, %v4131
        %v4134 = vunpack.c.l.s4 1966171168
        %v4135 = vunpack.c.0.s8 %v4134
        %v4136 = vlaneseq
        %v4137 = vshrl.u32 %v4136, 7
        %v4138 = vsub.s32 %v4135, %v4137
        %v4139 = vrot.slane %v4117, %v4138
        %v4141 = vunpack.c.l.s4 1966171168
        %v4142 = vunpack.c.0.s8 %v4141
        %v4143 = vlaneseq
        %v4144 = vshrl.u32 %v4143, 7
        %v4145 = vsub.s32 %v4142, %v4144
        %v4146 = vrot.slane %v4118, %v4145
        %v4147 = vcombine.low %v4125, %v4132
        %v4148 = vcombine.low %v4139, %v4146
        %v4150 = vunpack.c.l.s4 1966171168
        %v4151 = vunpack.c.0.s8 %v4150
        %v4152 = vlaneseq
        %v4153 = vshrl.u32 %v4152, 7
        %v4154 = vsub.s32 %v4151, %v4153
        %v4155 = vrot.slane %v4147, %v4154
        %v4157 = vunpack.c.l.s4 1966171168
        %v4158 = vunpack.c.0.s8 %v4157
        %v4159 = vlaneseq
        %v4160 = vshrl.u32 %v4159, 7
        %v4161 = vsub.s32 %v4158, %v4160
        %v4162 = vrot.slane %v4148, %v4161
        %v4163 = vcombine.low %v4155, %v4162
        %v4164 = vcombine.low %v1728, %v1732
        %v4165 = vcombine.low %v1736, %v1740
        %v4166 = vcombine.low %v1744, %v1748
        %v4167 = vcombine.low %v1752, %v1756
        %v4169 = vunpack.c.l.s4 1966171168
        %v4170 = vunpack.c.0.s8 %v4169
        %v4171 = vlaneseq
        %v4172 = vshrl.u32 %v4171, 7
        %v4173 = vsub.s32 %v4170, %v4172
        %v4174 = vrot.slane %v4164, %v4173
        %v4176 = vunpack.c.l.s4 1966171168
        %v4177 = vunpack.c.0.s8 %v4176
        %v4178 = vlaneseq
        %v4179 = vshrl.u32 %v4178, 7
        %v4180 = vsub.s32 %v4177, %v4179
        %v4181 = vrot.slane %v4165, %v4180
        %v4183 = vunpack.c.l.s4 1966171168
        %v4184 = vunpack.c.0.s8 %v4183
        %v4185 = vlaneseq
        %v4186 = vshrl.u32 %v4185, 7
        %v4187 = vsub.s32 %v4184, %v4186
        %v4188 = vrot.slane %v4166, %v4187
        %v4190 = vunpack.c.l.s4 1966171168
        %v4191 = vunpack.c.0.s8 %v4190
        %v4192 = vlaneseq
        %v4193 = vshrl.u32 %v4192, 7
        %v4194 = vsub.s32 %v4191, %v4193
        %v4195 = vrot.slane %v4167, %v4194
        %v4196 = vcombine.low %v4174, %v4181
        %v4197 = vcombine.low %v4188, %v4195
        %v4199 = vunpack.c.l.s4 1966171168
        %v4200 = vunpack.c.0.s8 %v4199
        %v4201 = vlaneseq
        %v4202 = vshrl.u32 %v4201, 7
        %v4203 = vsub.s32 %v4200, %v4202
        %v4204 = vrot.slane %v4196, %v4203
        %v4206 = vunpack.c.l.s4 1966171168
        %v4207 = vunpack.c.0.s8 %v4206
        %v4208 = vlaneseq
        %v4209 = vshrl.u32 %v4208, 7
        %v4210 = vsub.s32 %v4207, %v4209
        %v4211 = vrot.slane %v4197, %v4210
        %v4212 = vcombine.low %v4204, %v4211
        %v4213 = vcombine.low %v1760, %v1764
        %v4214 = vcombine.low %v1768, %v1772
        %v4215 = vcombine.low %v1776, %v1780
        %v4216 = vcombine.low %v1784, %v1788
        %v4218 = vunpack.c.l.s4 1966171168
        %v4219 = vunpack.c.0.s8 %v4218
        %v4220 = vlaneseq
        %v4221 = vshrl.u32 %v4220, 7
        %v4222 = vsub.s32 %v4219, %v4221
        %v4223 = vrot.slane %v4213, %v4222
        %v4225 = vunpack.c.l.s4 1966171168
        %v4226 = vunpack.c.0.s8 %v4225
        %v4227 = vlaneseq
        %v4228 = vshrl.u32 %v4227, 7
        %v4229 = vsub.s32 %v4226, %v4228
        %v4230 = vrot.slane %v4214, %v4229
        %v4232 = vunpack.c.l.s4 1966171168
        %v4233 = vunpack.c.0.s8 %v4232
        %v4234 = vlaneseq
        %v4235 = vshrl.u32 %v4234, 7
        %v4236 = vsub.s32 %v4233, %v4235
        %v4237 = vrot.slane %v4215, %v4236
        %v4239 = vunpack.c.l.s4 1966171168
        %v4240 = vunpack.c.0.s8 %v4239
        %v4241 = vlaneseq
        %v4242 = vshrl.u32 %v4241, 7
        %v4243 = vsub.s32 %v4240, %v4242
        %v4244 = vrot.slane %v4216, %v4243
        %v4245 = vcombine.low %v4223, %v4230
        %v4246 = vcombine.low %v4237, %v4244
        %v4248 = vunpack.c.l.s4 1966171168
        %v4249 = vunpack.c.0.s8 %v4248
        %v4250 = vlaneseq
        %v4251 = vshrl.u32 %v4250, 7
        %v4252 = vsub.s32 %v4249, %v4251
        %v4253 = vrot.slane %v4245, %v4252
        %v4255 = vunpack.c.l.s4 1966171168
        %v4256 = vunpack.c.0.s8 %v4255
        %v4257 = vlaneseq
        %v4258 = vshrl.u32 %v4257, 7
        %v4259 = vsub.s32 %v4256, %v4258
        %v4260 = vrot.slane %v4246, %v4259
        %v4261 = vcombine.low %v4253, %v4260
        %v4262 = vcombine.low %v1792, %v1796
        %v4263 = vcombine.low %v1800, %v1804
        %v4264 = vcombine.low %v1808, %v1812
        %v4265 = vcombine.low %v1816, %v1820
        %v4267 = vunpack.c.l.s4 1966171168
        %v4268 = vunpack.c.0.s8 %v4267
        %v4269 = vlaneseq
        %v4270 = vshrl.u32 %v4269, 7
        %v4271 = vsub.s32 %v4268, %v4270
        %v4272 = vrot.slane %v4262, %v4271
        %v4274 = vunpack.c.l.s4 1966171168
        %v4275 = vunpack.c.0.s8 %v4274
        %v4276 = vlaneseq
        %v4277 = vshrl.u32 %v4276, 7
        %v4278 = vsub.s32 %v4275, %v4277
        %v4279 = vrot.slane %v4263, %v4278
        %v4281 = vunpack.c.l.s4 1966171168
        %v4282 = vunpack.c.0.s8 %v4281
        %v4283 = vlaneseq
        %v4284 = vshrl.u32 %v4283, 7
        %v4285 = vsub.s32 %v4282, %v4284
        %v4286 = vrot.slane %v4264, %v4285
        %v4288 = vunpack.c.l.s4 1966171168
        %v4289 = vunpack.c.0.s8 %v4288
        %v4290 = vlaneseq
        %v4291 = vshrl.u32 %v4290, 7
        %v4292 = vsub.s32 %v4289, %v4291
        %v4293 = vrot.slane %v4265, %v4292
        %v4294 = vcombine.low %v4272, %v4279
        %v4295 = vcombine.low %v4286, %v4293
        %v4297 = vunpack.c.l.s4 1966171168
        %v4298 = vunpack.c.0.s8 %v4297
        %v4299 = vlaneseq
        %v4300 = vshrl.u32 %v4299, 7
        %v4301 = vsub.s32 %v4298, %v4300
        %v4302 = vrot.slane %v4294, %v4301
        %v4304 = vunpack.c.l.s4 1966171168
        %v4305 = vunpack.c.0.s8 %v4304
        %v4306 = vlaneseq
        %v4307 = vshrl.u32 %v4306, 7
        %v4308 = vsub.s32 %v4305, %v4307
        %v4309 = vrot.slane %v4295, %v4308
        %v4310 = vcombine.low %v4302, %v4309
        %v4311 = vcombine.low %v1824, %v1828
        %v4312 = vcombine.low %v1832, %v1836
        %v4313 = vcombine.low %v1840, %v1844
        %v4314 = vcombine.low %v1848, %v1852
        %v4316 = vunpack.c.l.s4 1966171168
        %v4317 = vunpack.c.0.s8 %v4316
        %v4318 = vlaneseq
        %v4319 = vshrl.u32 %v4318, 7
        %v4320 = vsub.s32 %v4317, %v4319
        %v4321 = vrot.slane %v4311, %v4320
        %v4323 = vunpack.c.l.s4 1966171168
        %v4324 = vunpack.c.0.s8 %v4323
        %v4325 = vlaneseq
        %v4326 = vshrl.u32 %v4325, 7
        %v4327 = vsub.s32 %v4324, %v4326
        %v4328 = vrot.slane %v4312, %v4327
        %v4330 = vunpack.c.l.s4 1966171168
        %v4331 = vunpack.c.0.s8 %v4330
        %v4332 = vlaneseq
        %v4333 = vshrl.u32 %v4332, 7
        %v4334 = vsub.s32 %v4331, %v4333
        %v4335 = vrot.slane %v4313, %v4334
        %v4337 = vunpack.c.l.s4 1966171168
        %v4338 = vunpack.c.0.s8 %v4337
        %v4339 = vlaneseq
        %v4340 = vshrl.u32 %v4339, 7
        %v4341 = vsub.s32 %v4338, %v4340
        %v4342 = vrot.slane %v4314, %v4341
        %v4343 = vcombine.low %v4321, %v4328
        %v4344 = vcombine.low %v4335, %v4342
        %v4346 = vunpack.c.l.s4 1966171168
        %v4347 = vunpack.c.0.s8 %v4346
        %v4348 = vlaneseq
        %v4349 = vshrl.u32 %v4348, 7
        %v4350 = vsub.s32 %v4347, %v4349
        %v4351 = vrot.slane %v4343, %v4350
        %v4353 = vunpack.c.l.s4 1966171168
        %v4354 = vunpack.c.0.s8 %v4353
        %v4355 = vlaneseq
        %v4356 = vshrl.u32 %v4355, 7
        %v4357 = vsub.s32 %v4354, %v4356
        %v4358 = vrot.slane %v4344, %v4357
        %v4359 = vcombine.low %v4351, %v4358
        %v4360 = vcombine.low %v1856, %v1860
        %v4361 = vcombine.low %v1864, %v1868
        %v4362 = vcombine.low %v1872, %v1876
        %v4363 = vcombine.low %v1880, %v1884
        %v4365 = vunpack.c.l.s4 1966171168
        %v4366 = vunpack.c.0.s8 %v4365
        %v4367 = vlaneseq
        %v4368 = vshrl.u32 %v4367, 7
        %v4369 = vsub.s32 %v4366, %v4368
        %v4370 = vrot.slane %v4360, %v4369
        %v4372 = vunpack.c.l.s4 1966171168
        %v4373 = vunpack.c.0.s8 %v4372
        %v4374 = vlaneseq
        %v4375 = vshrl.u32 %v4374, 7
        %v4376 = vsub.s32 %v4373, %v4375
        %v4377 = vrot.slane %v4361, %v4376
        %v4379 = vunpack.c.l.s4 1966171168
        %v4380 = vunpack.c.0.s8 %v4379
        %v4381 = vlaneseq
        %v4382 = vshrl.u32 %v4381, 7
        %v4383 = vsub.s32 %v4380, %v4382
        %v4384 = vrot.slane %v4362, %v4383
        %v4386 = vunpack.c.l.s4 1966171168
        %v4387 = vunpack.c.0.s8 %v4386
        %v4388 = vlaneseq
        %v4389 = vshrl.u32 %v4388, 7
        %v4390 = vsub.s32 %v4387, %v4389
        %v4391 = vrot.slane %v4363, %v4390
        %v4392 = vcombine.low %v4370, %v4377
        %v4393 = vcombine.low %v4384, %v4391
        %v4395 = vunpack.c.l.s4 1966171168
        %v4396 = vunpack.c.0.s8 %v4395
        %v4397 = vlaneseq
        %v4398 = vshrl.u32 %v4397, 7
        %v4399 = vsub.s32 %v4396, %v4398
        %v4400 = vrot.slane %v4392, %v4399
        %v4402 = vunpack.c.l.s4 1966171168
        %v4403 = vunpack.c.0.s8 %v4402
        %v4404 = vlaneseq
        %v4405 = vshrl.u32 %v4404, 7
        %v4406 = vsub.s32 %v4403, %v4405
        %v4407 = vrot.slane %v4393, %v4406
        %v4408 = vcombine.low %v4400, %v4407
        %v4409 = vcombine.low %v1888, %v1892
        %v4410 = vcombine.low %v1896, %v1900
        %v4411 = vcombine.low %v1904, %v1908
        %v4412 = vcombine.low %v1912, %v1916
        %v4414 = vunpack.c.l.s4 1966171168
        %v4415 = vunpack.c.0.s8 %v4414
        %v4416 = vlaneseq
        %v4417 = vshrl.u32 %v4416, 7
        %v4418 = vsub.s32 %v4415, %v4417
        %v4419 = vrot.slane %v4409, %v4418
        %v4421 = vunpack.c.l.s4 1966171168
        %v4422 = vunpack.c.0.s8 %v4421
        %v4423 = vlaneseq
        %v4424 = vshrl.u32 %v4423, 7
        %v4425 = vsub.s32 %v4422, %v4424
        %v4426 = vrot.slane %v4410, %v4425
        %v4428 = vunpack.c.l.s4 1966171168
        %v4429 = vunpack.c.0.s8 %v4428
        %v4430 = vlaneseq
        %v4431 = vshrl.u32 %v4430, 7
        %v4432 = vsub.s32 %v4429, %v4431
        %v4433 = vrot.slane %v4411, %v4432
        %v4435 = vunpack.c.l.s4 1966171168
        %v4436 = vunpack.c.0.s8 %v4435
        %v4437 = vlaneseq
        %v4438 = vshrl.u32 %v4437, 7
        %v4439 = vsub.s32 %v4436, %v4438
        %v4440 = vrot.slane %v4412, %v4439
        %v4441 = vcombine.low %v4419, %v4426
        %v4442 = vcombine.low %v4433, %v4440
        %v4444 = vunpack.c.l.s4 1966171168
        %v4445 = vunpack.c.0.s8 %v4444
        %v4446 = vlaneseq
        %v4447 = vshrl.u32 %v4446, 7
        %v4448 = vsub.s32 %v4445, %v4447
        %v4449 = vrot.slane %v4441, %v4448
        %v4451 = vunpack.c.l.s4 1966171168
        %v4452 = vunpack.c.0.s8 %v4451
        %v4453 = vlaneseq
        %v4454 = vshrl.u32 %v4453, 7
        %v4455 = vsub.s32 %v4452, %v4454
        %v4456 = vrot.slane %v4442, %v4455
        %v4457 = vcombine.low %v4449, %v4456
        %v4458 = vcombine.low %v1920, %v1924
        %v4459 = vcombine.low %v1928, %v1932
        %v4460 = vcombine.low %v1936, %v1940
        %v4461 = vcombine.low %v1944, %v1948
        %v4463 = vunpack.c.l.s4 1966171168
        %v4464 = vunpack.c.0.s8 %v4463
        %v4465 = vlaneseq
        %v4466 = vshrl.u32 %v4465, 7
        %v4467 = vsub.s32 %v4464, %v4466
        %v4468 = vrot.slane %v4458, %v4467
        %v4470 = vunpack.c.l.s4 1966171168
        %v4471 = vunpack.c.0.s8 %v4470
        %v4472 = vlaneseq
        %v4473 = vshrl.u32 %v4472, 7
        %v4474 = vsub.s32 %v4471, %v4473
        %v4475 = vrot.slane %v4459, %v4474
        %v4477 = vunpack.c.l.s4 1966171168
        %v4478 = vunpack.c.0.s8 %v4477
        %v4479 = vlaneseq
        %v4480 = vshrl.u32 %v4479, 7
        %v4481 = vsub.s32 %v4478, %v4480
        %v4482 = vrot.slane %v4460, %v4481
        %v4484 = vunpack.c.l.s4 1966171168
        %v4485 = vunpack.c.0.s8 %v4484
        %v4486 = vlaneseq
        %v4487 = vshrl.u32 %v4486, 7
        %v4488 = vsub.s32 %v4485, %v4487
        %v4489 = vrot.slane %v4461, %v4488
        %v4490 = vcombine.low %v4468, %v4475
        %v4491 = vcombine.low %v4482, %v4489
        %v4493 = vunpack.c.l.s4 1966171168
        %v4494 = vunpack.c.0.s8 %v4493
        %v4495 = vlaneseq
        %v4496 = vshrl.u32 %v4495, 7
        %v4497 = vsub.s32 %v4494, %v4496
        %v4498 = vrot.slane %v4490, %v4497
        %v4500 = vunpack.c.l.s4 1966171168
        %v4501 = vunpack.c.0.s8 %v4500
        %v4502 = vlaneseq
        %v4503 = vshrl.u32 %v4502, 7
        %v4504 = vsub.s32 %v4501, %v4503
        %v4505 = vrot.slane %v4491, %v4504
        %v4506 = vcombine.low %v4498, %v4505
        %v4507 = vcombine.low %v1952, %v1956
        %v4508 = vcombine.low %v1960, %v1964
        %v4509 = vcombine.low %v1968, %v1972
        %v4510 = vcombine.low %v1976, %v1980
        %v4512 = vunpack.c.l.s4 1966171168
        %v4513 = vunpack.c.0.s8 %v4512
        %v4514 = vlaneseq
        %v4515 = vshrl.u32 %v4514, 7
        %v4516 = vsub.s32 %v4513, %v4515
        %v4517 = vrot.slane %v4507, %v4516
        %v4519 = vunpack.c.l.s4 1966171168
        %v4520 = vunpack.c.0.s8 %v4519
        %v4521 = vlaneseq
        %v4522 = vshrl.u32 %v4521, 7
        %v4523 = vsub.s32 %v4520, %v4522
        %v4524 = vrot.slane %v4508, %v4523
        %v4526 = vunpack.c.l.s4 1966171168
        %v4527 = vunpack.c.0.s8 %v4526
        %v4528 = vlaneseq
        %v4529 = vshrl.u32 %v4528, 7
        %v4530 = vsub.s32 %v4527, %v4529
        %v4531 = vrot.slane %v4509, %v4530
        %v4533 = vunpack.c.l.s4 1966171168
        %v4534 = vunpack.c.0.s8 %v4533
        %v4535 = vlaneseq
        %v4536 = vshrl.u32 %v4535, 7
        %v4537 = vsub.s32 %v4534, %v4536
        %v4538 = vrot.slane %v4510, %v4537
        %v4539 = vcombine.low %v4517, %v4524
        %v4540 = vcombine.low %v4531, %v4538
        %v4542 = vunpack.c.l.s4 1966171168
        %v4543 = vunpack.c.0.s8 %v4542
        %v4544 = vlaneseq
        %v4545 = vshrl.u32 %v4544, 7
        %v4546 = vsub.s32 %v4543, %v4545
        %v4547 = vrot.slane %v4539, %v4546
        %v4549 = vunpack.c.l.s4 1966171168
        %v4550 = vunpack.c.0.s8 %v4549
        %v4551 = vlaneseq
        %v4552 = vshrl.u32 %v4551, 7
        %v4553 = vsub.s32 %v4550, %v4552
        %v4554 = vrot.slane %v4540, %v4553
        %v4555 = vcombine.low %v4547, %v4554
        %v4556 = vcombine.low %v1984, %v1988
        %v4557 = vcombine.low %v1992, %v1996
        %v4558 = vcombine.low %v2000, %v2004
        %v4559 = vcombine.low %v2008, %v2012
        %v4561 = vunpack.c.l.s4 1966171168
        %v4562 = vunpack.c.0.s8 %v4561
        %v4563 = vlaneseq
        %v4564 = vshrl.u32 %v4563, 7
        %v4565 = vsub.s32 %v4562, %v4564
        %v4566 = vrot.slane %v4556, %v4565
        %v4568 = vunpack.c.l.s4 1966171168
        %v4569 = vunpack.c.0.s8 %v4568
        %v4570 = vlaneseq
        %v4571 = vshrl.u32 %v4570, 7
        %v4572 = vsub.s32 %v4569, %v4571
        %v4573 = vrot.slane %v4557, %v4572
        %v4575 = vunpack.c.l.s4 1966171168
        %v4576 = vunpack.c.0.s8 %v4575
        %v4577 = vlaneseq
        %v4578 = vshrl.u32 %v4577, 7
        %v4579 = vsub.s32 %v4576, %v4578
        %v4580 = vrot.slane %v4558, %v4579
        %v4582 = vunpack.c.l.s4 1966171168
        %v4583 = vunpack.c.0.s8 %v4582
        %v4584 = vlaneseq
        %v4585 = vshrl.u32 %v4584, 7
        %v4586 = vsub.s32 %v4583, %v4585
        %v4587 = vrot.slane %v4559, %v4586
        %v4588 = vcombine.low %v4566, %v4573
        %v4589 = vcombine.low %v4580, %v4587
        %v4591 = vunpack.c.l.s4 1966171168
        %v4592 = vunpack.c.0.s8 %v4591
        %v4593 = vlaneseq
        %v4594 = vshrl.u32 %v4593, 7
        %v4595 = vsub.s32 %v4592, %v4594
        %v4596 = vrot.slane %v4588, %v4595
        %v4598 = vunpack.c.l.s4 1966171168
        %v4599 = vunpack.c.0.s8 %v4598
        %v4600 = vlaneseq
        %v4601 = vshrl.u32 %v4600, 7
        %v4602 = vsub.s32 %v4599, %v4601
        %v4603 = vrot.slane %v4589, %v4602
        %v4604 = vcombine.low %v4596, %v4603
        %v4605 = vcombine.low %v2016, %v2020
        %v4606 = vcombine.low %v2024, %v2028
        %v4607 = vcombine.low %v2032, %v2036
        %v4608 = vcombine.low %v2040, %v2044
        %v4610 = vunpack.c.l.s4 1966171168
        %v4611 = vunpack.c.0.s8 %v4610
        %v4612 = vlaneseq
        %v4613 = vshrl.u32 %v4612, 7
        %v4614 = vsub.s32 %v4611, %v4613
        %v4615 = vrot.slane %v4605, %v4614
        %v4617 = vunpack.c.l.s4 1966171168
        %v4618 = vunpack.c.0.s8 %v4617
        %v4619 = vlaneseq
        %v4620 = vshrl.u32 %v4619, 7
        %v4621 = vsub.s32 %v4618, %v4620
        %v4622 = vrot.slane %v4606, %v4621
        %v4624 = vunpack.c.l.s4 1966171168
        %v4625 = vunpack.c.0.s8 %v4624
        %v4626 = vlaneseq
        %v4627 = vshrl.u32 %v4626, 7
        %v4628 = vsub.s32 %v4625, %v4627
        %v4629 = vrot.slane %v4607, %v4628
        %v4631 = vunpack.c.l.s4 1966171168
        %v4632 = vunpack.c.0.s8 %v4631
        %v4633 = vlaneseq
        %v4634 = vshrl.u32 %v4633, 7
        %v4635 = vsub.s32 %v4632, %v4634
        %v4636 = vrot.slane %v4608, %v4635
        %v4637 = vcombine.low %v4615, %v4622
        %v4638 = vcombine.low %v4629, %v4636
        %v4640 = vunpack.c.l.s4 1966171168
        %v4641 = vunpack.c.0.s8 %v4640
        %v4642 = vlaneseq
        %v4643 = vshrl.u32 %v4642, 7
        %v4644 = vsub.s32 %v4641, %v4643
        %v4645 = vrot.slane %v4637, %v4644
        %v4647 = vunpack.c.l.s4 1966171168
        %v4648 = vunpack.c.0.s8 %v4647
        %v4649 = vlaneseq
        %v4650 = vshrl.u32 %v4649, 7
        %v4651 = vsub.s32 %v4648, %v4650
        %v4652 = vrot.slane %v4638, %v4651
        %v4653 = vcombine.low %v4645, %v4652
        %v4654 = vcombine.low %v2048, %v2052
        %v4655 = vcombine.low %v2056, %v2060
        %v4656 = vcombine.low %v2064, %v2068
        %v4657 = vcombine.low %v2072, %v2076
        %v4659 = vunpack.c.l.s4 1966171168
        %v4660 = vunpack.c.0.s8 %v4659
        %v4661 = vlaneseq
        %v4662 = vshrl.u32 %v4661, 7
        %v4663 = vsub.s32 %v4660, %v4662
        %v4664 = vrot.slane %v4654, %v4663
        %v4666 = vunpack.c.l.s4 1966171168
        %v4667 = vunpack.c.0.s8 %v4666
        %v4668 = vlaneseq
        %v4669 = vshrl.u32 %v4668, 7
        %v4670 = vsub.s32 %v4667, %v4669
        %v4671 = vrot.slane %v4655, %v4670
        %v4673 = vunpack.c.l.s4 1966171168
        %v4674 = vunpack.c.0.s8 %v4673
        %v4675 = vlaneseq
        %v4676 = vshrl.u32 %v4675, 7
        %v4677 = vsub.s32 %v4674, %v4676
        %v4678 = vrot.slane %v4656, %v4677
        %v4680 = vunpack.c.l.s4 1966171168
        %v4681 = vunpack.c.0.s8 %v4680
        %v4682 = vlaneseq
        %v4683 = vshrl.u32 %v4682, 7
        %v4684 = vsub.s32 %v4681, %v4683
        %v4685 = vrot.slane %v4657, %v4684
        %v4686 = vcombine.low %v4664, %v4671
        %v4687 = vcombine.low %v4678, %v4685
        %v4689 = vunpack.c.l.s4 1966171168
        %v4690 = vunpack.c.0.s8 %v4689
        %v4691 = vlaneseq
        %v4692 = vshrl.u32 %v4691, 7
        %v4693 = vsub.s32 %v4690, %v4692
        %v4694 = vrot.slane %v4686, %v4693
        %v4696 = vunpack.c.l.s4 1966171168
        %v4697 = vunpack.c.0.s8 %v4696
        %v4698 = vlaneseq
        %v4699 = vshrl.u32 %v4698, 7
        %v4700 = vsub.s32 %v4697, %v4699
        %v4701 = vrot.slane %v4687, %v4700
        %v4702 = vcombine.low %v4694, %v4701
        %v4703 = vcombine.low %v2080, %v2084
        %v4704 = vcombine.low %v2088, %v2092
        %v4705 = vcombine.low %v2096, %v2100
        %v4706 = vcombine.low %v2104, %v2108
        %v4708 = vunpack.c.l.s4 1966171168
        %v4709 = vunpack.c.0.s8 %v4708
        %v4710 = vlaneseq
        %v4711 = vshrl.u32 %v4710, 7
        %v4712 = vsub.s32 %v4709, %v4711
        %v4713 = vrot.slane %v4703, %v4712
        %v4715 = vunpack.c.l.s4 1966171168
        %v4716 = vunpack.c.0.s8 %v4715
        %v4717 = vlaneseq
        %v4718 = vshrl.u32 %v4717, 7
        %v4719 = vsub.s32 %v4716, %v4718
        %v4720 = vrot.slane %v4704, %v4719
        %v4722 = vunpack.c.l.s4 1966171168
        %v4723 = vunpack.c.0.s8 %v4722
        %v4724 = vlaneseq
        %v4725 = vshrl.u32 %v4724, 7
        %v4726 = vsub.s32 %v4723, %v4725
        %v4727 = vrot.slane %v4705, %v4726
        %v4729 = vunpack.c.l.s4 1966171168
        %v4730 = vunpack.c.0.s8 %v4729
        %v4731 = vlaneseq
        %v4732 = vshrl.u32 %v4731, 7
        %v4733 = vsub.s32 %v4730, %v4732
        %v4734 = vrot.slane %v4706, %v4733
        %v4735 = vcombine.low %v4713, %v4720
        %v4736 = vcombine.low %v4727, %v4734
        %v4738 = vunpack.c.l.s4 1966171168
        %v4739 = vunpack.c.0.s8 %v4738
        %v4740 = vlaneseq
        %v4741 = vshrl.u32 %v4740, 7
        %v4742 = vsub.s32 %v4739, %v4741
        %v4743 = vrot.slane %v4735, %v4742
        %v4745 = vunpack.c.l.s4 1966171168
        %v4746 = vunpack.c.0.s8 %v4745
        %v4747 = vlaneseq
        %v4748 = vshrl.u32 %v4747, 7
        %v4749 = vsub.s32 %v4746, %v4748
        %v4750 = vrot.slane %v4736, %v4749
        %v4751 = vcombine.low %v4743, %v4750
        %v4752 = vcombine.low %v2112, %v2116
        %v4753 = vcombine.low %v2120, %v2124
        %v4754 = vcombine.low %v2128, %v2132
        %v4755 = vcombine.low %v2136, %v2140
        %v4757 = vunpack.c.l.s4 1966171168
        %v4758 = vunpack.c.0.s8 %v4757
        %v4759 = vlaneseq
        %v4760 = vshrl.u32 %v4759, 7
        %v4761 = vsub.s32 %v4758, %v4760
        %v4762 = vrot.slane %v4752, %v4761
        %v4764 = vunpack.c.l.s4 1966171168
        %v4765 = vunpack.c.0.s8 %v4764
        %v4766 = vlaneseq
        %v4767 = vshrl.u32 %v4766, 7
        %v4768 = vsub.s32 %v4765, %v4767
        %v4769 = vrot.slane %v4753, %v4768
        %v4771 = vunpack.c.l.s4 1966171168
        %v4772 = vunpack.c.0.s8 %v4771
        %v4773 = vlaneseq
        %v4774 = vshrl.u32 %v4773, 7
        %v4775 = vsub.s32 %v4772, %v4774
        %v4776 = vrot.slane %v4754, %v4775
        %v4778 = vunpack.c.l.s4 1966171168
        %v4779 = vunpack.c.0.s8 %v4778
        %v4780 = vlaneseq
        %v4781 = vshrl.u32 %v4780, 7
        %v4782 = vsub.s32 %v4779, %v4781
        %v4783 = vrot.slane %v4755, %v4782
        %v4784 = vcombine.low %v4762, %v4769
        %v4785 = vcombine.low %v4776, %v4783
        %v4787 = vunpack.c.l.s4 1966171168
        %v4788 = vunpack.c.0.s8 %v4787
        %v4789 = vlaneseq
        %v4790 = vshrl.u32 %v4789, 7
        %v4791 = vsub.s32 %v4788, %v4790
        %v4792 = vrot.slane %v4784, %v4791
        %v4794 = vunpack.c.l.s4 1966171168
        %v4795 = vunpack.c.0.s8 %v4794
        %v4796 = vlaneseq
        %v4797 = vshrl.u32 %v4796, 7
        %v4798 = vsub.s32 %v4795, %v4797
        %v4799 = vrot.slane %v4785, %v4798
        %v4800 = vcombine.low %v4792, %v4799
        %v4801 = vcombine.low %v2144, %v2148
        %v4802 = vcombine.low %v2152, %v2156
        %v4803 = vcombine.low %v2160, %v2164
        %v4804 = vcombine.low %v2168, %v2172
        %v4806 = vunpack.c.l.s4 1966171168
        %v4807 = vunpack.c.0.s8 %v4806
        %v4808 = vlaneseq
        %v4809 = vshrl.u32 %v4808, 7
        %v4810 = vsub.s32 %v4807, %v4809
        %v4811 = vrot.slane %v4801, %v4810
        %v4813 = vunpack.c.l.s4 1966171168
        %v4814 = vunpack.c.0.s8 %v4813
        %v4815 = vlaneseq
        %v4816 = vshrl.u32 %v4815, 7
        %v4817 = vsub.s32 %v4814, %v4816
        %v4818 = vrot.slane %v4802, %v4817
        %v4820 = vunpack.c.l.s4 1966171168
        %v4821 = vunpack.c.0.s8 %v4820
        %v4822 = vlaneseq
        %v4823 = vshrl.u32 %v4822, 7
        %v4824 = vsub.s32 %v4821, %v4823
        %v4825 = vrot.slane %v4803, %v4824
        %v4827 = vunpack.c.l.s4 1966171168
        %v4828 = vunpack.c.0.s8 %v4827
        %v4829 = vlaneseq
        %v4830 = vshrl.u32 %v4829, 7
        %v4831 = vsub.s32 %v4828, %v4830
        %v4832 = vrot.slane %v4804, %v4831
        %v4833 = vcombine.low %v4811, %v4818
        %v4834 = vcombine.low %v4825, %v4832
        %v4836 = vunpack.c.l.s4 1966171168
        %v4837 = vunpack.c.0.s8 %v4836
        %v4838 = vlaneseq
        %v4839 = vshrl.u32 %v4838, 7
        %v4840 = vsub.s32 %v4837, %v4839
        %v4841 = vrot.slane %v4833, %v4840
        %v4843 = vunpack.c.l.s4 1966171168
        %v4844 = vunpack.c.0.s8 %v4843
        %v4845 = vlaneseq
        %v4846 = vshrl.u32 %v4845, 7
        %v4847 = vsub.s32 %v4844, %v4846
        %v4848 = vrot.slane %v4834, %v4847
        %v4849 = vcombine.low %v4841, %v4848
        %v4850 = vcombine.low %v2176, %v2180
        %v4851 = vcombine.low %v2184, %v2188
        %v4852 = vcombine.low %v2192, %v2196
        %v4853 = vcombine.low %v2200, %v2204
        %v4855 = vunpack.c.l.s4 1966171168
        %v4856 = vunpack.c.0.s8 %v4855
        %v4857 = vlaneseq
        %v4858 = vshrl.u32 %v4857, 7
        %v4859 = vsub.s32 %v4856, %v4858
        %v4860 = vrot.slane %v4850, %v4859
        %v4862 = vunpack.c.l.s4 1966171168
        %v4863 = vunpack.c.0.s8 %v4862
        %v4864 = vlaneseq
        %v4865 = vshrl.u32 %v4864, 7
        %v4866 = vsub.s32 %v4863, %v4865
        %v4867 = vrot.slane %v4851, %v4866
        %v4869 = vunpack.c.l.s4 1966171168
        %v4870 = vunpack.c.0.s8 %v4869
        %v4871 = vlaneseq
        %v4872 = vshrl.u32 %v4871, 7
        %v4873 = vsub.s32 %v4870, %v4872
        %v4874 = vrot.slane %v4852, %v4873
        %v4876 = vunpack.c.l.s4 1966171168
        %v4877 = vunpack.c.0.s8 %v4876
        %v4878 = vlaneseq
        %v4879 = vshrl.u32 %v4878, 7
        %v4880 = vsub.s32 %v4877, %v4879
        %v4881 = vrot.slane %v4853, %v4880
        %v4882 = vcombine.low %v4860, %v4867
        %v4883 = vcombine.low %v4874, %v4881
        %v4885 = vunpack.c.l.s4 1966171168
        %v4886 = vunpack.c.0.s8 %v4885
        %v4887 = vlaneseq
        %v4888 = vshrl.u32 %v4887, 7
        %v4889 = vsub.s32 %v4886, %v4888
        %v4890 = vrot.slane %v4882, %v4889
        %v4892 = vunpack.c.l.s4 1966171168
        %v4893 = vunpack.c.0.s8 %v4892
        %v4894 = vlaneseq
        %v4895 = vshrl.u32 %v4894, 7
        %v4896 = vsub.s32 %v4893, %v4895
        %v4897 = vrot.slane %v4883, %v4896
        %v4898 = vcombine.low %v4890, %v4897
        %v4899 = vcombine.low %v2208, %v2212
        %v4900 = vcombine.low %v2216, %v2220
        %v4901 = vcombine.low %v2224, %v2228
        %v4902 = vcombine.low %v2232, %v2236
        %v4904 = vunpack.c.l.s4 1966171168
        %v4905 = vunpack.c.0.s8 %v4904
        %v4906 = vlaneseq
        %v4907 = vshrl.u32 %v4906, 7
        %v4908 = vsub.s32 %v4905, %v4907
        %v4909 = vrot.slane %v4899, %v4908
        %v4911 = vunpack.c.l.s4 1966171168
        %v4912 = vunpack.c.0.s8 %v4911
        %v4913 = vlaneseq
        %v4914 = vshrl.u32 %v4913, 7
        %v4915 = vsub.s32 %v4912, %v4914
        %v4916 = vrot.slane %v4900, %v4915
        %v4918 = vunpack.c.l.s4 1966171168
        %v4919 = vunpack.c.0.s8 %v4918
        %v4920 = vlaneseq
        %v4921 = vshrl.u32 %v4920, 7
        %v4922 = vsub.s32 %v4919, %v4921
        %v4923 = vrot.slane %v4901, %v4922
        %v4925 = vunpack.c.l.s4 1966171168
        %v4926 = vunpack.c.0.s8 %v4925
        %v4927 = vlaneseq
        %v4928 = vshrl.u32 %v4927, 7
        %v4929 = vsub.s32 %v4926, %v4928
        %v4930 = vrot.slane %v4902, %v4929
        %v4931 = vcombine.low %v4909, %v4916
        %v4932 = vcombine.low %v4923, %v4930
        %v4934 = vunpack.c.l.s4 1966171168
        %v4935 = vunpack.c.0.s8 %v4934
        %v4936 = vlaneseq
        %v4937 = vshrl.u32 %v4936, 7
        %v4938 = vsub.s32 %v4935, %v4937
        %v4939 = vrot.slane %v4931, %v4938
        %v4941 = vunpack.c.l.s4 1966171168
        %v4942 = vunpack.c.0.s8 %v4941
        %v4943 = vlaneseq
        %v4944 = vshrl.u32 %v4943, 7
        %v4945 = vsub.s32 %v4942, %v4944
        %v4946 = vrot.slane %v4932, %v4945
        %v4947 = vcombine.low %v4939, %v4946
        %v4948 = vcombine.low %v2240, %v2244
        %v4949 = vcombine.low %v2248, %v2252
        %v4950 = vcombine.low %v2256, %v2260
        %v4951 = vcombine.low %v2264, %v2268
        %v4953 = vunpack.c.l.s4 1966171168
        %v4954 = vunpack.c.0.s8 %v4953
        %v4955 = vlaneseq
        %v4956 = vshrl.u32 %v4955, 7
        %v4957 = vsub.s32 %v4954, %v4956
        %v4958 = vrot.slane %v4948, %v4957
        %v4960 = vunpack.c.l.s4 1966171168
        %v4961 = vunpack.c.0.s8 %v4960
        %v4962 = vlaneseq
        %v4963 = vshrl.u32 %v4962, 7
        %v4964 = vsub.s32 %v4961, %v4963
        %v4965 = vrot.slane %v4949, %v4964
        %v4967 = vunpack.c.l.s4 1966171168
        %v4968 = vunpack.c.0.s8 %v4967
        %v4969 = vlaneseq
        %v4970 = vshrl.u32 %v4969, 7
        %v4971 = vsub.s32 %v4968, %v4970
        %v4972 = vrot.slane %v4950, %v4971
        %v4974 = vunpack.c.l.s4 1966171168
        %v4975 = vunpack.c.0.s8 %v4974
        %v4976 = vlaneseq
        %v4977 = vshrl.u32 %v4976, 7
        %v4978 = vsub.s32 %v4975, %v4977
        %v4979 = vrot.slane %v4951, %v4978
        %v4980 = vcombine.low %v4958, %v4965
        %v4981 = vcombine.low %v4972, %v4979
        %v4983 = vunpack.c.l.s4 1966171168
        %v4984 = vunpack.c.0.s8 %v4983
        %v4985 = vlaneseq
        %v4986 = vshrl.u32 %v4985, 7
        %v4987 = vsub.s32 %v4984, %v4986
        %v4988 = vrot.slane %v4980, %v4987
        %v4990 = vunpack.c.l.s4 1966171168
        %v4991 = vunpack.c.0.s8 %v4990
        %v4992 = vlaneseq
        %v4993 = vshrl.u32 %v4992, 7
        %v4994 = vsub.s32 %v4991, %v4993
        %v4995 = vrot.slane %v4981, %v4994
        %v4996 = vcombine.low %v4988, %v4995
        %v4997 = vcombine.low %v2272, %v2276
        %v4998 = vcombine.low %v2280, %v2284
        %v4999 = vcombine.low %v2288, %v2292
        %v5000 = vcombine.low %v2296, %v2300
        %v5002 = vunpack.c.l.s4 1966171168
        %v5003 = vunpack.c.0.s8 %v5002
        %v5004 = vlaneseq
        %v5005 = vshrl.u32 %v5004, 7
        %v5006 = vsub.s32 %v5003, %v5005
        %v5007 = vrot.slane %v4997, %v5006
        %v5009 = vunpack.c.l.s4 1966171168
        %v5010 = vunpack.c.0.s8 %v5009
        %v5011 = vlaneseq
        %v5012 = vshrl.u32 %v5011, 7
        %v5013 = vsub.s32 %v5010, %v5012
        %v5014 = vrot.slane %v4998, %v5013
        %v5016 = vunpack.c.l.s4 1966171168
        %v5017 = vunpack.c.0.s8 %v5016
        %v5018 = vlaneseq
        %v5019 = vshrl.u32 %v5018, 7
        %v5020 = vsub.s32 %v5017, %v5019
        %v5021 = vrot.slane %v4999, %v5020
        %v5023 = vunpack.c.l.s4 1966171168
        %v5024 = vunpack.c.0.s8 %v5023
        %v5025 = vlaneseq
        %v5026 = vshrl.u32 %v5025, 7
        %v5027 = vsub.s32 %v5024, %v5026
        %v5028 = vrot.slane %v5000, %v5027
        %v5029 = vcombine.low %v5007, %v5014
        %v5030 = vcombine.low %v5021, %v5028
        %v5032 = vunpack.c.l.s4 1966171168
        %v5033 = vunpack.c.0.s8 %v5032
        %v5034 = vlaneseq
        %v5035 = vshrl.u32 %v5034, 7
        %v5036 = vsub.s32 %v5033, %v5035
        %v5037 = vrot.slane %v5029, %v5036
        %v5039 = vunpack.c.l.s4 1966171168
        %v5040 = vunpack.c.0.s8 %v5039
        %v5041 = vlaneseq
        %v5042 = vshrl.u32 %v5041, 7
        %v5043 = vsub.s32 %v5040, %v5042
        %v5044 = vrot.slane %v5030, %v5043
        %v5045 = vcombine.low %v5037, %v5044
        %v5046 = vcombine.low %v2304, %v2308
        %v5047 = vcombine.low %v2312, %v2316
        %v5048 = vcombine.low %v2320, %v2324
        %v5049 = vcombine.low %v2328, %v2332
        %v5051 = vunpack.c.l.s4 1966171168
        %v5052 = vunpack.c.0.s8 %v5051
        %v5053 = vlaneseq
        %v5054 = vshrl.u32 %v5053, 7
        %v5055 = vsub.s32 %v5052, %v5054
        %v5056 = vrot.slane %v5046, %v5055
        %v5058 = vunpack.c.l.s4 1966171168
        %v5059 = vunpack.c.0.s8 %v5058
        %v5060 = vlaneseq
        %v5061 = vshrl.u32 %v5060, 7
        %v5062 = vsub.s32 %v5059, %v5061
        %v5063 = vrot.slane %v5047, %v5062
        %v5065 = vunpack.c.l.s4 1966171168
        %v5066 = vunpack.c.0.s8 %v5065
        %v5067 = vlaneseq
        %v5068 = vshrl.u32 %v5067, 7
        %v5069 = vsub.s32 %v5066, %v5068
        %v5070 = vrot.slane %v5048, %v5069
        %v5072 = vunpack.c.l.s4 1966171168
        %v5073 = vunpack.c.0.s8 %v5072
        %v5074 = vlaneseq
        %v5075 = vshrl.u32 %v5074, 7
        %v5076 = vsub.s32 %v5073, %v5075
        %v5077 = vrot.slane %v5049, %v5076
        %v5078 = vcombine.low %v5056, %v5063
        %v5079 = vcombine.low %v5070, %v5077
        %v5081 = vunpack.c.l.s4 1966171168
        %v5082 = vunpack.c.0.s8 %v5081
        %v5083 = vlaneseq
        %v5084 = vshrl.u32 %v5083, 7
        %v5085 = vsub.s32 %v5082, %v5084
        %v5086 = vrot.slane %v5078, %v5085
        %v5088 = vunpack.c.l.s4 1966171168
        %v5089 = vunpack.c.0.s8 %v5088
        %v5090 = vlaneseq
        %v5091 = vshrl.u32 %v5090, 7
        %v5092 = vsub.s32 %v5089, %v5091
        %v5093 = vrot.slane %v5079, %v5092
        %v5094 = vcombine.low %v5086, %v5093
        %v5095 = vcombine.low %v2336, %v2340
        %v5096 = vcombine.low %v2344, %v2348
        %v5097 = vcombine.low %v2352, %v2356
        %v5098 = vcombine.low %v2360, %v2364
        %v5100 = vunpack.c.l.s4 1966171168
        %v5101 = vunpack.c.0.s8 %v5100
        %v5102 = vlaneseq
        %v5103 = vshrl.u32 %v5102, 7
        %v5104 = vsub.s32 %v5101, %v5103
        %v5105 = vrot.slane %v5095, %v5104
        %v5107 = vunpack.c.l.s4 1966171168
        %v5108 = vunpack.c.0.s8 %v5107
        %v5109 = vlaneseq
        %v5110 = vshrl.u32 %v5109, 7
        %v5111 = vsub.s32 %v5108, %v5110
        %v5112 = vrot.slane %v5096, %v5111
        %v5114 = vunpack.c.l.s4 1966171168
        %v5115 = vunpack.c.0.s8 %v5114
        %v5116 = vlaneseq
        %v5117 = vshrl.u32 %v5116, 7
        %v5118 = vsub.s32 %v5115, %v5117
        %v5119 = vrot.slane %v5097, %v5118
        %v5121 = vunpack.c.l.s4 1966171168
        %v5122 = vunpack.c.0.s8 %v5121
        %v5123 = vlaneseq
        %v5124 = vshrl.u32 %v5123, 7
        %v5125 = vsub.s32 %v5122, %v5124
        %v5126 = vrot.slane %v5098, %v5125
        %v5127 = vcombine.low %v5105, %v5112
        %v5128 = vcombine.low %v5119, %v5126
        %v5130 = vunpack.c.l.s4 1966171168
        %v5131 = vunpack.c.0.s8 %v5130
        %v5132 = vlaneseq
        %v5133 = vshrl.u32 %v5132, 7
        %v5134 = vsub.s32 %v5131, %v5133
        %v5135 = vrot.slane %v5127, %v5134
        %v5137 = vunpack.c.l.s4 1966171168
        %v5138 = vunpack.c.0.s8 %v5137
        %v5139 = vlaneseq
        %v5140 = vshrl.u32 %v5139, 7
        %v5141 = vsub.s32 %v5138, %v5140
        %v5142 = vrot.slane %v5128, %v5141
        %v5143 = vcombine.low %v5135, %v5142
        %v5144 = vcombine.low %v2368, %v2372
        %v5145 = vcombine.low %v2376, %v2380
        %v5146 = vcombine.low %v2384, %v2388
        %v5147 = vcombine.low %v2392, %v2396
        %v5149 = vunpack.c.l.s4 1966171168
        %v5150 = vunpack.c.0.s8 %v5149
        %v5151 = vlaneseq
        %v5152 = vshrl.u32 %v5151, 7
        %v5153 = vsub.s32 %v5150, %v5152
        %v5154 = vrot.slane %v5144, %v5153
        %v5156 = vunpack.c.l.s4 1966171168
        %v5157 = vunpack.c.0.s8 %v5156
        %v5158 = vlaneseq
        %v5159 = vshrl.u32 %v5158, 7
        %v5160 = vsub.s32 %v5157, %v5159
        %v5161 = vrot.slane %v5145, %v5160
        %v5163 = vunpack.c.l.s4 1966171168
        %v5164 = vunpack.c.0.s8 %v5163
        %v5165 = vlaneseq
        %v5166 = vshrl.u32 %v5165, 7
        %v5167 = vsub.s32 %v5164, %v5166
        %v5168 = vrot.slane %v5146, %v5167
        %v5170 = vunpack.c.l.s4 1966171168
        %v5171 = vunpack.c.0.s8 %v5170
        %v5172 = vlaneseq
        %v5173 = vshrl.u32 %v5172, 7
        %v5174 = vsub.s32 %v5171, %v5173
        %v5175 = vrot.slane %v5147, %v5174
        %v5176 = vcombine.low %v5154, %v5161
        %v5177 = vcombine.low %v5168, %v5175
        %v5179 = vunpack.c.l.s4 1966171168
        %v5180 = vunpack.c.0.s8 %v5179
        %v5181 = vlaneseq
        %v5182 = vshrl.u32 %v5181, 7
        %v5183 = vsub.s32 %v5180, %v5182
        %v5184 = vrot.slane %v5176, %v5183
        %v5186 = vunpack.c.l.s4 1966171168
        %v5187 = vunpack.c.0.s8 %v5186
        %v5188 = vlaneseq
        %v5189 = vshrl.u32 %v5188, 7
        %v5190 = vsub.s32 %v5187, %v5189
        %v5191 = vrot.slane %v5177, %v5190
        %v5192 = vcombine.low %v5184, %v5191
        %v5193 = vcombine.low %v2400, %v2404
        %v5194 = vcombine.low %v2408, %v2412
        %v5195 = vcombine.low %v2416, %v2420
        %v5196 = vcombine.low %v2424, %v2428
        %v5198 = vunpack.c.l.s4 1966171168
        %v5199 = vunpack.c.0.s8 %v5198
        %v5200 = vlaneseq
        %v5201 = vshrl.u32 %v5200, 7
        %v5202 = vsub.s32 %v5199, %v5201
        %v5203 = vrot.slane %v5193, %v5202
        %v5205 = vunpack.c.l.s4 1966171168
        %v5206 = vunpack.c.0.s8 %v5205
        %v5207 = vlaneseq
        %v5208 = vshrl.u32 %v5207, 7
        %v5209 = vsub.s32 %v5206, %v5208
        %v5210 = vrot.slane %v5194, %v5209
        %v5212 = vunpack.c.l.s4 1966171168
        %v5213 = vunpack.c.0.s8 %v5212
        %v5214 = vlaneseq
        %v5215 = vshrl.u32 %v5214, 7
        %v5216 = vsub.s32 %v5213, %v5215
        %v5217 = vrot.slane %v5195, %v5216
        %v5219 = vunpack.c.l.s4 1966171168
        %v5220 = vunpack.c.0.s8 %v5219
        %v5221 = vlaneseq
        %v5222 = vshrl.u32 %v5221, 7
        %v5223 = vsub.s32 %v5220, %v5222
        %v5224 = vrot.slane %v5196, %v5223
        %v5225 = vcombine.low %v5203, %v5210
        %v5226 = vcombine.low %v5217, %v5224
        %v5228 = vunpack.c.l.s4 1966171168
        %v5229 = vunpack.c.0.s8 %v5228
        %v5230 = vlaneseq
        %v5231 = vshrl.u32 %v5230, 7
        %v5232 = vsub.s32 %v5229, %v5231
        %v5233 = vrot.slane %v5225, %v5232
        %v5235 = vunpack.c.l.s4 1966171168
        %v5236 = vunpack.c.0.s8 %v5235
        %v5237 = vlaneseq
        %v5238 = vshrl.u32 %v5237, 7
        %v5239 = vsub.s32 %v5236, %v5238
        %v5240 = vrot.slane %v5226, %v5239
        %v5241 = vcombine.low %v5233, %v5240
        %v5242 = vcombine.low %v2432, %v2436
        %v5243 = vcombine.low %v2440, %v2444
        %v5244 = vcombine.low %v2448, %v2452
        %v5245 = vcombine.low %v2456, %v2460
        %v5247 = vunpack.c.l.s4 1966171168
        %v5248 = vunpack.c.0.s8 %v5247
        %v5249 = vlaneseq
        %v5250 = vshrl.u32 %v5249, 7
        %v5251 = vsub.s32 %v5248, %v5250
        %v5252 = vrot.slane %v5242, %v5251
        %v5254 = vunpack.c.l.s4 1966171168
        %v5255 = vunpack.c.0.s8 %v5254
        %v5256 = vlaneseq
        %v5257 = vshrl.u32 %v5256, 7
        %v5258 = vsub.s32 %v5255, %v5257
        %v5259 = vrot.slane %v5243, %v5258
        %v5261 = vunpack.c.l.s4 1966171168
        %v5262 = vunpack.c.0.s8 %v5261
        %v5263 = vlaneseq
        %v5264 = vshrl.u32 %v5263, 7
        %v5265 = vsub.s32 %v5262, %v5264
        %v5266 = vrot.slane %v5244, %v5265
        %v5268 = vunpack.c.l.s4 1966171168
        %v5269 = vunpack.c.0.s8 %v5268
        %v5270 = vlaneseq
        %v5271 = vshrl.u32 %v5270, 7
        %v5272 = vsub.s32 %v5269, %v5271
        %v5273 = vrot.slane %v5245, %v5272
        %v5274 = vcombine.low %v5252, %v5259
        %v5275 = vcombine.low %v5266, %v5273
        %v5277 = vunpack.c.l.s4 1966171168
        %v5278 = vunpack.c.0.s8 %v5277
        %v5279 = vlaneseq
        %v5280 = vshrl.u32 %v5279, 7
        %v5281 = vsub.s32 %v5278, %v5280
        %v5282 = vrot.slane %v5274, %v5281
        %v5284 = vunpack.c.l.s4 1966171168
        %v5285 = vunpack.c.0.s8 %v5284
        %v5286 = vlaneseq
        %v5287 = vshrl.u32 %v5286, 7
        %v5288 = vsub.s32 %v5285, %v5287
        %v5289 = vrot.slane %v5275, %v5288
        %v5290 = vcombine.low %v5282, %v5289
        %v5291 = vcombine.low %v2464, %v2468
        %v5292 = vcombine.low %v2472, %v2476
        %v5293 = vcombine.low %v2480, %v2484
        %v5294 = vcombine.low %v2488, %v2492
        %v5296 = vunpack.c.l.s4 1966171168
        %v5297 = vunpack.c.0.s8 %v5296
        %v5298 = vlaneseq
        %v5299 = vshrl.u32 %v5298, 7
        %v5300 = vsub.s32 %v5297, %v5299
        %v5301 = vrot.slane %v5291, %v5300
        %v5303 = vunpack.c.l.s4 1966171168
        %v5304 = vunpack.c.0.s8 %v5303
        %v5305 = vlaneseq
        %v5306 = vshrl.u32 %v5305, 7
        %v5307 = vsub.s32 %v5304, %v5306
        %v5308 = vrot.slane %v5292, %v5307
        %v5310 = vunpack.c.l.s4 1966171168
        %v5311 = vunpack.c.0.s8 %v5310
        %v5312 = vlaneseq
        %v5313 = vshrl.u32 %v5312, 7
        %v5314 = vsub.s32 %v5311, %v5313
        %v5315 = vrot.slane %v5293, %v5314
        %v5317 = vunpack.c.l.s4 1966171168
        %v5318 = vunpack.c.0.s8 %v5317
        %v5319 = vlaneseq
        %v5320 = vshrl.u32 %v5319, 7
        %v5321 = vsub.s32 %v5318, %v5320
        %v5322 = vrot.slane %v5294, %v5321
        %v5323 = vcombine.low %v5301, %v5308
        %v5324 = vcombine.low %v5315, %v5322
        %v5326 = vunpack.c.l.s4 1966171168
        %v5327 = vunpack.c.0.s8 %v5326
        %v5328 = vlaneseq
        %v5329 = vshrl.u32 %v5328, 7
        %v5330 = vsub.s32 %v5327, %v5329
        %v5331 = vrot.slane %v5323, %v5330
        %v5333 = vunpack.c.l.s4 1966171168
        %v5334 = vunpack.c.0.s8 %v5333
        %v5335 = vlaneseq
        %v5336 = vshrl.u32 %v5335, 7
        %v5337 = vsub.s32 %v5334, %v5336
        %v5338 = vrot.slane %v5324, %v5337
        %v5339 = vcombine.low %v5331, %v5338
        %v5340 = vcombine.low %v2496, %v2500
        %v5341 = vcombine.low %v2504, %v2508
        %v5342 = vcombine.low %v2512, %v2516
        %v5343 = vcombine.low %v2520, %v2524
        %v5345 = vunpack.c.l.s4 1966171168
        %v5346 = vunpack.c.0.s8 %v5345
        %v5347 = vlaneseq
        %v5348 = vshrl.u32 %v5347, 7
        %v5349 = vsub.s32 %v5346, %v5348
        %v5350 = vrot.slane %v5340, %v5349
        %v5352 = vunpack.c.l.s4 1966171168
        %v5353 = vunpack.c.0.s8 %v5352
        %v5354 = vlaneseq
        %v5355 = vshrl.u32 %v5354, 7
        %v5356 = vsub.s32 %v5353, %v5355
        %v5357 = vrot.slane %v5341, %v5356
        %v5359 = vunpack.c.l.s4 1966171168
        %v5360 = vunpack.c.0.s8 %v5359
        %v5361 = vlaneseq
        %v5362 = vshrl.u32 %v5361, 7
        %v5363 = vsub.s32 %v5360, %v5362
        %v5364 = vrot.slane %v5342, %v5363
        %v5366 = vunpack.c.l.s4 1966171168
        %v5367 = vunpack.c.0.s8 %v5366
        %v5368 = vlaneseq
        %v5369 = vshrl.u32 %v5368, 7
        %v5370 = vsub.s32 %v5367, %v5369
        %v5371 = vrot.slane %v5343, %v5370
        %v5372 = vcombine.low %v5350, %v5357
        %v5373 = vcombine.low %v5364, %v5371
        %v5375 = vunpack.c.l.s4 1966171168
        %v5376 = vunpack.c.0.s8 %v5375
        %v5377 = vlaneseq
        %v5378 = vshrl.u32 %v5377, 7
        %v5379 = vsub.s32 %v5376, %v5378
        %v5380 = vrot.slane %v5372, %v5379
        %v5382 = vunpack.c.l.s4 1966171168
        %v5383 = vunpack.c.0.s8 %v5382
        %v5384 = vlaneseq
        %v5385 = vshrl.u32 %v5384, 7
        %v5386 = vsub.s32 %v5383, %v5385
        %v5387 = vrot.slane %v5373, %v5386
        %v5388 = vcombine.low %v5380, %v5387
        %v5389 = vcombine.low %v2528, %v2532
        %v5390 = vcombine.low %v2536, %v2540
        %v5391 = vcombine.low %v2544, %v2548
        %v5392 = vcombine.low %v2552, %v2556
        %v5394 = vunpack.c.l.s4 1966171168
        %v5395 = vunpack.c.0.s8 %v5394
        %v5396 = vlaneseq
        %v5397 = vshrl.u32 %v5396, 7
        %v5398 = vsub.s32 %v5395, %v5397
        %v5399 = vrot.slane %v5389, %v5398
        %v5401 = vunpack.c.l.s4 1966171168
        %v5402 = vunpack.c.0.s8 %v5401
        %v5403 = vlaneseq
        %v5404 = vshrl.u32 %v5403, 7
        %v5405 = vsub.s32 %v5402, %v5404
        %v5406 = vrot.slane %v5390, %v5405
        %v5408 = vunpack.c.l.s4 1966171168
        %v5409 = vunpack.c.0.s8 %v5408
        %v5410 = vlaneseq
        %v5411 = vshrl.u32 %v5410, 7
        %v5412 = vsub.s32 %v5409, %v5411
        %v5413 = vrot.slane %v5391, %v5412
        %v5415 = vunpack.c.l.s4 1966171168
        %v5416 = vunpack.c.0.s8 %v5415
        %v5417 = vlaneseq
        %v5418 = vshrl.u32 %v5417, 7
        %v5419 = vsub.s32 %v5416, %v5418
        %v5420 = vrot.slane %v5392, %v5419
        %v5421 = vcombine.low %v5399, %v5406
        %v5422 = vcombine.low %v5413, %v5420
        %v5424 = vunpack.c.l.s4 1966171168
        %v5425 = vunpack.c.0.s8 %v5424
        %v5426 = vlaneseq
        %v5427 = vshrl.u32 %v5426, 7
        %v5428 = vsub.s32 %v5425, %v5427
        %v5429 = vrot.slane %v5421, %v5428
        %v5431 = vunpack.c.l.s4 1966171168
        %v5432 = vunpack.c.0.s8 %v5431
        %v5433 = vlaneseq
        %v5434 = vshrl.u32 %v5433, 7
        %v5435 = vsub.s32 %v5432, %v5434
        %v5436 = vrot.slane %v5422, %v5435
        %v5437 = vcombine.low %v5429, %v5436
        %v5438 = vcombine.low %v2560, %v2564
        %v5439 = vcombine.low %v2568, %v2572
        %v5440 = vcombine.low %v2576, %v2580
        %v5441 = vcombine.low %v2584, %v2588
        %v5443 = vunpack.c.l.s4 1966171168
        %v5444 = vunpack.c.0.s8 %v5443
        %v5445 = vlaneseq
        %v5446 = vshrl.u32 %v5445, 7
        %v5447 = vsub.s32 %v5444, %v5446
        %v5448 = vrot.slane %v5438, %v5447
        %v5450 = vunpack.c.l.s4 1966171168
        %v5451 = vunpack.c.0.s8 %v5450
        %v5452 = vlaneseq
        %v5453 = vshrl.u32 %v5452, 7
        %v5454 = vsub.s32 %v5451, %v5453
        %v5455 = vrot.slane %v5439, %v5454
        %v5457 = vunpack.c.l.s4 1966171168
        %v5458 = vunpack.c.0.s8 %v5457
        %v5459 = vlaneseq
        %v5460 = vshrl.u32 %v5459, 7
        %v5461 = vsub.s32 %v5458, %v5460
        %v5462 = vrot.slane %v5440, %v5461
        %v5464 = vunpack.c.l.s4 1966171168
        %v5465 = vunpack.c.0.s8 %v5464
        %v5466 = vlaneseq
        %v5467 = vshrl.u32 %v5466, 7
        %v5468 = vsub.s32 %v5465, %v5467
        %v5469 = vrot.slane %v5441, %v5468
        %v5470 = vcombine.low %v5448, %v5455
        %v5471 = vcombine.low %v5462, %v5469
        %v5473 = vunpack.c.l.s4 1966171168
        %v5474 = vunpack.c.0.s8 %v5473
        %v5475 = vlaneseq
        %v5476 = vshrl.u32 %v5475, 7
        %v5477 = vsub.s32 %v5474, %v5476
        %v5478 = vrot.slane %v5470, %v5477
        %v5480 = vunpack.c.l.s4 1966171168
        %v5481 = vunpack.c.0.s8 %v5480
        %v5482 = vlaneseq
        %v5483 = vshrl.u32 %v5482, 7
        %v5484 = vsub.s32 %v5481, %v5483
        %v5485 = vrot.slane %v5471, %v5484
        %v5486 = vcombine.low %v5478, %v5485
        %v5487 = vcombine.low %v2592, %v2596
        %v5488 = vcombine.low %v2600, %v2604
        %v5489 = vcombine.low %v2608, %v2612
        %v5490 = vcombine.low %v2616, %v2620
        %v5492 = vunpack.c.l.s4 1966171168
        %v5493 = vunpack.c.0.s8 %v5492
        %v5494 = vlaneseq
        %v5495 = vshrl.u32 %v5494, 7
        %v5496 = vsub.s32 %v5493, %v5495
        %v5497 = vrot.slane %v5487, %v5496
        %v5499 = vunpack.c.l.s4 1966171168
        %v5500 = vunpack.c.0.s8 %v5499
        %v5501 = vlaneseq
        %v5502 = vshrl.u32 %v5501, 7
        %v5503 = vsub.s32 %v5500, %v5502
        %v5504 = vrot.slane %v5488, %v5503
        %v5506 = vunpack.c.l.s4 1966171168
        %v5507 = vunpack.c.0.s8 %v5506
        %v5508 = vlaneseq
        %v5509 = vshrl.u32 %v5508, 7
        %v5510 = vsub.s32 %v5507, %v5509
        %v5511 = vrot.slane %v5489, %v5510
        %v5513 = vunpack.c.l.s4 1966171168
        %v5514 = vunpack.c.0.s8 %v5513
        %v5515 = vlaneseq
        %v5516 = vshrl.u32 %v5515, 7
        %v5517 = vsub.s32 %v5514, %v5516
        %v5518 = vrot.slane %v5490, %v5517
        %v5519 = vcombine.low %v5497, %v5504
        %v5520 = vcombine.low %v5511, %v5518
        %v5522 = vunpack.c.l.s4 1966171168
        %v5523 = vunpack.c.0.s8 %v5522
        %v5524 = vlaneseq
        %v5525 = vshrl.u32 %v5524, 7
        %v5526 = vsub.s32 %v5523, %v5525
        %v5527 = vrot.slane %v5519, %v5526
        %v5529 = vunpack.c.l.s4 1966171168
        %v5530 = vunpack.c.0.s8 %v5529
        %v5531 = vlaneseq
        %v5532 = vshrl.u32 %v5531, 7
        %v5533 = vsub.s32 %v5530, %v5532
        %v5534 = vrot.slane %v5520, %v5533
        %v5535 = vcombine.low %v5527, %v5534
        %v5536 = vcombine.low %v2624, %v2628
        %v5537 = vcombine.low %v2632, %v2636
        %v5538 = vcombine.low %v2640, %v2644
        %v5539 = vcombine.low %v2648, %v2652
        %v5541 = vunpack.c.l.s4 1966171168
        %v5542 = vunpack.c.0.s8 %v5541
        %v5543 = vlaneseq
        %v5544 = vshrl.u32 %v5543, 7
        %v5545 = vsub.s32 %v5542, %v5544
        %v5546 = vrot.slane %v5536, %v5545
        %v5548 = vunpack.c.l.s4 1966171168
        %v5549 = vunpack.c.0.s8 %v5548
        %v5550 = vlaneseq
        %v5551 = vshrl.u32 %v5550, 7
        %v5552 = vsub.s32 %v5549, %v5551
        %v5553 = vrot.slane %v5537, %v5552
        %v5555 = vunpack.c.l.s4 1966171168
        %v5556 = vunpack.c.0.s8 %v5555
        %v5557 = vlaneseq
        %v5558 = vshrl.u32 %v5557, 7
        %v5559 = vsub.s32 %v5556, %v5558
        %v5560 = vrot.slane %v5538, %v5559
        %v5562 = vunpack.c.l.s4 1966171168
        %v5563 = vunpack.c.0.s8 %v5562
        %v5564 = vlaneseq
        %v5565 = vshrl.u32 %v5564, 7
        %v5566 = vsub.s32 %v5563, %v5565
        %v5567 = vrot.slane %v5539, %v5566
        %v5568 = vcombine.low %v5546, %v5553
        %v5569 = vcombine.low %v5560, %v5567
        %v5571 = vunpack.c.l.s4 1966171168
        %v5572 = vunpack.c.0.s8 %v5571
        %v5573 = vlaneseq
        %v5574 = vshrl.u32 %v5573, 7
        %v5575 = vsub.s32 %v5572, %v5574
        %v5576 = vrot.slane %v5568, %v5575
        %v5578 = vunpack.c.l.s4 1966171168
        %v5579 = vunpack.c.0.s8 %v5578
        %v5580 = vlaneseq
        %v5581 = vshrl.u32 %v5580, 7
        %v5582 = vsub.s32 %v5579, %v5581
        %v5583 = vrot.slane %v5569, %v5582
        %v5584 = vcombine.low %v5576, %v5583
        %v5585 = vcombine.low %v2656, %v2660
        %v5586 = vcombine.low %v2664, %v2668
        %v5587 = vcombine.low %v2672, %v2676
        %v5588 = vcombine.low %v2680, %v2684
        %v5590 = vunpack.c.l.s4 1966171168
        %v5591 = vunpack.c.0.s8 %v5590
        %v5592 = vlaneseq
        %v5593 = vshrl.u32 %v5592, 7
        %v5594 = vsub.s32 %v5591, %v5593
        %v5595 = vrot.slane %v5585, %v5594
        %v5597 = vunpack.c.l.s4 1966171168
        %v5598 = vunpack.c.0.s8 %v5597
        %v5599 = vlaneseq
        %v5600 = vshrl.u32 %v5599, 7
        %v5601 = vsub.s32 %v5598, %v5600
        %v5602 = vrot.slane %v5586, %v5601
        %v5604 = vunpack.c.l.s4 1966171168
        %v5605 = vunpack.c.0.s8 %v5604
        %v5606 = vlaneseq
        %v5607 = vshrl.u32 %v5606, 7
        %v5608 = vsub.s32 %v5605, %v5607
        %v5609 = vrot.slane %v5587, %v5608
        %v5611 = vunpack.c.l.s4 1966171168
        %v5612 = vunpack.c.0.s8 %v5611
        %v5613 = vlaneseq
        %v5614 = vshrl.u32 %v5613, 7
        %v5615 = vsub.s32 %v5612, %v5614
        %v5616 = vrot.slane %v5588, %v5615
        %v5617 = vcombine.low %v5595, %v5602
        %v5618 = vcombine.low %v5609, %v5616
        %v5620 = vunpack.c.l.s4 1966171168
        %v5621 = vunpack.c.0.s8 %v5620
        %v5622 = vlaneseq
        %v5623 = vshrl.u32 %v5622, 7
        %v5624 = vsub.s32 %v5621, %v5623
        %v5625 = vrot.slane %v5617, %v5624
        %v5627 = vunpack.c.l.s4 1966171168
        %v5628 = vunpack.c.0.s8 %v5627
        %v5629 = vlaneseq
        %v5630 = vshrl.u32 %v5629, 7
        %v5631 = vsub.s32 %v5628, %v5630
        %v5632 = vrot.slane %v5618, %v5631
        %v5633 = vcombine.low %v5625, %v5632
        %v5634 = vcombine.low %v2688, %v2692
        %v5635 = vcombine.low %v2696, %v2700
        %v5636 = vcombine.low %v2704, %v2708
        %v5637 = vcombine.low %v2712, %v2716
        %v5639 = vunpack.c.l.s4 1966171168
        %v5640 = vunpack.c.0.s8 %v5639
        %v5641 = vlaneseq
        %v5642 = vshrl.u32 %v5641, 7
        %v5643 = vsub.s32 %v5640, %v5642
        %v5644 = vrot.slane %v5634, %v5643
        %v5646 = vunpack.c.l.s4 1966171168
        %v5647 = vunpack.c.0.s8 %v5646
        %v5648 = vlaneseq
        %v5649 = vshrl.u32 %v5648, 7
        %v5650 = vsub.s32 %v5647, %v5649
        %v5651 = vrot.slane %v5635, %v5650
        %v5653 = vunpack.c.l.s4 1966171168
        %v5654 = vunpack.c.0.s8 %v5653
        %v5655 = vlaneseq
        %v5656 = vshrl.u32 %v5655, 7
        %v5657 = vsub.s32 %v5654, %v5656
        %v5658 = vrot.slane %v5636, %v5657
        %v5660 = vunpack.c.l.s4 1966171168
        %v5661 = vunpack.c.0.s8 %v5660
        %v5662 = vlaneseq
        %v5663 = vshrl.u32 %v5662, 7
        %v5664 = vsub.s32 %v5661, %v5663
        %v5665 = vrot.slane %v5637, %v5664
        %v5666 = vcombine.low %v5644, %v5651
        %v5667 = vcombine.low %v5658, %v5665
        %v5669 = vunpack.c.l.s4 1966171168
        %v5670 = vunpack.c.0.s8 %v5669
        %v5671 = vlaneseq
        %v5672 = vshrl.u32 %v5671, 7
        %v5673 = vsub.s32 %v5670, %v5672
        %v5674 = vrot.slane %v5666, %v5673
        %v5676 = vunpack.c.l.s4 1966171168
        %v5677 = vunpack.c.0.s8 %v5676
        %v5678 = vlaneseq
        %v5679 = vshrl.u32 %v5678, 7
        %v5680 = vsub.s32 %v5677, %v5679
        %v5681 = vrot.slane %v5667, %v5680
        %v5682 = vcombine.low %v5674, %v5681
        %v5683 = vcombine.low %v2720, %v2724
        %v5684 = vcombine.low %v2728, %v2732
        %v5685 = vcombine.low %v2736, %v2740
        %v5686 = vcombine.low %v2744, %v2748
        %v5688 = vunpack.c.l.s4 1966171168
        %v5689 = vunpack.c.0.s8 %v5688
        %v5690 = vlaneseq
        %v5691 = vshrl.u32 %v5690, 7
        %v5692 = vsub.s32 %v5689, %v5691
        %v5693 = vrot.slane %v5683, %v5692
        %v5695 = vunpack.c.l.s4 1966171168
        %v5696 = vunpack.c.0.s8 %v5695
        %v5697 = vlaneseq
        %v5698 = vshrl.u32 %v5697, 7
        %v5699 = vsub.s32 %v5696, %v5698
        %v5700 = vrot.slane %v5684, %v5699
        %v5702 = vunpack.c.l.s4 1966171168
        %v5703 = vunpack.c.0.s8 %v5702
        %v5704 = vlaneseq
        %v5705 = vshrl.u32 %v5704, 7
        %v5706 = vsub.s32 %v5703, %v5705
        %v5707 = vrot.slane %v5685, %v5706
        %v5709 = vunpack.c.l.s4 1966171168
        %v5710 = vunpack.c.0.s8 %v5709
        %v5711 = vlaneseq
        %v5712 = vshrl.u32 %v5711, 7
        %v5713 = vsub.s32 %v5710, %v5712
        %v5714 = vrot.slane %v5686, %v5713
        %v5715 = vcombine.low %v5693, %v5700
        %v5716 = vcombine.low %v5707, %v5714
        %v5718 = vunpack.c.l.s4 1966171168
        %v5719 = vunpack.c.0.s8 %v5718
        %v5720 = vlaneseq
        %v5721 = vshrl.u32 %v5720, 7
        %v5722 = vsub.s32 %v5719, %v5721
        %v5723 = vrot.slane %v5715, %v5722
        %v5725 = vunpack.c.l.s4 1966171168
        %v5726 = vunpack.c.0.s8 %v5725
        %v5727 = vlaneseq
        %v5728 = vshrl.u32 %v5727, 7
        %v5729 = vsub.s32 %v5726, %v5728
        %v5730 = vrot.slane %v5716, %v5729
        %v5731 = vcombine.low %v5723, %v5730
        %v5732 = vcombine.low %v2752, %v2756
        %v5733 = vcombine.low %v2760, %v2764
        %v5734 = vcombine.low %v2768, %v2772
        %v5735 = vcombine.low %v2776, %v2780
        %v5737 = vunpack.c.l.s4 1966171168
        %v5738 = vunpack.c.0.s8 %v5737
        %v5739 = vlaneseq
        %v5740 = vshrl.u32 %v5739, 7
        %v5741 = vsub.s32 %v5738, %v5740
        %v5742 = vrot.slane %v5732, %v5741
        %v5744 = vunpack.c.l.s4 1966171168
        %v5745 = vunpack.c.0.s8 %v5744
        %v5746 = vlaneseq
        %v5747 = vshrl.u32 %v5746, 7
        %v5748 = vsub.s32 %v5745, %v5747
        %v5749 = vrot.slane %v5733, %v5748
        %v5751 = vunpack.c.l.s4 1966171168
        %v5752 = vunpack.c.0.s8 %v5751
        %v5753 = vlaneseq
        %v5754 = vshrl.u32 %v5753, 7
        %v5755 = vsub.s32 %v5752, %v5754
        %v5756 = vrot.slane %v5734, %v5755
        %v5758 = vunpack.c.l.s4 1966171168
        %v5759 = vunpack.c.0.s8 %v5758
        %v5760 = vlaneseq
        %v5761 = vshrl.u32 %v5760, 7
        %v5762 = vsub.s32 %v5759, %v5761
        %v5763 = vrot.slane %v5735, %v5762
        %v5764 = vcombine.low %v5742, %v5749
        %v5765 = vcombine.low %v5756, %v5763
        %v5767 = vunpack.c.l.s4 1966171168
        %v5768 = vunpack.c.0.s8 %v5767
        %v5769 = vlaneseq
        %v5770 = vshrl.u32 %v5769, 7
        %v5771 = vsub.s32 %v5768, %v5770
        %v5772 = vrot.slane %v5764, %v5771
        %v5774 = vunpack.c.l.s4 1966171168
        %v5775 = vunpack.c.0.s8 %v5774
        %v5776 = vlaneseq
        %v5777 = vshrl.u32 %v5776, 7
        %v5778 = vsub.s32 %v5775, %v5777
        %v5779 = vrot.slane %v5765, %v5778
        %v5780 = vcombine.low %v5772, %v5779
        %v5781 = vcombine.low %v2784, %v2788
        %v5782 = vcombine.low %v2792, %v2796
        %v5783 = vcombine.low %v2800, %v2804
        %v5784 = vcombine.low %v2808, %v2812
        %v5786 = vunpack.c.l.s4 1966171168
        %v5787 = vunpack.c.0.s8 %v5786
        %v5788 = vlaneseq
        %v5789 = vshrl.u32 %v5788, 7
        %v5790 = vsub.s32 %v5787, %v5789
        %v5791 = vrot.slane %v5781, %v5790
        %v5793 = vunpack.c.l.s4 1966171168
        %v5794 = vunpack.c.0.s8 %v5793
        %v5795 = vlaneseq
        %v5796 = vshrl.u32 %v5795, 7
        %v5797 = vsub.s32 %v5794, %v5796
        %v5798 = vrot.slane %v5782, %v5797
        %v5800 = vunpack.c.l.s4 1966171168
        %v5801 = vunpack.c.0.s8 %v5800
        %v5802 = vlaneseq
        %v5803 = vshrl.u32 %v5802, 7
        %v5804 = vsub.s32 %v5801, %v5803
        %v5805 = vrot.slane %v5783, %v5804
        %v5807 = vunpack.c.l.s4 1966171168
        %v5808 = vunpack.c.0.s8 %v5807
        %v5809 = vlaneseq
        %v5810 = vshrl.u32 %v5809, 7
        %v5811 = vsub.s32 %v5808, %v5810
        %v5812 = vrot.slane %v5784, %v5811
        %v5813 = vcombine.low %v5791, %v5798
        %v5814 = vcombine.low %v5805, %v5812
        %v5816 = vunpack.c.l.s4 1966171168
        %v5817 = vunpack.c.0.s8 %v5816
        %v5818 = vlaneseq
        %v5819 = vshrl.u32 %v5818, 7
        %v5820 = vsub.s32 %v5817, %v5819
        %v5821 = vrot.slane %v5813, %v5820
        %v5823 = vunpack.c.l.s4 1966171168
        %v5824 = vunpack.c.0.s8 %v5823
        %v5825 = vlaneseq
        %v5826 = vshrl.u32 %v5825, 7
        %v5827 = vsub.s32 %v5824, %v5826
        %v5828 = vrot.slane %v5814, %v5827
        %v5829 = vcombine.low %v5821, %v5828
        %v5830 = vcombine.low %v2816, %v2820
        %v5831 = vcombine.low %v2824, %v2828
        %v5832 = vcombine.low %v2832, %v2836
        %v5833 = vcombine.low %v2840, %v2844
        %v5835 = vunpack.c.l.s4 1966171168
        %v5836 = vunpack.c.0.s8 %v5835
        %v5837 = vlaneseq
        %v5838 = vshrl.u32 %v5837, 7
        %v5839 = vsub.s32 %v5836, %v5838
        %v5840 = vrot.slane %v5830, %v5839
        %v5842 = vunpack.c.l.s4 1966171168
        %v5843 = vunpack.c.0.s8 %v5842
        %v5844 = vlaneseq
        %v5845 = vshrl.u32 %v5844, 7
        %v5846 = vsub.s32 %v5843, %v5845
        %v5847 = vrot.slane %v5831, %v5846
        %v5849 = vunpack.c.l.s4 1966171168
        %v5850 = vunpack.c.0.s8 %v5849
        %v5851 = vlaneseq
        %v5852 = vshrl.u32 %v5851, 7
        %v5853 = vsub.s32 %v5850, %v5852
        %v5854 = vrot.slane %v5832, %v5853
        %v5856 = vunpack.c.l.s4 1966171168
        %v5857 = vunpack.c.0.s8 %v5856
        %v5858 = vlaneseq
        %v5859 = vshrl.u32 %v5858, 7
        %v5860 = vsub.s32 %v5857, %v5859
        %v5861 = vrot.slane %v5833, %v5860
        %v5862 = vcombine.low %v5840, %v5847
        %v5863 = vcombine.low %v5854, %v5861
        %v5865 = vunpack.c.l.s4 1966171168
        %v5866 = vunpack.c.0.s8 %v5865
        %v5867 = vlaneseq
        %v5868 = vshrl.u32 %v5867, 7
        %v5869 = vsub.s32 %v5866, %v5868
        %v5870 = vrot.slane %v5862, %v5869
        %v5872 = vunpack.c.l.s4 1966171168
        %v5873 = vunpack.c.0.s8 %v5872
        %v5874 = vlaneseq
        %v5875 = vshrl.u32 %v5874, 7
        %v5876 = vsub.s32 %v5873, %v5875
        %v5877 = vrot.slane %v5863, %v5876
        %v5878 = vcombine.low %v5870, %v5877
        %v5879 = vcombine.low %v2848, %v2852
        %v5880 = vcombine.low %v2856, %v2860
        %v5881 = vcombine.low %v2864, %v2868
        %v5882 = vcombine.low %v2872, %v2876
        %v5884 = vunpack.c.l.s4 1966171168
        %v5885 = vunpack.c.0.s8 %v5884
        %v5886 = vlaneseq
        %v5887 = vshrl.u32 %v5886, 7
        %v5888 = vsub.s32 %v5885, %v5887
        %v5889 = vrot.slane %v5879, %v5888
        %v5891 = vunpack.c.l.s4 1966171168
        %v5892 = vunpack.c.0.s8 %v5891
        %v5893 = vlaneseq
        %v5894 = vshrl.u32 %v5893, 7
        %v5895 = vsub.s32 %v5892, %v5894
        %v5896 = vrot.slane %v5880, %v5895
        %v5898 = vunpack.c.l.s4 1966171168
        %v5899 = vunpack.c.0.s8 %v5898
        %v5900 = vlaneseq
        %v5901 = vshrl.u32 %v5900, 7
        %v5902 = vsub.s32 %v5899, %v5901
        %v5903 = vrot.slane %v5881, %v5902
        %v5905 = vunpack.c.l.s4 1966171168
        %v5906 = vunpack.c.0.s8 %v5905
        %v5907 = vlaneseq
        %v5908 = vshrl.u32 %v5907, 7
        %v5909 = vsub.s32 %v5906, %v5908
        %v5910 = vrot.slane %v5882, %v5909
        %v5911 = vcombine.low %v5889, %v5896
        %v5912 = vcombine.low %v5903, %v5910
        %v5914 = vunpack.c.l.s4 1966171168
        %v5915 = vunpack.c.0.s8 %v5914
        %v5916 = vlaneseq
        %v5917 = vshrl.u32 %v5916, 7
        %v5918 = vsub.s32 %v5915, %v5917
        %v5919 = vrot.slane %v5911, %v5918
        %v5921 = vunpack.c.l.s4 1966171168
        %v5922 = vunpack.c.0.s8 %v5921
        %v5923 = vlaneseq
        %v5924 = vshrl.u32 %v5923, 7
        %v5925 = vsub.s32 %v5922, %v5924
        %v5926 = vrot.slane %v5912, %v5925
        %v5927 = vcombine.low %v5919, %v5926
        %v5928 = vcombine.low %v2880, %v2884
        %v5929 = vcombine.low %v2888, %v2892
        %v5930 = vcombine.low %v2896, %v2900
        %v5931 = vcombine.low %v2904, %v2908
        %v5933 = vunpack.c.l.s4 1966171168
        %v5934 = vunpack.c.0.s8 %v5933
        %v5935 = vlaneseq
        %v5936 = vshrl.u32 %v5935, 7
        %v5937 = vsub.s32 %v5934, %v5936
        %v5938 = vrot.slane %v5928, %v5937
        %v5940 = vunpack.c.l.s4 1966171168
        %v5941 = vunpack.c.0.s8 %v5940
        %v5942 = vlaneseq
        %v5943 = vshrl.u32 %v5942, 7
        %v5944 = vsub.s32 %v5941, %v5943
        %v5945 = vrot.slane %v5929, %v5944
        %v5947 = vunpack.c.l.s4 1966171168
        %v5948 = vunpack.c.0.s8 %v5947
        %v5949 = vlaneseq
        %v5950 = vshrl.u32 %v5949, 7
        %v5951 = vsub.s32 %v5948, %v5950
        %v5952 = vrot.slane %v5930, %v5951
        %v5954 = vunpack.c.l.s4 1966171168
        %v5955 = vunpack.c.0.s8 %v5954
        %v5956 = vlaneseq
        %v5957 = vshrl.u32 %v5956, 7
        %v5958 = vsub.s32 %v5955, %v5957
        %v5959 = vrot.slane %v5931, %v5958
        %v5960 = vcombine.low %v5938, %v5945
        %v5961 = vcombine.low %v5952, %v5959
        %v5963 = vunpack.c.l.s4 1966171168
        %v5964 = vunpack.c.0.s8 %v5963
        %v5965 = vlaneseq
        %v5966 = vshrl.u32 %v5965, 7
        %v5967 = vsub.s32 %v5964, %v5966
        %v5968 = vrot.slane %v5960, %v5967
        %v5970 = vunpack.c.l.s4 1966171168
        %v5971 = vunpack.c.0.s8 %v5970
        %v5972 = vlaneseq
        %v5973 = vshrl.u32 %v5972, 7
        %v5974 = vsub.s32 %v5971, %v5973
        %v5975 = vrot.slane %v5961, %v5974
        %v5976 = vcombine.low %v5968, %v5975
        %v5977 = vcombine.low %v2912, %v2916
        %v5978 = vcombine.low %v2920, %v2924
        %v5979 = vcombine.low %v2928, %v2932
        %v5980 = vcombine.low %v2936, %v2940
        %v5982 = vunpack.c.l.s4 1966171168
        %v5983 = vunpack.c.0.s8 %v5982
        %v5984 = vlaneseq
        %v5985 = vshrl.u32 %v5984, 7
        %v5986 = vsub.s32 %v5983, %v5985
        %v5987 = vrot.slane %v5977, %v5986
        %v5989 = vunpack.c.l.s4 1966171168
        %v5990 = vunpack.c.0.s8 %v5989
        %v5991 = vlaneseq
        %v5992 = vshrl.u32 %v5991, 7
        %v5993 = vsub.s32 %v5990, %v5992
        %v5994 = vrot.slane %v5978, %v5993
        %v5996 = vunpack.c.l.s4 1966171168
        %v5997 = vunpack.c.0.s8 %v5996
        %v5998 = vlaneseq
        %v5999 = vshrl.u32 %v5998, 7
        %v6000 = vsub.s32 %v5997, %v5999
        %v6001 = vrot.slane %v5979, %v6000
        %v6003 = vunpack.c.l.s4 1966171168
        %v6004 = vunpack.c.0.s8 %v6003
        %v6005 = vlaneseq
        %v6006 = vshrl.u32 %v6005, 7
        %v6007 = vsub.s32 %v6004, %v6006
        %v6008 = vrot.slane %v5980, %v6007
        %v6009 = vcombine.low %v5987, %v5994
        %v6010 = vcombine.low %v6001, %v6008
        %v6012 = vunpack.c.l.s4 1966171168
        %v6013 = vunpack.c.0.s8 %v6012
        %v6014 = vlaneseq
        %v6015 = vshrl.u32 %v6014, 7
        %v6016 = vsub.s32 %v6013, %v6015
        %v6017 = vrot.slane %v6009, %v6016
        %v6019 = vunpack.c.l.s4 1966171168
        %v6020 = vunpack.c.0.s8 %v6019
        %v6021 = vlaneseq
        %v6022 = vshrl.u32 %v6021, 7
        %v6023 = vsub.s32 %v6020, %v6022
        %v6024 = vrot.slane %v6010, %v6023
        %v6025 = vcombine.low %v6017, %v6024
        %v6026 = vcombine.low %v2944, %v2948
        %v6027 = vcombine.low %v2952, %v2956
        %v6028 = vcombine.low %v2960, %v2964
        %v6029 = vcombine.low %v2968, %v2972
        %v6031 = vunpack.c.l.s4 1966171168
        %v6032 = vunpack.c.0.s8 %v6031
        %v6033 = vlaneseq
        %v6034 = vshrl.u32 %v6033, 7
        %v6035 = vsub.s32 %v6032, %v6034
        %v6036 = vrot.slane %v6026, %v6035
        %v6038 = vunpack.c.l.s4 1966171168
        %v6039 = vunpack.c.0.s8 %v6038
        %v6040 = vlaneseq
        %v6041 = vshrl.u32 %v6040, 7
        %v6042 = vsub.s32 %v6039, %v6041
        %v6043 = vrot.slane %v6027, %v6042
        %v6045 = vunpack.c.l.s4 1966171168
        %v6046 = vunpack.c.0.s8 %v6045
        %v6047 = vlaneseq
        %v6048 = vshrl.u32 %v6047, 7
        %v6049 = vsub.s32 %v6046, %v6048
        %v6050 = vrot.slane %v6028, %v6049
        %v6052 = vunpack.c.l.s4 1966171168
        %v6053 = vunpack.c.0.s8 %v6052
        %v6054 = vlaneseq
        %v6055 = vshrl.u32 %v6054, 7
        %v6056 = vsub.s32 %v6053, %v6055
        %v6057 = vrot.slane %v6029, %v6056
        %v6058 = vcombine.low %v6036, %v6043
        %v6059 = vcombine.low %v6050, %v6057
        %v6061 = vunpack.c.l.s4 1966171168
        %v6062 = vunpack.c.0.s8 %v6061
        %v6063 = vlaneseq
        %v6064 = vshrl.u32 %v6063, 7
        %v6065 = vsub.s32 %v6062, %v6064
        %v6066 = vrot.slane %v6058, %v6065
        %v6068 = vunpack.c.l.s4 1966171168
        %v6069 = vunpack.c.0.s8 %v6068
        %v6070 = vlaneseq
        %v6071 = vshrl.u32 %v6070, 7
        %v6072 = vsub.s32 %v6069, %v6071
        %v6073 = vrot.slane %v6059, %v6072
        %v6074 = vcombine.low %v6066, %v6073
        %v6075 = vcombine.low %v2976, %v2980
        %v6076 = vcombine.low %v2984, %v2988
        %v6077 = vcombine.low %v2992, %v2996
        %v6078 = vcombine.low %v3000, %v3004
        %v6080 = vunpack.c.l.s4 1966171168
        %v6081 = vunpack.c.0.s8 %v6080
        %v6082 = vlaneseq
        %v6083 = vshrl.u32 %v6082, 7
        %v6084 = vsub.s32 %v6081, %v6083
        %v6085 = vrot.slane %v6075, %v6084
        %v6087 = vunpack.c.l.s4 1966171168
        %v6088 = vunpack.c.0.s8 %v6087
        %v6089 = vlaneseq
        %v6090 = vshrl.u32 %v6089, 7
        %v6091 = vsub.s32 %v6088, %v6090
        %v6092 = vrot.slane %v6076, %v6091
        %v6094 = vunpack.c.l.s4 1966171168
        %v6095 = vunpack.c.0.s8 %v6094
        %v6096 = vlaneseq
        %v6097 = vshrl.u32 %v6096, 7
        %v6098 = vsub.s32 %v6095, %v6097
        %v6099 = vrot.slane %v6077, %v6098
        %v6101 = vunpack.c.l.s4 1966171168
        %v6102 = vunpack.c.0.s8 %v6101
        %v6103 = vlaneseq
        %v6104 = vshrl.u32 %v6103, 7
        %v6105 = vsub.s32 %v6102, %v6104
        %v6106 = vrot.slane %v6078, %v6105
        %v6107 = vcombine.low %v6085, %v6092
        %v6108 = vcombine.low %v6099, %v6106
        %v6110 = vunpack.c.l.s4 1966171168
        %v6111 = vunpack.c.0.s8 %v6110
        %v6112 = vlaneseq
        %v6113 = vshrl.u32 %v6112, 7
        %v6114 = vsub.s32 %v6111, %v6113
        %v6115 = vrot.slane %v6107, %v6114
        %v6117 = vunpack.c.l.s4 1966171168
        %v6118 = vunpack.c.0.s8 %v6117
        %v6119 = vlaneseq
        %v6120 = vshrl.u32 %v6119, 7
        %v6121 = vsub.s32 %v6118, %v6120
        %v6122 = vrot.slane %v6108, %v6121
        %v6123 = vcombine.low %v6115, %v6122
        %v6124 = vcombine.low %v3008, %v3012
        %v6125 = vcombine.low %v3016, %v3020
        %v6126 = vcombine.low %v3024, %v3028
        %v6127 = vcombine.low %v3032, %v3036
        %v6129 = vunpack.c.l.s4 1966171168
        %v6130 = vunpack.c.0.s8 %v6129
        %v6131 = vlaneseq
        %v6132 = vshrl.u32 %v6131, 7
        %v6133 = vsub.s32 %v6130, %v6132
        %v6134 = vrot.slane %v6124, %v6133
        %v6136 = vunpack.c.l.s4 1966171168
        %v6137 = vunpack.c.0.s8 %v6136
        %v6138 = vlaneseq
        %v6139 = vshrl.u32 %v6138, 7
        %v6140 = vsub.s32 %v6137, %v6139
        %v6141 = vrot.slane %v6125, %v6140
        %v6143 = vunpack.c.l.s4 1966171168
        %v6144 = vunpack.c.0.s8 %v6143
        %v6145 = vlaneseq
        %v6146 = vshrl.u32 %v6145, 7
        %v6147 = vsub.s32 %v6144, %v6146
        %v6148 = vrot.slane %v6126, %v6147
        %v6150 = vunpack.c.l.s4 1966171168
        %v6151 = vunpack.c.0.s8 %v6150
        %v6152 = vlaneseq
        %v6153 = vshrl.u32 %v6152, 7
        %v6154 = vsub.s32 %v6151, %v6153
        %v6155 = vrot.slane %v6127, %v6154
        %v6156 = vcombine.low %v6134, %v6141
        %v6157 = vcombine.low %v6148, %v6155
        %v6159 = vunpack.c.l.s4 1966171168
        %v6160 = vunpack.c.0.s8 %v6159
        %v6161 = vlaneseq
        %v6162 = vshrl.u32 %v6161, 7
        %v6163 = vsub.s32 %v6160, %v6162
        %v6164 = vrot.slane %v6156, %v6163
        %v6166 = vunpack.c.l.s4 1966171168
        %v6167 = vunpack.c.0.s8 %v6166
        %v6168 = vlaneseq
        %v6169 = vshrl.u32 %v6168, 7
        %v6170 = vsub.s32 %v6167, %v6169
        %v6171 = vrot.slane %v6157, %v6170
        %v6172 = vcombine.low %v6164, %v6171
        %6173 = vset.pattern.permute.xlu0 0
        %6174 = vperm.xlu0 %6173, %v3085
        %v6175 = vpop.permute.xlu0 %6174
        %6176 = vset.pattern.permute.xlu0 0
        %6177 = vperm.xlu0 %6176, %v3134
        %v6178 = vpop.permute.xlu0 %6177
        %6179 = vset.pattern.permute.xlu0 0
        %6180 = vperm.xlu0 %6179, %v3183
        %v6181 = vpop.permute.xlu0 %6180
        %6182 = vset.pattern.permute.xlu0 0
        %6183 = vperm.xlu0 %6182, %v3232
        %v6184 = vpop.permute.xlu0 %6183
        %6185 = vset.pattern.permute.xlu0 0
        %6186 = vperm.xlu0 %6185, %v3281
        %v6187 = vpop.permute.xlu0 %6186
        %6188 = vset.pattern.permute.xlu0 0
        %6189 = vperm.xlu0 %6188, %v3330
        %v6190 = vpop.permute.xlu0 %6189
        %6191 = vset.pattern.permute.xlu0 0
        %6192 = vperm.xlu0 %6191, %v3379
        %v6193 = vpop.permute.xlu0 %6192
        %6194 = vset.pattern.permute.xlu0 0
        %6195 = vperm.xlu0 %6194, %v3428
        %v6196 = vpop.permute.xlu0 %6195
        %6197 = vset.pattern.permute.xlu0 0
        %6198 = vperm.xlu0 %6197, %v3477
        %v6199 = vpop.permute.xlu0 %6198
        %6200 = vset.pattern.permute.xlu0 0
        %6201 = vperm.xlu0 %6200, %v3526
        %v6202 = vpop.permute.xlu0 %6201
        %6203 = vset.pattern.permute.xlu0 0
        %6204 = vperm.xlu0 %6203, %v3575
        %v6205 = vpop.permute.xlu0 %6204
        %6206 = vset.pattern.permute.xlu0 0
        %6207 = vperm.xlu0 %6206, %v3624
        %v6208 = vpop.permute.xlu0 %6207
        %6209 = vset.pattern.permute.xlu0 0
        %6210 = vperm.xlu0 %6209, %v3673
        %v6211 = vpop.permute.xlu0 %6210
        %6212 = vset.pattern.permute.xlu0 0
        %6213 = vperm.xlu0 %6212, %v3722
        %v6214 = vpop.permute.xlu0 %6213
        %6215 = vset.pattern.permute.xlu0 0
        %6216 = vperm.xlu0 %6215, %v3771
        %v6217 = vpop.permute.xlu0 %6216
        %6218 = vset.pattern.permute.xlu0 0
        %6219 = vperm.xlu0 %6218, %v3820
        %v6220 = vpop.permute.xlu0 %6219
        %6221 = vset.pattern.permute.xlu0 0
        %6222 = vperm.xlu0 %6221, %v3869
        %v6223 = vpop.permute.xlu0 %6222
        %6224 = vset.pattern.permute.xlu0 0
        %6225 = vperm.xlu0 %6224, %v3918
        %v6226 = vpop.permute.xlu0 %6225
        %6227 = vset.pattern.permute.xlu0 0
        %6228 = vperm.xlu0 %6227, %v3967
        %v6229 = vpop.permute.xlu0 %6228
        %6230 = vset.pattern.permute.xlu0 0
        %6231 = vperm.xlu0 %6230, %v4016
        %v6232 = vpop.permute.xlu0 %6231
        %6233 = vset.pattern.permute.xlu0 0
        %6234 = vperm.xlu0 %6233, %v4065
        %v6235 = vpop.permute.xlu0 %6234
        %6236 = vset.pattern.permute.xlu0 0
        %6237 = vperm.xlu0 %6236, %v4114
        %v6238 = vpop.permute.xlu0 %6237
        %6239 = vset.pattern.permute.xlu0 0
        %6240 = vperm.xlu0 %6239, %v4163
        %v6241 = vpop.permute.xlu0 %6240
        %6242 = vset.pattern.permute.xlu0 0
        %6243 = vperm.xlu0 %6242, %v4212
        %v6244 = vpop.permute.xlu0 %6243
        %6245 = vset.pattern.permute.xlu0 0
        %6246 = vperm.xlu0 %6245, %v4261
        %v6247 = vpop.permute.xlu0 %6246
        %6248 = vset.pattern.permute.xlu0 0
        %6249 = vperm.xlu0 %6248, %v4310
        %v6250 = vpop.permute.xlu0 %6249
        %6251 = vset.pattern.permute.xlu0 0
        %6252 = vperm.xlu0 %6251, %v4359
        %v6253 = vpop.permute.xlu0 %6252
        %6254 = vset.pattern.permute.xlu0 0
        %6255 = vperm.xlu0 %6254, %v4408
        %v6256 = vpop.permute.xlu0 %6255
        %6257 = vset.pattern.permute.xlu0 0
        %6258 = vperm.xlu0 %6257, %v4457
        %v6259 = vpop.permute.xlu0 %6258
        %6260 = vset.pattern.permute.xlu0 0
        %6261 = vperm.xlu0 %6260, %v4506
        %v6262 = vpop.permute.xlu0 %6261
        %6263 = vset.pattern.permute.xlu0 0
        %6264 = vperm.xlu0 %6263, %v4555
        %v6265 = vpop.permute.xlu0 %6264
        %6266 = vset.pattern.permute.xlu0 0
        %6267 = vperm.xlu0 %6266, %v4604
        %v6268 = vpop.permute.xlu0 %6267
        %6269 = vset.pattern.permute.xlu0 0
        %6270 = vperm.xlu0 %6269, %v4653
        %v6271 = vpop.permute.xlu0 %6270
        %6272 = vset.pattern.permute.xlu0 0
        %6273 = vperm.xlu0 %6272, %v4702
        %v6274 = vpop.permute.xlu0 %6273
        %6275 = vset.pattern.permute.xlu0 0
        %6276 = vperm.xlu0 %6275, %v4751
        %v6277 = vpop.permute.xlu0 %6276
        %6278 = vset.pattern.permute.xlu0 0
        %6279 = vperm.xlu0 %6278, %v4800
        %v6280 = vpop.permute.xlu0 %6279
        %6281 = vset.pattern.permute.xlu0 0
        %6282 = vperm.xlu0 %6281, %v4849
        %v6283 = vpop.permute.xlu0 %6282
        %6284 = vset.pattern.permute.xlu0 0
        %6285 = vperm.xlu0 %6284, %v4898
        %v6286 = vpop.permute.xlu0 %6285
        %6287 = vset.pattern.permute.xlu0 0
        %6288 = vperm.xlu0 %6287, %v4947
        %v6289 = vpop.permute.xlu0 %6288
        %6290 = vset.pattern.permute.xlu0 0
        %6291 = vperm.xlu0 %6290, %v4996
        %v6292 = vpop.permute.xlu0 %6291
        %6293 = vset.pattern.permute.xlu0 0
        %6294 = vperm.xlu0 %6293, %v5045
        %v6295 = vpop.permute.xlu0 %6294
        %6296 = vset.pattern.permute.xlu0 0
        %6297 = vperm.xlu0 %6296, %v5094
        %v6298 = vpop.permute.xlu0 %6297
        %6299 = vset.pattern.permute.xlu0 0
        %6300 = vperm.xlu0 %6299, %v5143
        %v6301 = vpop.permute.xlu0 %6300
        %6302 = vset.pattern.permute.xlu0 0
        %6303 = vperm.xlu0 %6302, %v5192
        %v6304 = vpop.permute.xlu0 %6303
        %6305 = vset.pattern.permute.xlu0 0
        %6306 = vperm.xlu0 %6305, %v5241
        %v6307 = vpop.permute.xlu0 %6306
        %6308 = vset.pattern.permute.xlu0 0
        %6309 = vperm.xlu0 %6308, %v5290
        %v6310 = vpop.permute.xlu0 %6309
        %6311 = vset.pattern.permute.xlu0 0
        %6312 = vperm.xlu0 %6311, %v5339
        %v6313 = vpop.permute.xlu0 %6312
        %6314 = vset.pattern.permute.xlu0 0
        %6315 = vperm.xlu0 %6314, %v5388
        %v6316 = vpop.permute.xlu0 %6315
        %6317 = vset.pattern.permute.xlu0 0
        %6318 = vperm.xlu0 %6317, %v5437
        %v6319 = vpop.permute.xlu0 %6318
        %6320 = vset.pattern.permute.xlu0 0
        %6321 = vperm.xlu0 %6320, %v5486
        %v6322 = vpop.permute.xlu0 %6321
        %6323 = vset.pattern.permute.xlu0 0
        %6324 = vperm.xlu0 %6323, %v5535
        %v6325 = vpop.permute.xlu0 %6324
        %6326 = vset.pattern.permute.xlu0 0
        %6327 = vperm.xlu0 %6326, %v5584
        %v6328 = vpop.permute.xlu0 %6327
        %6329 = vset.pattern.permute.xlu0 0
        %6330 = vperm.xlu0 %6329, %v5633
        %v6331 = vpop.permute.xlu0 %6330
        %6332 = vset.pattern.permute.xlu0 0
        %6333 = vperm.xlu0 %6332, %v5682
        %v6334 = vpop.permute.xlu0 %6333
        %6335 = vset.pattern.permute.xlu0 0
        %6336 = vperm.xlu0 %6335, %v5731
        %v6337 = vpop.permute.xlu0 %6336
        %6338 = vset.pattern.permute.xlu0 0
        %6339 = vperm.xlu0 %6338, %v5780
        %v6340 = vpop.permute.xlu0 %6339
        %6341 = vset.pattern.permute.xlu0 0
        %6342 = vperm.xlu0 %6341, %v5829
        %v6343 = vpop.permute.xlu0 %6342
        %6344 = vset.pattern.permute.xlu0 0
        %6345 = vperm.xlu0 %6344, %v5878
        %v6346 = vpop.permute.xlu0 %6345
        %6347 = vset.pattern.permute.xlu0 0
        %6348 = vperm.xlu0 %6347, %v5927
        %v6349 = vpop.permute.xlu0 %6348
        %6350 = vset.pattern.permute.xlu0 0
        %6351 = vperm.xlu0 %6350, %v5976
        %v6352 = vpop.permute.xlu0 %6351
        %6353 = vset.pattern.permute.xlu0 0
        %6354 = vperm.xlu0 %6353, %v6025
        %v6355 = vpop.permute.xlu0 %6354
        %6356 = vset.pattern.permute.xlu0 0
        %6357 = vperm.xlu0 %6356, %v6074
        %v6358 = vpop.permute.xlu0 %6357
        %6359 = vset.pattern.permute.xlu0 0
        %6360 = vperm.xlu0 %6359, %v6123
        %v6361 = vpop.permute.xlu0 %6360
        %6362 = vset.pattern.permute.xlu0 0
        %6363 = vperm.xlu0 %6362, %v6172
        %v6364 = vpop.permute.xlu0 %6363
        %v6365 = vlaneseq
        %v6366 = vand.u32 %v6365, 127
        %v6367 = vlaneseq
        %v6368 = vshrl.u32 %v6367, 7
        %v6369 = vsub.s32 %v6366, %v6368
        %v6370 = vrot.slane %v6175, %v6369
        %v6371 = vadd.s32 %v6366, 4294967288
        %v6372 = vlaneseq
        %v6373 = vshrl.u32 %v6372, 7
        %v6374 = vsub.s32 %v6371, %v6373
        %v6375 = vrot.slane %v6178, %v6374
        %vm6376 = vcmask 130112
        %v6377 = vsel %vm6376, %v6375, %v6370
        %v6378 = vadd.s32 %v6366, 4294967280
        %v6379 = vlaneseq
        %v6380 = vshrl.u32 %v6379, 7
        %v6381 = vsub.s32 %v6378, %v6380
        %v6382 = vrot.slane %v6181, %v6381
        %vm6383 = vcmask 195712
        %v6384 = vsel %vm6383, %v6382, %v6377
        %v6385 = vadd.s32 %v6366, 4294967272
        %v6386 = vlaneseq
        %v6387 = vshrl.u32 %v6386, 7
        %v6388 = vsub.s32 %v6385, %v6387
        %v6389 = vrot.slane %v6184, %v6388
        %vm6390 = vcmask 261312
        %v6391 = vsel %vm6390, %v6389, %v6384
        %v6392 = vadd.s32 %v6366, 4294967264
        %v6393 = vlaneseq
        %v6394 = vshrl.u32 %v6393, 7
        %v6395 = vsub.s32 %v6392, %v6394
        %v6396 = vrot.slane %v6187, %v6395
        %vm6397 = vcmask 326912
        %v6398 = vsel %vm6397, %v6396, %v6391
        %v6399 = vadd.s32 %v6366, 4294967256
        %v6400 = vlaneseq
        %v6401 = vshrl.u32 %v6400, 7
        %v6402 = vsub.s32 %v6399, %v6401
        %v6403 = vrot.slane %v6190, %v6402
        %vm6404 = vcmask 392512
        %v6405 = vsel %vm6404, %v6403, %v6398
        %v6406 = vadd.s32 %v6366, 4294967248
        %v6407 = vlaneseq
        %v6408 = vshrl.u32 %v6407, 7
        %v6409 = vsub.s32 %v6406, %v6408
        %v6410 = vrot.slane %v6193, %v6409
        %vm6411 = vcmask 458112
        %v6412 = vsel %vm6411, %v6410, %v6405
        %v6413 = vadd.s32 %v6366, 4294967240
        %v6414 = vlaneseq
        %v6415 = vshrl.u32 %v6414, 7
        %v6416 = vsub.s32 %v6413, %v6415
        %v6417 = vrot.slane %v6196, %v6416
        %vm6418 = vcmask 523712
        %v6419 = vsel %vm6418, %v6417, %v6412
        %v6420 = vadd.s32 %v6366, 4294967232
        %v6421 = vlaneseq
        %v6422 = vshrl.u32 %v6421, 7
        %v6423 = vsub.s32 %v6420, %v6422
        %v6424 = vrot.slane %v6199, %v6423
        %vm6425 = vcmask 589312
        %v6426 = vsel %vm6425, %v6424, %v6419
        %v6427 = vadd.s32 %v6366, 4294967224
        %v6428 = vlaneseq
        %v6429 = vshrl.u32 %v6428, 7
        %v6430 = vsub.s32 %v6427, %v6429
        %v6431 = vrot.slane %v6202, %v6430
        %vm6432 = vcmask 654912
        %v6433 = vsel %vm6432, %v6431, %v6426
        %v6434 = vadd.s32 %v6366, 4294967216
        %v6435 = vlaneseq
        %v6436 = vshrl.u32 %v6435, 7
        %v6437 = vsub.s32 %v6434, %v6436
        %v6438 = vrot.slane %v6205, %v6437
        %vm6439 = vcmask 720512
        %v6440 = vsel %vm6439, %v6438, %v6433
        %v6441 = vadd.s32 %v6366, 4294967208
        %v6442 = vlaneseq
        %v6443 = vshrl.u32 %v6442, 7
        %v6444 = vsub.s32 %v6441, %v6443
        %v6445 = vrot.slane %v6208, %v6444
        %vm6446 = vcmask 786112
        %v6447 = vsel %vm6446, %v6445, %v6440
        %v6448 = vadd.s32 %v6366, 4294967200
        %v6449 = vlaneseq
        %v6450 = vshrl.u32 %v6449, 7
        %v6451 = vsub.s32 %v6448, %v6450
        %v6452 = vrot.slane %v6211, %v6451
        %vm6453 = vcmask 851712
        %v6454 = vsel %vm6453, %v6452, %v6447
        %v6455 = vadd.s32 %v6366, 4294967192
        %v6456 = vlaneseq
        %v6457 = vshrl.u32 %v6456, 7
        %v6458 = vsub.s32 %v6455, %v6457
        %v6459 = vrot.slane %v6214, %v6458
        %vm6460 = vcmask 917312
        %v6461 = vsel %vm6460, %v6459, %v6454
        %v6462 = vadd.s32 %v6366, 4294967184
        %v6463 = vlaneseq
        %v6464 = vshrl.u32 %v6463, 7
        %v6465 = vsub.s32 %v6462, %v6464
        %v6466 = vrot.slane %v6217, %v6465
        %vm6467 = vcmask 982912
        %v6468 = vsel %vm6467, %v6466, %v6461
        %v6469 = vadd.s32 %v6366, 4294967176
        %v6470 = vlaneseq
        %v6471 = vshrl.u32 %v6470, 7
        %v6472 = vsub.s32 %v6469, %v6471
        %v6473 = vrot.slane %v6220, %v6472
        %vm6474 = vcmask 1048512
        %v6475 = vsel %vm6474, %v6473, %v6468
        %v6476 = vlaneseq
        %v6477 = vshrl.u32 %v6476, 7
        %v6478 = vsub.s32 %v6366, %v6477
        %v6479 = vrot.slane %v6223, %v6478
        %v6480 = vlaneseq
        %v6481 = vshrl.u32 %v6480, 7
        %v6482 = vsub.s32 %v6371, %v6481
        %v6483 = vrot.slane %v6226, %v6482
        %v6484 = vsel %vm6376, %v6483, %v6479
        %v6485 = vlaneseq
        %v6486 = vshrl.u32 %v6485, 7
        %v6487 = vsub.s32 %v6378, %v6486
        %v6488 = vrot.slane %v6229, %v6487
        %v6489 = vsel %vm6383, %v6488, %v6484
        %v6490 = vlaneseq
        %v6491 = vshrl.u32 %v6490, 7
        %v6492 = vsub.s32 %v6385, %v6491
        %v6493 = vrot.slane %v6232, %v6492
        %v6494 = vsel %vm6390, %v6493, %v6489
        %v6495 = vlaneseq
        %v6496 = vshrl.u32 %v6495, 7
        %v6497 = vsub.s32 %v6392, %v6496
        %v6498 = vrot.slane %v6235, %v6497
        %v6499 = vsel %vm6397, %v6498, %v6494
        %v6500 = vlaneseq
        %v6501 = vshrl.u32 %v6500, 7
        %v6502 = vsub.s32 %v6399, %v6501
        %v6503 = vrot.slane %v6238, %v6502
        %v6504 = vsel %vm6404, %v6503, %v6499
        %v6505 = vlaneseq
        %v6506 = vshrl.u32 %v6505, 7
        %v6507 = vsub.s32 %v6406, %v6506
        %v6508 = vrot.slane %v6241, %v6507
        %v6509 = vsel %vm6411, %v6508, %v6504
        %v6510 = vlaneseq
        %v6511 = vshrl.u32 %v6510, 7
        %v6512 = vsub.s32 %v6413, %v6511
        %v6513 = vrot.slane %v6244, %v6512
        %v6514 = vsel %vm6418, %v6513, %v6509
        %v6515 = vlaneseq
        %v6516 = vshrl.u32 %v6515, 7
        %v6517 = vsub.s32 %v6420, %v6516
        %v6518 = vrot.slane %v6247, %v6517
        %v6519 = vsel %vm6425, %v6518, %v6514
        %v6520 = vlaneseq
        %v6521 = vshrl.u32 %v6520, 7
        %v6522 = vsub.s32 %v6427, %v6521
        %v6523 = vrot.slane %v6250, %v6522
        %v6524 = vsel %vm6432, %v6523, %v6519
        %v6525 = vlaneseq
        %v6526 = vshrl.u32 %v6525, 7
        %v6527 = vsub.s32 %v6434, %v6526
        %v6528 = vrot.slane %v6253, %v6527
        %v6529 = vsel %vm6439, %v6528, %v6524
        %v6530 = vlaneseq
        %v6531 = vshrl.u32 %v6530, 7
        %v6532 = vsub.s32 %v6441, %v6531
        %v6533 = vrot.slane %v6256, %v6532
        %v6534 = vsel %vm6446, %v6533, %v6529
        %v6535 = vlaneseq
        %v6536 = vshrl.u32 %v6535, 7
        %v6537 = vsub.s32 %v6448, %v6536
        %v6538 = vrot.slane %v6259, %v6537
        %v6539 = vsel %vm6453, %v6538, %v6534
        %v6540 = vlaneseq
        %v6541 = vshrl.u32 %v6540, 7
        %v6542 = vsub.s32 %v6455, %v6541
        %v6543 = vrot.slane %v6262, %v6542
        %v6544 = vsel %vm6460, %v6543, %v6539
        %v6545 = vlaneseq
        %v6546 = vshrl.u32 %v6545, 7
        %v6547 = vsub.s32 %v6462, %v6546
        %v6548 = vrot.slane %v6265, %v6547
        %v6549 = vsel %vm6467, %v6548, %v6544
        %v6550 = vlaneseq
        %v6551 = vshrl.u32 %v6550, 7
        %v6552 = vsub.s32 %v6469, %v6551
        %v6553 = vrot.slane %v6268, %v6552
        %v6554 = vsel %vm6474, %v6553, %v6549
        %v6555 = vlaneseq
        %v6556 = vshrl.u32 %v6555, 7
        %v6557 = vsub.s32 %v6366, %v6556
        %v6558 = vrot.slane %v6271, %v6557
        %v6559 = vlaneseq
        %v6560 = vshrl.u32 %v6559, 7
        %v6561 = vsub.s32 %v6371, %v6560
        %v6562 = vrot.slane %v6274, %v6561
        %v6563 = vsel %vm6376, %v6562, %v6558
        %v6564 = vlaneseq
        %v6565 = vshrl.u32 %v6564, 7
        %v6566 = vsub.s32 %v6378, %v6565
        %v6567 = vrot.slane %v6277, %v6566
        %v6568 = vsel %vm6383, %v6567, %v6563
        %v6569 = vlaneseq
        %v6570 = vshrl.u32 %v6569, 7
        %v6571 = vsub.s32 %v6385, %v6570
        %v6572 = vrot.slane %v6280, %v6571
        %v6573 = vsel %vm6390, %v6572, %v6568
        %v6574 = vlaneseq
        %v6575 = vshrl.u32 %v6574, 7
        %v6576 = vsub.s32 %v6392, %v6575
        %v6577 = vrot.slane %v6283, %v6576
        %v6578 = vsel %vm6397, %v6577, %v6573
        %v6579 = vlaneseq
        %v6580 = vshrl.u32 %v6579, 7
        %v6581 = vsub.s32 %v6399, %v6580
        %v6582 = vrot.slane %v6286, %v6581
        %v6583 = vsel %vm6404, %v6582, %v6578
        %v6584 = vlaneseq
        %v6585 = vshrl.u32 %v6584, 7
        %v6586 = vsub.s32 %v6406, %v6585
        %v6587 = vrot.slane %v6289, %v6586
        %v6588 = vsel %vm6411, %v6587, %v6583
        %v6589 = vlaneseq
        %v6590 = vshrl.u32 %v6589, 7
        %v6591 = vsub.s32 %v6413, %v6590
        %v6592 = vrot.slane %v6292, %v6591
        %v6593 = vsel %vm6418, %v6592, %v6588
        %v6594 = vlaneseq
        %v6595 = vshrl.u32 %v6594, 7
        %v6596 = vsub.s32 %v6420, %v6595
        %v6597 = vrot.slane %v6295, %v6596
        %v6598 = vsel %vm6425, %v6597, %v6593
        %v6599 = vlaneseq
        %v6600 = vshrl.u32 %v6599, 7
        %v6601 = vsub.s32 %v6427, %v6600
        %v6602 = vrot.slane %v6298, %v6601
        %v6603 = vsel %vm6432, %v6602, %v6598
        %v6604 = vlaneseq
        %v6605 = vshrl.u32 %v6604, 7
        %v6606 = vsub.s32 %v6434, %v6605
        %v6607 = vrot.slane %v6301, %v6606
        %v6608 = vsel %vm6439, %v6607, %v6603
        %v6609 = vlaneseq
        %v6610 = vshrl.u32 %v6609, 7
        %v6611 = vsub.s32 %v6441, %v6610
        %v6612 = vrot.slane %v6304, %v6611
        %v6613 = vsel %vm6446, %v6612, %v6608
        %v6614 = vlaneseq
        %v6615 = vshrl.u32 %v6614, 7
        %v6616 = vsub.s32 %v6448, %v6615
        %v6617 = vrot.slane %v6307, %v6616
        %v6618 = vsel %vm6453, %v6617, %v6613
        %v6619 = vlaneseq
        %v6620 = vshrl.u32 %v6619, 7
        %v6621 = vsub.s32 %v6455, %v6620
        %v6622 = vrot.slane %v6310, %v6621
        %v6623 = vsel %vm6460, %v6622, %v6618
        %v6624 = vlaneseq
        %v6625 = vshrl.u32 %v6624, 7
        %v6626 = vsub.s32 %v6462, %v6625
        %v6627 = vrot.slane %v6313, %v6626
        %v6628 = vsel %vm6467, %v6627, %v6623
        %v6629 = vlaneseq
        %v6630 = vshrl.u32 %v6629, 7
        %v6631 = vsub.s32 %v6469, %v6630
        %v6632 = vrot.slane %v6316, %v6631
        %v6633 = vsel %vm6474, %v6632, %v6628
        %v6634 = vlaneseq
        %v6635 = vshrl.u32 %v6634, 7
        %v6636 = vsub.s32 %v6366, %v6635
        %v6637 = vrot.slane %v6319, %v6636
        %v6638 = vlaneseq
        %v6639 = vshrl.u32 %v6638, 7
        %v6640 = vsub.s32 %v6371, %v6639
        %v6641 = vrot.slane %v6322, %v6640
        %v6642 = vsel %vm6376, %v6641, %v6637
        %v6643 = vlaneseq
        %v6644 = vshrl.u32 %v6643, 7
        %v6645 = vsub.s32 %v6378, %v6644
        %v6646 = vrot.slane %v6325, %v6645
        %v6647 = vsel %vm6383, %v6646, %v6642
        %v6648 = vlaneseq
        %v6649 = vshrl.u32 %v6648, 7
        %v6650 = vsub.s32 %v6385, %v6649
        %v6651 = vrot.slane %v6328, %v6650
        %v6652 = vsel %vm6390, %v6651, %v6647
        %v6653 = vlaneseq
        %v6654 = vshrl.u32 %v6653, 7
        %v6655 = vsub.s32 %v6392, %v6654
        %v6656 = vrot.slane %v6331, %v6655
        %v6657 = vsel %vm6397, %v6656, %v6652
        %v6658 = vlaneseq
        %v6659 = vshrl.u32 %v6658, 7
        %v6660 = vsub.s32 %v6399, %v6659
        %v6661 = vrot.slane %v6334, %v6660
        %v6662 = vsel %vm6404, %v6661, %v6657
        %v6663 = vlaneseq
        %v6664 = vshrl.u32 %v6663, 7
        %v6665 = vsub.s32 %v6406, %v6664
        %v6666 = vrot.slane %v6337, %v6665
        %v6667 = vsel %vm6411, %v6666, %v6662
        %v6668 = vlaneseq
        %v6669 = vshrl.u32 %v6668, 7
        %v6670 = vsub.s32 %v6413, %v6669
        %v6671 = vrot.slane %v6340, %v6670
        %v6672 = vsel %vm6418, %v6671, %v6667
        %v6673 = vlaneseq
        %v6674 = vshrl.u32 %v6673, 7
        %v6675 = vsub.s32 %v6420, %v6674
        %v6676 = vrot.slane %v6343, %v6675
        %v6677 = vsel %vm6425, %v6676, %v6672
        %v6678 = vlaneseq
        %v6679 = vshrl.u32 %v6678, 7
        %v6680 = vsub.s32 %v6427, %v6679
        %v6681 = vrot.slane %v6346, %v6680
        %v6682 = vsel %vm6432, %v6681, %v6677
        %v6683 = vlaneseq
        %v6684 = vshrl.u32 %v6683, 7
        %v6685 = vsub.s32 %v6434, %v6684
        %v6686 = vrot.slane %v6349, %v6685
        %v6687 = vsel %vm6439, %v6686, %v6682
        %v6688 = vlaneseq
        %v6689 = vshrl.u32 %v6688, 7
        %v6690 = vsub.s32 %v6441, %v6689
        %v6691 = vrot.slane %v6352, %v6690
        %v6692 = vsel %vm6446, %v6691, %v6687
        %v6693 = vlaneseq
        %v6694 = vshrl.u32 %v6693, 7
        %v6695 = vsub.s32 %v6448, %v6694
        %v6696 = vrot.slane %v6355, %v6695
        %v6697 = vsel %vm6453, %v6696, %v6692
        %v6698 = vlaneseq
        %v6699 = vshrl.u32 %v6698, 7
        %v6700 = vsub.s32 %v6455, %v6699
        %v6701 = vrot.slane %v6358, %v6700
        %v6702 = vsel %vm6460, %v6701, %v6697
        %v6703 = vlaneseq
        %v6704 = vshrl.u32 %v6703, 7
        %v6705 = vsub.s32 %v6462, %v6704
        %v6706 = vrot.slane %v6361, %v6705
        %v6707 = vsel %vm6467, %v6706, %v6702
        %v6708 = vlaneseq
        %v6709 = vshrl.u32 %v6708, 7
        %v6710 = vsub.s32 %v6469, %v6709
        %v6711 = vrot.slane %v6364, %v6710
        %v6712 = vsel %vm6474, %v6711, %v6707
        %v6713 = vcombine.low %v6475, %v6554
        %v6714 = vcombine.low %v6633, %v6712
        %v6716 = vunpack.c.l.s4 1966171168
        %v6717 = vunpack.c.0.s8 %v6716
        %v6718 = vlaneseq
        %v6719 = vshrl.u32 %v6718, 7
        %v6720 = vsub.s32 %v6717, %v6719
        %v6721 = vrot.slane %v6713, %v6720
        %v6723 = vunpack.c.l.s4 1966171168
        %v6724 = vunpack.c.0.s8 %v6723
        %v6725 = vlaneseq
        %v6726 = vshrl.u32 %v6725, 7
        %v6727 = vsub.s32 %v6724, %v6726
        %v6728 = vrot.slane %v6714, %v6727
        %v6729 = vcombine.low %v6721, %v6728
        %v6731 = vunpack.c.l.s4 1966171168
        %v6732 = vunpack.c.0.s8 %v6731
        %v6733 = vlaneseq
        %v6734 = vshrl.u32 %v6733, 7
        %v6735 = vsub.s32 %v6732, %v6734
        %v6736 = vrot.slane %v6729, %v6735
        %v6738 = vlaneseq
        %vm6739 = vcmp.ge.s32.totalorder %v6738, 0
        %vm6740 = vcmp.lt.s32.totalorder %v6738, 512
        %vm6741 = vmand %vm6739, %vm6740
        %6742 = vst.msk [vmem:[%s208] sm:$0xf] %vm6741, %v6736
        %s6743 = sand.u32 %s114, 1
        %s6744 = scalar_lea.sflag [#allocation5], %s6743
        %s6745 = sand.u32 %s114, 1
        %s6746 = smul.addr %s6745, 4
        %s6747 = scalar_lea.vmem [#allocation6], %s6746
        // Predicated region
        $region37: #{tpu_custom_call.1} parent=31 // pred_check
          %p6748 = pneg %p124
        $region38: #{tpu_custom_call.1} parent=31 // pred_check_branch
          %6750 = sbr.rel (%p6748) target = $region40
        $region39: #{tpu_custom_call.1} parent=31 // pred_region
          %s6751 = smul.u32 4, %s27
          %s6753 = ssub.s32 64, 64
          %6754 = vsyncadd %s6744, %s6753
          %s6755 = smul.addr %s26, 4
          %s6756 = sadd.s32 %s6751, %s6755
          %s6757 = smul.addr %s6756, 16
          %s6758 = scalar_lea.hbm %s3, %s6757
          %s6760 = sshll.u32 %s6747, 4
          %s6761 = int_to_ptr.vmem [resolvable:$true] %s6760
          %6763 = dma.vmem_to_hbm [thread:$0]  %s6761, 64, %s6758, %s6744
        $region40: #{tpu_custom_call.1} parent=31 // pred_fallthru
          _
      $region32: #{tpu_custom_call.1} parent=5 // pred_fallthru
        _
      %p6764 = scmp.le.s32.totalorder 2, %s17
      // Predicated region
      $region41: #{tpu_custom_call.1} parent=5 // pred_check
        %p6765 = pneg %p6764
      $region42: #{tpu_custom_call.1} parent=5 // pred_check_branch
        %6767 = sbr.rel (%p6765) target = $region44
      $region43: #{tpu_custom_call.1} parent=5 // pred_region
        %s6768 = ssub.s32 %s17, 2
        // Predicated region
        $region45: #{tpu_custom_call.1} parent=43 // pred_check
          %p6769 = pneg %p130
        $region46: #{tpu_custom_call.1} parent=43 // pred_check_branch
          %6771 = sbr.rel (%p6769) target = $region48
        $region47: #{tpu_custom_call.1} parent=43 // pred_region
          %s6772 = sand.u32 %s115, 1
          %s6773 = scalar_lea.sflag [#allocation5], %s6772
          %s6774 = sand.u32 %s115, 1
          %s6775 = smul.addr %s6774, 4
          %s6776 = scalar_lea.vmem [#allocation6], %s6775
          %6777 = dma.done %s6773, 64
        $region48: #{tpu_custom_call.1} parent=43 // pred_fallthru
          _
      $region44: #{tpu_custom_call.1} parent=5 // pred_fallthru
        _
    $region6: #{tpu_custom_call.1} parent=1 // loop_footer
      %s21 = sadd.s32 1, %s17
    $region7: #{tpu_custom_call.1} parent=1 // loop_footer_branch
      %16 = sbr.rel target = $region3
    $region8: #{tpu_custom_call.1} parent=1 // loop_exit
      _
    %6778 = vsyncpa [#allocation4], 1
    %s6779 = scalar_lea.sflag [#allocation4], 1
    %6780 = vsyncpa %s6779, 1
    %6781 = vsyncpa [#allocation5], 1
    %s6782 = scalar_lea.sflag [#allocation5], 1
    %6783 = vsyncpa %s6782, 1

</llo_original>
